<compile_context>
chip_gen: v7x
topology: tpu7x:2x2x1
jax: 0.10.0
libtpu: 0.0.40
codegen_flags: <defaults>
</compile_context>

<pallas_src>
import jax
import jax.numpy as jnp
from jax.experimental import pallas as pl
from jax.experimental.pallas import tpu as pltpu

PI = 3.14159                      # matches the PyTorch spec (not math.pi)
A_CONST = (2 * PI) ** 0.5

# ---- sizes (small, synthetic) ------------------------------------------------
N_GRAPHS = 8          # batch of graphs (one grid step per graph)
N_NODES = 16          # nodes per graph
NODE_FEAT = 16        # raw node feature dim
EDGE_FEAT = 8         # raw edge feature dim
HIDDEN = 32           # g_hidden_dim == d_model (out_dim)
N_LAYERS = 2          # g_L


# ---- BlockSpec helpers -------------------------------------------------------
def _graph_spec(shape):
    """Per-graph input: leading batch dim is partitioned by the grid."""
    nd = len(shape)
    blk = (1,) + tuple(shape[1:])
    return pl.BlockSpec(blk, lambda b, nd=nd: (b,) + (0,) * (nd - 1))


def _weight_spec(shape):
    """Weights: constant index_map -> stay resident across grid steps."""
    nd = len(shape)
    return pl.BlockSpec(tuple(shape), lambda b, nd=nd: (0,) * nd)


# ---- the single fused kernel (runs once per graph) ---------------------------
def fused_gatedgcn_kernel(
        h_raw_ref, e_raw_ref, adj3d_ref, mask_ref,       # per-graph data
        wh_ref, bh_ref, we_ref, be_ref,                  # node/edge embeddings
        gscale_ref, gshift_ref, gcoef_ref,               # gaussian (host-folded)
        wab_ref, bab_ref, wde_ref, wc_ref, bc_ref,       # stacked layer weights
        w1_ref, b1_ref, w2_ref, b2_ref, w3_ref, b3_ref,  # MLP readout
        score_ref, hg_ref):
    n, hd = N_NODES, HIDDEN

    # ---- embedding_h / embedding_e (in_feat_dropout = identity in eval) ------
    h = jnp.dot(h_raw_ref[0], wh_ref[...],
                preferred_element_type=jnp.float32) + bh_ref[...]          # (N, H)
    e = jnp.dot(e_raw_ref[0], we_ref[...],
                preferred_element_type=jnp.float32) + be_ref[...]          # (N*N, H)

    # ---- GaussianBondLayer(adj_3d): mul/bias folded into scale/shift ---------
    z = adj3d_ref[0] * gscale_ref[...] + gshift_ref[...]                   # (N*N, H)
    gauss = jnp.exp(-0.5 * z * z) * gcoef_ref[...]
    e = e + gauss                                                          # flat (N*N, H)

    mask3 = mask_ref[0][:, :, None]                                        # (N, N, 1)

    # ---- GatedGCN layers: residual, graph_norm=False, batch_norm off --------
    for l in range(N_LAYERS):                 # static unroll, weights in VMEM
        # node projections: [A|B] keeps its bias, [D|E] bias folded into b_c
        hAB = jnp.dot(h, wab_ref[l], preferred_element_type=jnp.float32) \
            + bab_ref[l]                                                   # (N, 2H)
        Ah = hAB[:, :hd]
        Bh = hAB[:, hd:]
        hDE = jnp.dot(h, wde_ref[l], preferred_element_type=jnp.float32)   # (N, 2H)
        Dh = hDE[:, :hd]
        Eh = hDE[:, hd:]

        # edge projection; b_c already contains b_C + b_D + b_E
        Ce = jnp.dot(e, wc_ref[l], preferred_element_type=jnp.float32) + bc_ref[l]

        # e_hat_ij = D h_i + E h_j + C e_ij ; gate only real edges
        e_hat = Dh[:, None, :] + Eh[None, :, :] + Ce.reshape(n, n, hd)     # (N, N, H)
        sigma = jax.nn.sigmoid(e_hat) * mask3

        num = jnp.sum(sigma * Bh[None, :, :], axis=1)                      # (N, H)
        den = jnp.sum(sigma, axis=1) + 1e-6                                # (N, H)

        h = h + jax.nn.relu(Ah + num / den)                                # residual
        e = e + jax.nn.relu(e_hat).reshape(n * n, hd)                      # residual

    # ---- mean readout + MLPReadout (L=2): 32 -> 16 -> 8 -> 1 -----------------
    hg = jnp.mean(h, axis=0, keepdims=True)                                # (1, H)
    y = jax.nn.relu(jnp.dot(hg, w1_ref[...],
                            preferred_element_type=jnp.float32) + b1_ref[...])
    y = jax.nn.relu(jnp.dot(y, w2_ref[...],
                            preferred_element_type=jnp.float32) + b2_ref[...])
    y = jnp.dot(y, w3_ref[...], preferred_element_type=jnp.float32) + b3_ref[...]

    score_ref[0] = y                                                       # (1, 1)
    hg_ref[0] = hg                                                         # (1, H)


# ---- full forward (one batched pallas_call) ----------------------------------
def gated_gcn_net_forward(params, h_raw, e_raw, adj3d, mask):
    B = h_raw.shape[0]

    # Host-side parameter prep (constant folding / packing only, no data compute)
    std = jnp.abs(params["g_stds"]) + 1e-5                  # (1, H)
    inv_std = 1.0 / std
    g_coef = 1.0 / (A_CONST * std)
    mul = params["g_mul"][0, 0]
    bias = params["g_bias"][0, 0]
    g_scale = mul * inv_std                                  # (1, H)
    g_shift = (bias - params["g_means"]) * inv_std           # (1, H)

    layers = params["layers"]
    w_ab = jnp.stack([jnp.concatenate([lp["wA"], lp["wB"]], axis=1) for lp in layers])
    b_ab = jnp.stack([jnp.concatenate([lp["bA"], lp["bB"]], axis=1) for lp in layers])
    w_de = jnp.stack([jnp.concatenate([lp["wD"], lp["wE"]], axis=1) for lp in layers])
    w_c = jnp.stack([lp["wC"] for lp in layers])
    b_c = jnp.stack([lp["bC"] + lp["bD"] + lp["bE"] for lp in layers])   # bias fold

    inputs = [
        h_raw, e_raw, adj3d, mask,
        params["W_h"], params["b_h"], params["W_e"], params["b_e"],
        g_scale, g_shift, g_coef,
        w_ab, b_ab, w_de, w_c, b_c,
        params["W1"], params["b1"], params["W2"], params["b2"],
        params["W3"], params["b3"],
    ]
    in_specs = [_graph_spec(x.shape) for x in inputs[:4]] + \
               [_weight_spec(x.shape) for x in inputs[4:]]

    out_shapes = (
        jax.ShapeDtypeStruct((B, 1, 1), jnp.float32),        # score per graph
        jax.ShapeDtypeStruct((B, 1, HIDDEN), jnp.float32),   # hg per graph
    )
    out_specs = (
        pl.BlockSpec((1, 1, 1), lambda b: (b, 0, 0)),
        pl.BlockSpec((1, 1, HIDDEN), lambda b: (b, 0, 0)),
    )

    score, hg = pl.pallas_call(
        fused_gatedgcn_kernel,
        out_shape=out_shapes,
        grid=(B,),
        in_specs=in_specs,
        out_specs=out_specs,
        compiler_params=pltpu.CompilerParams(
            dimension_semantics=("parallel",)),   # shard graphs across TCs (v7x)
    )(*inputs)
    return score.reshape(B, 1), hg.reshape(B, HIDDEN)


# ---- deterministic parameter init (PyTorch-Linear-style) ---------------------
def init_linear(key, fan_in, fan_out):
    k1, k2 = jax.random.split(key)
    lim = 1.0 / (fan_in ** 0.5)
    w = jax.random.uniform(k1, (fan_in, fan_out), jnp.float32, -lim, lim)
    b = jax.random.uniform(k2, (1, fan_out), jnp.float32, -lim, lim)
    return w, b


def init_params(key):
    ks = jax.random.split(key, 8 + 5 * N_LAYERS)
    p = {}
    p["W_h"], p["b_h"] = init_linear(ks[0], NODE_FEAT, HIDDEN)
    p["W_e"], p["b_e"] = init_linear(ks[1], EDGE_FEAT, HIDDEN)
    # GaussianBondLayer params
    p["g_means"] = jax.random.uniform(ks[2], (1, HIDDEN), jnp.float32, 0.0, 3.0)
    p["g_stds"] = jax.random.uniform(ks[3], (1, HIDDEN), jnp.float32, 0.1, 10.0)
    p["g_mul"] = jnp.ones((1, 1), jnp.float32)
    p["g_bias"] = jnp.zeros((1, 1), jnp.float32)
    # GatedGCN layers
    p["layers"] = []
    for l in range(N_LAYERS):
        lk = jax.random.split(ks[4 + l], 5)
        lp = {}
        for name, k in zip(["A", "B", "C", "D", "E"], lk):
            lp["w" + name], lp["b" + name] = init_linear(k, HIDDEN, HIDDEN)
        p["layers"].append(lp)
    # MLPReadout: 32 -> 16 -> 8 -> 1
    p["W1"], p["b1"] = init_linear(ks[4 + N_LAYERS], HIDDEN, HIDDEN // 2)
    p["W2"], p["b2"] = init_linear(ks[5 + N_LAYERS], HIDDEN // 2, HIDDEN // 4)
    p["W3"], p["b3"] = init_linear(ks[6 + N_LAYERS], HIDDEN // 4, 1)
    return p


if __name__ == "__main__":
    key = jax.random.PRNGKey(0)
    k_in, k_par = jax.random.split(key)
    ki = jax.random.split(k_in, 3)

    B, N = N_GRAPHS, N_NODES

    # deterministic synthetic batched inputs
    h_raw = jax.random.normal(ki[0], (B, N, NODE_FEAT), jnp.float32)
    e_raw = jax.random.normal(ki[1], (B, N * N, EDGE_FEAT), jnp.float32)
    coords = jax.random.normal(ki[2], (B, N, 3), jnp.float32)
    adj3d = jnp.sqrt(
        jnp.sum((coords[:, :, None, :] - coords[:, None, :, :]) ** 2, axis=-1)
        + 1e-12
    ).reshape(B, N * N, 1)

    # deterministic ring adjacency (2 nearest neighbours each way), {0,1} float
    idx = jnp.arange(N)
    d = (idx[:, None] - idx[None, :]) % N
    ring = ((d == 1) | (d == 2) | (d == N - 1) | (d == N - 2)).astype(jnp.float32)
    mask = jnp.tile(ring[None, :, :], (B, 1, 1))

    params = init_params(k_par)

    score, hg = gated_gcn_net_forward(params, h_raw, e_raw, adj3d, mask)
    jax.block_until_ready(score)

    assert score.shape == (B, 1)
    assert hg.shape == (B, HIDDEN)
    assert bool(jnp.all(jnp.isfinite(score)))
    print("KERNEL_OK")
</pallas_src>

<mosaic_0001>
module attributes {stable_mosaic.version = 11 : i64} {
  func.func @fused_gatedgcn_kernel(%arg0: i32, %arg1: memref<1x16x16xf32, #tpu.memory_space<vmem>>, %arg2: memref<1x256x8xf32, #tpu.memory_space<vmem>>, %arg3: memref<1x256x1xf32, #tpu.memory_space<vmem>>, %arg4: memref<1x16x16xf32, #tpu.memory_space<vmem>>, %arg5: memref<16x32xf32, #tpu.memory_space<vmem>>, %arg6: memref<1x32xf32, #tpu.memory_space<vmem>>, %arg7: memref<8x32xf32, #tpu.memory_space<vmem>>, %arg8: memref<1x32xf32, #tpu.memory_space<vmem>>, %arg9: memref<1x32xf32, #tpu.memory_space<vmem>>, %arg10: memref<1x32xf32, #tpu.memory_space<vmem>>, %arg11: memref<1x32xf32, #tpu.memory_space<vmem>>, %arg12: memref<2x32x64xf32, #tpu.memory_space<vmem>>, %arg13: memref<2x1x64xf32, #tpu.memory_space<vmem>>, %arg14: memref<2x32x64xf32, #tpu.memory_space<vmem>>, %arg15: memref<2x32x32xf32, #tpu.memory_space<vmem>>, %arg16: memref<2x1x32xf32, #tpu.memory_space<vmem>>, %arg17: memref<32x16xf32, #tpu.memory_space<vmem>>, %arg18: memref<1x16xf32, #tpu.memory_space<vmem>>, %arg19: memref<16x8xf32, #tpu.memory_space<vmem>>, %arg20: memref<1x8xf32, #tpu.memory_space<vmem>>, %arg21: memref<8x1xf32, #tpu.memory_space<vmem>>, %arg22: memref<1x1xf32, #tpu.memory_space<vmem>>, %arg23: memref<1x1x1xf32, #tpu.memory_space<vmem>>, %arg24: memref<1x1x32xf32, #tpu.memory_space<vmem>>) attributes {dimension_semantics = [#tpu.dimension_semantics<parallel>], iteration_bounds = array<i64: 8>, scalar_prefetch = 0 : i64, scratch_operands = 0 : i64, tpu.core_type = #tpu.core_type<tc>, window_params = [{transform_indices = @transform_0, window_bounds = array<i64: 1, 16, 16>}, {transform_indices = @transform_1, window_bounds = array<i64: 1, 256, 8>}, {transform_indices = @transform_2, window_bounds = array<i64: 1, 256, 1>}, {transform_indices = @transform_3, window_bounds = array<i64: 1, 16, 16>}, {pipeline_mode = #tpu.pipeline_mode<synchronous>, transform_indices = @transform_4, window_bounds = array<i64: 16, 32>}, {pipeline_mode = #tpu.pipeline_mode<synchronous>, transform_indices = @transform_5, window_bounds = array<i64: 1, 32>}, {pipeline_mode = #tpu.pipeline_mode<synchronous>, transform_indices = @transform_6, window_bounds = array<i64: 8, 32>}, {pipeline_mode = #tpu.pipeline_mode<synchronous>, transform_indices = @transform_7, window_bounds = array<i64: 1, 32>}, {pipeline_mode = #tpu.pipeline_mode<synchronous>, transform_indices = @transform_8, window_bounds = array<i64: 1, 32>}, {pipeline_mode = #tpu.pipeline_mode<synchronous>, transform_indices = @transform_9, window_bounds = array<i64: 1, 32>}, {pipeline_mode = #tpu.pipeline_mode<synchronous>, transform_indices = @transform_10, window_bounds = array<i64: 1, 32>}, {pipeline_mode = #tpu.pipeline_mode<synchronous>, transform_indices = @transform_11, window_bounds = array<i64: 2, 32, 64>}, {pipeline_mode = #tpu.pipeline_mode<synchronous>, transform_indices = @transform_12, window_bounds = array<i64: 2, 1, 64>}, {pipeline_mode = #tpu.pipeline_mode<synchronous>, transform_indices = @transform_13, window_bounds = array<i64: 2, 32, 64>}, {pipeline_mode = #tpu.pipeline_mode<synchronous>, transform_indices = @transform_14, window_bounds = array<i64: 2, 32, 32>}, {pipeline_mode = #tpu.pipeline_mode<synchronous>, transform_indices = @transform_15, window_bounds = array<i64: 2, 1, 32>}, {pipeline_mode = #tpu.pipeline_mode<synchronous>, transform_indices = @transform_16, window_bounds = array<i64: 32, 16>}, {pipeline_mode = #tpu.pipeline_mode<synchronous>, transform_indices = @transform_17, window_bounds = array<i64: 1, 16>}, {pipeline_mode = #tpu.pipeline_mode<synchronous>, transform_indices = @transform_18, window_bounds = array<i64: 16, 8>}, {pipeline_mode = #tpu.pipeline_mode<synchronous>, transform_indices = @transform_19, window_bounds = array<i64: 1, 8>}, {pipeline_mode = #tpu.pipeline_mode<synchronous>, transform_indices = @transform_20, window_bounds = array<i64: 8, 1>}, {pipeline_mode = #tpu.pipeline_mode<synchronous>, transform_indices = @transform_21, window_bounds = array<i64: 1, 1>}, {transform_indices = @transform_22, window_bounds = array<i64: 1, 1, 1>}, {transform_indices = @transform_23, window_bounds = array<i64: 1, 1, 32>}]} {
    %c0 = arith.constant 0 : index
    %c0_0 = arith.constant 0 : index
    %c0_1 = arith.constant 0 : index
    %0 = vector.load %arg1[%c0, %c0_0, %c0_1] : memref<1x16x16xf32, #tpu.memory_space<vmem>>, vector<1x16x16xf32>
    %1 = vector.shape_cast %0 : vector<1x16x16xf32> to vector<16x16xf32>
    %c0_2 = arith.constant 0 : index
    %c0_3 = arith.constant 0 : index
    %2 = vector.load %arg5[%c0_2, %c0_3] : memref<16x32xf32, #tpu.memory_space<vmem>>, vector<16x32xf32>
    %cst = arith.constant dense<0.000000e+00> : vector<16x32xf32>
    %3 = tpu.matmul %1, %2, %cst {dimension_numbers = #tpu.dot_dimension_numbers<[1], [0], [0], [1], [0, 0, 1, 1], [], []>} : vector<16x16xf32>, vector<16x32xf32>, vector<16x32xf32> -> vector<16x32xf32>
    %c0_4 = arith.constant 0 : index
    %c0_5 = arith.constant 0 : index
    %4 = vector.load %arg6[%c0_4, %c0_5] : memref<1x32xf32, #tpu.memory_space<vmem>>, vector<1x32xf32>
    %5 = vector.broadcast %4 : vector<1x32xf32> to vector<16x32xf32>
    %6 = arith.addf %3, %5 : vector<16x32xf32>
    %c0_6 = arith.constant 0 : index
    %c0_7 = arith.constant 0 : index
    %c0_8 = arith.constant 0 : index
    %7 = vector.load %arg2[%c0_6, %c0_7, %c0_8] : memref<1x256x8xf32, #tpu.memory_space<vmem>>, vector<1x256x8xf32>
    %8 = vector.shape_cast %7 : vector<1x256x8xf32> to vector<256x8xf32>
    %c0_9 = arith.constant 0 : index
    %c0_10 = arith.constant 0 : index
    %9 = vector.load %arg7[%c0_9, %c0_10] : memref<8x32xf32, #tpu.memory_space<vmem>>, vector<8x32xf32>
    %cst_11 = arith.constant dense<0.000000e+00> : vector<256x32xf32>
    %10 = tpu.matmul %8, %9, %cst_11 {dimension_numbers = #tpu.dot_dimension_numbers<[1], [0], [0], [1], [0, 0, 1, 1], [], []>} : vector<256x8xf32>, vector<8x32xf32>, vector<256x32xf32> -> vector<256x32xf32>
    %c0_12 = arith.constant 0 : index
    %c0_13 = arith.constant 0 : index
    %11 = vector.load %arg8[%c0_12, %c0_13] : memref<1x32xf32, #tpu.memory_space<vmem>>, vector<1x32xf32>
    %12 = vector.broadcast %11 : vector<1x32xf32> to vector<256x32xf32>
    %13 = arith.addf %10, %12 : vector<256x32xf32>
    %c0_14 = arith.constant 0 : index
    %c0_15 = arith.constant 0 : index
    %c0_16 = arith.constant 0 : index
    %14 = vector.load %arg3[%c0_14, %c0_15, %c0_16] : memref<1x256x1xf32, #tpu.memory_space<vmem>>, vector<1x256x1xf32>
    %15 = vector.shape_cast %14 : vector<1x256x1xf32> to vector<256x1xf32>
    %c0_17 = arith.constant 0 : index
    %c0_18 = arith.constant 0 : index
    %16 = vector.load %arg9[%c0_17, %c0_18] : memref<1x32xf32, #tpu.memory_space<vmem>>, vector<1x32xf32>
    %17 = vector.broadcast %15 : vector<256x1xf32> to vector<256x32xf32>
    %18 = vector.broadcast %16 : vector<1x32xf32> to vector<256x32xf32>
    %19 = arith.mulf %17, %18 : vector<256x32xf32>
    %c0_19 = arith.constant 0 : index
    %c0_20 = arith.constant 0 : index
    %20 = vector.load %arg10[%c0_19, %c0_20] : memref<1x32xf32, #tpu.memory_space<vmem>>, vector<1x32xf32>
    %21 = vector.broadcast %20 : vector<1x32xf32> to vector<256x32xf32>
    %22 = arith.addf %19, %21 : vector<256x32xf32>
    %cst_21 = arith.constant -5.000000e-01 : f32
    %23 = vector.broadcast %cst_21 : f32 to vector<256x32xf32>
    %24 = arith.mulf %23, %22 : vector<256x32xf32>
    %25 = arith.mulf %24, %22 : vector<256x32xf32>
    %26 = math.exp %25 : vector<256x32xf32>
    %c0_22 = arith.constant 0 : index
    %c0_23 = arith.constant 0 : index
    %27 = vector.load %arg11[%c0_22, %c0_23] : memref<1x32xf32, #tpu.memory_space<vmem>>, vector<1x32xf32>
    %28 = vector.broadcast %27 : vector<1x32xf32> to vector<256x32xf32>
    %29 = arith.mulf %26, %28 : vector<256x32xf32>
    %30 = arith.addf %13, %29 : vector<256x32xf32>
    %c0_24 = arith.constant 0 : index
    %c0_25 = arith.constant 0 : index
    %c0_26 = arith.constant 0 : index
    %31 = vector.load %arg4[%c0_24, %c0_25, %c0_26] : memref<1x16x16xf32, #tpu.memory_space<vmem>>, vector<1x16x16xf32>
    %32 = vector.shape_cast %31 : vector<1x16x16xf32> to vector<16x16xf32>
    %33 = vector.shape_cast %32 : vector<16x16xf32> to vector<16x16x1xf32>
    %c0_27 = arith.constant 0 : index
    %c0_28 = arith.constant 0 : index
    %c0_29 = arith.constant 0 : index
    %34 = vector.load %arg12[%c0_27, %c0_28, %c0_29] : memref<2x32x64xf32, #tpu.memory_space<vmem>>, vector<1x32x64xf32>
    %35 = vector.shape_cast %34 : vector<1x32x64xf32> to vector<32x64xf32>
    %cst_30 = arith.constant dense<0.000000e+00> : vector<16x64xf32>
    %36 = tpu.matmul %6, %35, %cst_30 {dimension_numbers = #tpu.dot_dimension_numbers<[1], [0], [0], [1], [0, 0, 1, 1], [], []>} : vector<16x32xf32>, vector<32x64xf32>, vector<16x64xf32> -> vector<16x64xf32>
    %c0_31 = arith.constant 0 : index
    %c0_32 = arith.constant 0 : index
    %c0_33 = arith.constant 0 : index
    %37 = vector.load %arg13[%c0_31, %c0_32, %c0_33] : memref<2x1x64xf32, #tpu.memory_space<vmem>>, vector<1x1x64xf32>
    %38 = vector.shape_cast %37 : vector<1x1x64xf32> to vector<1x64xf32>
    %39 = vector.broadcast %38 : vector<1x64xf32> to vector<16x64xf32>
    %40 = arith.addf %36, %39 : vector<16x64xf32>
    %41 = vector.extract_strided_slice %40 {offsets = [0, 0], sizes = [16, 32], strides = [1, 1]} : vector<16x64xf32> to vector<16x32xf32>
    %42 = vector.extract_strided_slice %40 {offsets = [0, 32], sizes = [16, 32], strides = [1, 1]} : vector<16x64xf32> to vector<16x32xf32>
    %c0_34 = arith.constant 0 : index
    %c0_35 = arith.constant 0 : index
    %c0_36 = arith.constant 0 : index
    %43 = vector.load %arg14[%c0_34, %c0_35, %c0_36] : memref<2x32x64xf32, #tpu.memory_space<vmem>>, vector<1x32x64xf32>
    %44 = vector.shape_cast %43 : vector<1x32x64xf32> to vector<32x64xf32>
    %cst_37 = arith.constant dense<0.000000e+00> : vector<16x64xf32>
    %45 = tpu.matmul %6, %44, %cst_37 {dimension_numbers = #tpu.dot_dimension_numbers<[1], [0], [0], [1], [0, 0, 1, 1], [], []>} : vector<16x32xf32>, vector<32x64xf32>, vector<16x64xf32> -> vector<16x64xf32>
    %46 = vector.extract_strided_slice %45 {offsets = [0, 0], sizes = [16, 32], strides = [1, 1]} : vector<16x64xf32> to vector<16x32xf32>
    %47 = vector.extract_strided_slice %45 {offsets = [0, 32], sizes = [16, 32], strides = [1, 1]} : vector<16x64xf32> to vector<16x32xf32>
    %c0_38 = arith.constant 0 : index
    %c0_39 = arith.constant 0 : index
    %c0_40 = arith.constant 0 : index
    %48 = vector.load %arg15[%c0_38, %c0_39, %c0_40] : memref<2x32x32xf32, #tpu.memory_space<vmem>>, vector<1x32x32xf32>
    %49 = vector.shape_cast %48 : vector<1x32x32xf32> to vector<32x32xf32>
    %cst_41 = arith.constant dense<0.000000e+00> : vector<256x32xf32>
    %50 = tpu.matmul %30, %49, %cst_41 {dimension_numbers = #tpu.dot_dimension_numbers<[1], [0], [0], [1], [0, 0, 1, 1], [], []>} : vector<256x32xf32>, vector<32x32xf32>, vector<256x32xf32> -> vector<256x32xf32>
    %c0_42 = arith.constant 0 : index
    %c0_43 = arith.constant 0 : index
    %c0_44 = arith.constant 0 : index
    %51 = vector.load %arg16[%c0_42, %c0_43, %c0_44] : memref<2x1x32xf32, #tpu.memory_space<vmem>>, vector<1x1x32xf32>
    %52 = vector.shape_cast %51 : vector<1x1x32xf32> to vector<1x32xf32>
    %53 = vector.broadcast %52 : vector<1x32xf32> to vector<256x32xf32>
    %54 = arith.addf %50, %53 : vector<256x32xf32>
    %55 = vector.shape_cast %46 : vector<16x32xf32> to vector<16x1x32xf32>
    %56 = vector.shape_cast %47 : vector<16x32xf32> to vector<1x16x32xf32>
    %57 = vector.broadcast %55 : vector<16x1x32xf32> to vector<16x16x32xf32>
    %58 = vector.broadcast %56 : vector<1x16x32xf32> to vector<16x16x32xf32>
    %59 = arith.addf %57, %58 : vector<16x16x32xf32>
    %60 = vector.shape_cast %54 : vector<256x32xf32> to vector<16x16x32xf32>
    %61 = arith.addf %59, %60 : vector<16x16x32xf32>
    %62 = arith.negf %61 : vector<16x16x32xf32>
    %63 = math.exp %62 : vector<16x16x32xf32>
    %cst_45 = arith.constant 1.000000e+00 : f32
    %64 = vector.broadcast %cst_45 : f32 to vector<16x16x32xf32>
    %65 = arith.addf %64, %63 : vector<16x16x32xf32>
    %66 = arith.divf %64, %65 : vector<16x16x32xf32>
    %67 = vector.broadcast %33 : vector<16x16x1xf32> to vector<16x16x32xf32>
    %68 = arith.mulf %66, %67 : vector<16x16x32xf32>
    %69 = vector.shape_cast %42 : vector<16x32xf32> to vector<1x16x32xf32>
    %70 = vector.broadcast %69 : vector<1x16x32xf32> to vector<16x16x32xf32>
    %71 = arith.mulf %68, %70 : vector<16x16x32xf32>
    %cst_46 = arith.constant dense<0.000000e+00> : vector<16x32xf32>
    %72 = vector.multi_reduction <add>, %71, %cst_46 [1] : vector<16x16x32xf32> to vector<16x32xf32>
    %cst_47 = arith.constant dense<0.000000e+00> : vector<16x32xf32>
    %73 = vector.multi_reduction <add>, %68, %cst_47 [1] : vector<16x16x32xf32> to vector<16x32xf32>
    %cst_48 = arith.constant 9.99999997E-7 : f32
    %74 = vector.broadcast %cst_48 : f32 to vector<16x32xf32>
    %75 = arith.addf %73, %74 : vector<16x32xf32>
    %76 = arith.divf %72, %75 : vector<16x32xf32>
    %77 = arith.addf %41, %76 : vector<16x32xf32>
    %cst_49 = arith.constant 0.000000e+00 : f32
    %78 = vector.broadcast %cst_49 : f32 to vector<16x32xf32>
    %79 = arith.maximumf %77, %78 : vector<16x32xf32>
    %80 = arith.addf %6, %79 : vector<16x32xf32>
    %cst_50 = arith.constant 0.000000e+00 : f32
    %81 = vector.broadcast %cst_50 : f32 to vector<16x16x32xf32>
    %82 = arith.maximumf %61, %81 : vector<16x16x32xf32>
    %83 = vector.shape_cast %82 : vector<16x16x32xf32> to vector<256x32xf32>
    %84 = arith.addf %30, %83 : vector<256x32xf32>
    %c1 = arith.constant 1 : index
    %c0_51 = arith.constant 0 : index
    %c0_52 = arith.constant 0 : index
    %85 = vector.load %arg12[%c1, %c0_51, %c0_52] : memref<2x32x64xf32, #tpu.memory_space<vmem>>, vector<1x32x64xf32>
    %86 = vector.shape_cast %85 : vector<1x32x64xf32> to vector<32x64xf32>
    %cst_53 = arith.constant dense<0.000000e+00> : vector<16x64xf32>
    %87 = tpu.matmul %80, %86, %cst_53 {dimension_numbers = #tpu.dot_dimension_numbers<[1], [0], [0], [1], [0, 0, 1, 1], [], []>} : vector<16x32xf32>, vector<32x64xf32>, vector<16x64xf32> -> vector<16x64xf32>
    %c1_54 = arith.constant 1 : index
    %c0_55 = arith.constant 0 : index
    %c0_56 = arith.constant 0 : index
    %88 = vector.load %arg13[%c1_54, %c0_55, %c0_56] : memref<2x1x64xf32, #tpu.memory_space<vmem>>, vector<1x1x64xf32>
    %89 = vector.shape_cast %88 : vector<1x1x64xf32> to vector<1x64xf32>
    %90 = vector.broadcast %89 : vector<1x64xf32> to vector<16x64xf32>
    %91 = arith.addf %87, %90 : vector<16x64xf32>
    %92 = vector.extract_strided_slice %91 {offsets = [0, 0], sizes = [16, 32], strides = [1, 1]} : vector<16x64xf32> to vector<16x32xf32>
    %93 = vector.extract_strided_slice %91 {offsets = [0, 32], sizes = [16, 32], strides = [1, 1]} : vector<16x64xf32> to vector<16x32xf32>
    %c1_57 = arith.constant 1 : index
    %c0_58 = arith.constant 0 : index
    %c0_59 = arith.constant 0 : index
    %94 = vector.load %arg14[%c1_57, %c0_58, %c0_59] : memref<2x32x64xf32, #tpu.memory_space<vmem>>, vector<1x32x64xf32>
    %95 = vector.shape_cast %94 : vector<1x32x64xf32> to vector<32x64xf32>
    %cst_60 = arith.constant dense<0.000000e+00> : vector<16x64xf32>
    %96 = tpu.matmul %80, %95, %cst_60 {dimension_numbers = #tpu.dot_dimension_numbers<[1], [0], [0], [1], [0, 0, 1, 1], [], []>} : vector<16x32xf32>, vector<32x64xf32>, vector<16x64xf32> -> vector<16x64xf32>
    %97 = vector.extract_strided_slice %96 {offsets = [0, 0], sizes = [16, 32], strides = [1, 1]} : vector<16x64xf32> to vector<16x32xf32>
    %98 = vector.extract_strided_slice %96 {offsets = [0, 32], sizes = [16, 32], strides = [1, 1]} : vector<16x64xf32> to vector<16x32xf32>
    %c1_61 = arith.constant 1 : index
    %c0_62 = arith.constant 0 : index
    %c0_63 = arith.constant 0 : index
    %99 = vector.load %arg15[%c1_61, %c0_62, %c0_63] : memref<2x32x32xf32, #tpu.memory_space<vmem>>, vector<1x32x32xf32>
    %100 = vector.shape_cast %99 : vector<1x32x32xf32> to vector<32x32xf32>
    %cst_64 = arith.constant dense<0.000000e+00> : vector<256x32xf32>
    %101 = tpu.matmul %84, %100, %cst_64 {dimension_numbers = #tpu.dot_dimension_numbers<[1], [0], [0], [1], [0, 0, 1, 1], [], []>} : vector<256x32xf32>, vector<32x32xf32>, vector<256x32xf32> -> vector<256x32xf32>
    %c1_65 = arith.constant 1 : index
    %c0_66 = arith.constant 0 : index
    %c0_67 = arith.constant 0 : index
    %102 = vector.load %arg16[%c1_65, %c0_66, %c0_67] : memref<2x1x32xf32, #tpu.memory_space<vmem>>, vector<1x1x32xf32>
    %103 = vector.shape_cast %102 : vector<1x1x32xf32> to vector<1x32xf32>
    %104 = vector.broadcast %103 : vector<1x32xf32> to vector<256x32xf32>
    %105 = arith.addf %101, %104 : vector<256x32xf32>
    %106 = vector.shape_cast %97 : vector<16x32xf32> to vector<16x1x32xf32>
    %107 = vector.shape_cast %98 : vector<16x32xf32> to vector<1x16x32xf32>
    %108 = vector.broadcast %106 : vector<16x1x32xf32> to vector<16x16x32xf32>
    %109 = vector.broadcast %107 : vector<1x16x32xf32> to vector<16x16x32xf32>
    %110 = arith.addf %108, %109 : vector<16x16x32xf32>
    %111 = vector.shape_cast %105 : vector<256x32xf32> to vector<16x16x32xf32>
    %112 = arith.addf %110, %111 : vector<16x16x32xf32>
    %113 = arith.negf %112 : vector<16x16x32xf32>
    %114 = math.exp %113 : vector<16x16x32xf32>
    %cst_68 = arith.constant 1.000000e+00 : f32
    %115 = vector.broadcast %cst_68 : f32 to vector<16x16x32xf32>
    %116 = arith.addf %115, %114 : vector<16x16x32xf32>
    %117 = arith.divf %115, %116 : vector<16x16x32xf32>
    %118 = vector.broadcast %33 : vector<16x16x1xf32> to vector<16x16x32xf32>
    %119 = arith.mulf %117, %118 : vector<16x16x32xf32>
    %120 = vector.shape_cast %93 : vector<16x32xf32> to vector<1x16x32xf32>
    %121 = vector.broadcast %120 : vector<1x16x32xf32> to vector<16x16x32xf32>
    %122 = arith.mulf %119, %121 : vector<16x16x32xf32>
    %cst_69 = arith.constant dense<0.000000e+00> : vector<16x32xf32>
    %123 = vector.multi_reduction <add>, %122, %cst_69 [1] : vector<16x16x32xf32> to vector<16x32xf32>
    %cst_70 = arith.constant dense<0.000000e+00> : vector<16x32xf32>
    %124 = vector.multi_reduction <add>, %119, %cst_70 [1] : vector<16x16x32xf32> to vector<16x32xf32>
    %cst_71 = arith.constant 9.99999997E-7 : f32
    %125 = vector.broadcast %cst_71 : f32 to vector<16x32xf32>
    %126 = arith.addf %124, %125 : vector<16x32xf32>
    %127 = arith.divf %123, %126 : vector<16x32xf32>
    %128 = arith.addf %92, %127 : vector<16x32xf32>
    %cst_72 = arith.constant 0.000000e+00 : f32
    %129 = vector.broadcast %cst_72 : f32 to vector<16x32xf32>
    %130 = arith.maximumf %128, %129 : vector<16x32xf32>
    %131 = arith.addf %80, %130 : vector<16x32xf32>
    %cst_73 = arith.constant dense<0.000000e+00> : vector<32xf32>
    %132 = vector.multi_reduction <add>, %131, %cst_73 [0] : vector<16x32xf32> to vector<32xf32>
    %133 = vector.shape_cast %132 : vector<32xf32> to vector<1x32xf32>
    %cst_74 = arith.constant 1.600000e+01 : f32
    %134 = vector.broadcast %cst_74 : f32 to vector<1x32xf32>
    %135 = arith.divf %133, %134 : vector<1x32xf32>
    %c0_75 = arith.constant 0 : index
    %c0_76 = arith.constant 0 : index
    %136 = vector.load %arg17[%c0_75, %c0_76] : memref<32x16xf32, #tpu.memory_space<vmem>>, vector<32x16xf32>
    %cst_77 = arith.constant dense<0.000000e+00> : vector<1x16xf32>
    %137 = tpu.matmul %135, %136, %cst_77 {dimension_numbers = #tpu.dot_dimension_numbers<[1], [0], [0], [1], [0, 0, 1, 1], [], []>} : vector<1x32xf32>, vector<32x16xf32>, vector<1x16xf32> -> vector<1x16xf32>
    %c0_78 = arith.constant 0 : index
    %c0_79 = arith.constant 0 : index
    %138 = vector.load %arg18[%c0_78, %c0_79] : memref<1x16xf32, #tpu.memory_space<vmem>>, vector<1x16xf32>
    %139 = arith.addf %137, %138 : vector<1x16xf32>
    %cst_80 = arith.constant 0.000000e+00 : f32
    %140 = vector.broadcast %cst_80 : f32 to vector<1x16xf32>
    %141 = arith.maximumf %139, %140 : vector<1x16xf32>
    %c0_81 = arith.constant 0 : index
    %c0_82 = arith.constant 0 : index
    %142 = vector.load %arg19[%c0_81, %c0_82] : memref<16x8xf32, #tpu.memory_space<vmem>>, vector<16x8xf32>
    %cst_83 = arith.constant dense<0.000000e+00> : vector<1x8xf32>
    %143 = tpu.matmul %141, %142, %cst_83 {dimension_numbers = #tpu.dot_dimension_numbers<[1], [0], [0], [1], [0, 0, 1, 1], [], []>} : vector<1x16xf32>, vector<16x8xf32>, vector<1x8xf32> -> vector<1x8xf32>
    %c0_84 = arith.constant 0 : index
    %c0_85 = arith.constant 0 : index
    %144 = vector.load %arg20[%c0_84, %c0_85] : memref<1x8xf32, #tpu.memory_space<vmem>>, vector<1x8xf32>
    %145 = arith.addf %143, %144 : vector<1x8xf32>
    %cst_86 = arith.constant 0.000000e+00 : f32
    %146 = vector.broadcast %cst_86 : f32 to vector<1x8xf32>
    %147 = arith.maximumf %145, %146 : vector<1x8xf32>
    %c0_87 = arith.constant 0 : index
    %c0_88 = arith.constant 0 : index
    %148 = vector.load %arg21[%c0_87, %c0_88] : memref<8x1xf32, #tpu.memory_space<vmem>>, vector<8x1xf32>
    %cst_89 = arith.constant dense<0.000000e+00> : vector<1x1xf32>
    %149 = tpu.matmul %147, %148, %cst_89 {dimension_numbers = #tpu.dot_dimension_numbers<[1], [0], [0], [1], [0, 0, 1, 1], [], []>} : vector<1x8xf32>, vector<8x1xf32>, vector<1x1xf32> -> vector<1x1xf32>
    %c0_90 = arith.constant 0 : index
    %c0_91 = arith.constant 0 : index
    %150 = vector.load %arg22[%c0_90, %c0_91] : memref<1x1xf32, #tpu.memory_space<vmem>>, vector<1x1xf32>
    %151 = arith.addf %149, %150 : vector<1x1xf32>
    %c0_92 = arith.constant 0 : index
    %c0_93 = arith.constant 0 : index
    %c0_94 = arith.constant 0 : index
    %152 = vector.load %arg23[%c0_92, %c0_93, %c0_94] : memref<1x1x1xf32, #tpu.memory_space<vmem>>, vector<1x1x1xf32>
    %153 = vector.shape_cast %152 : vector<1x1x1xf32> to vector<1x1xf32>
    %154 = vector.shape_cast %151 : vector<1x1xf32> to vector<1x1x1xf32>
    tpu.vector_store %arg23[%c0_92, %c0_93, %c0_94], %154 {strides = array<i32>} : memref<1x1x1xf32, #tpu.memory_space<vmem>>, vector<1x1x1xf32>,
    %c0_95 = arith.constant 0 : index
    %c0_96 = arith.constant 0 : index
    %c0_97 = arith.constant 0 : index
    %155 = vector.load %arg24[%c0_95, %c0_96, %c0_97] : memref<1x1x32xf32, #tpu.memory_space<vmem>>, vector<1x1x32xf32>
    %156 = vector.shape_cast %155 : vector<1x1x32xf32> to vector<1x32xf32>
    %157 = vector.shape_cast %135 : vector<1x32xf32> to vector<1x1x32xf32>
    tpu.vector_store %arg24[%c0_95, %c0_96, %c0_97], %157 {strides = array<i32>} : memref<1x1x32xf32, #tpu.memory_space<vmem>>, vector<1x1x32xf32>,
    return
  }
  func.func @transform_0(%arg0: i32) -> (i32, i32, i32) {
    %c0_i32 = arith.constant 0 : i32
    %c0_i32_0 = arith.constant 0 : i32
    %c0_i32_1 = arith.constant 0 : i32
    return %arg0, %c0_i32, %c0_i32_0 : i32, i32, i32
  }
  func.func @transform_1(%arg0: i32) -> (i32, i32, i32) {
    %c0_i32 = arith.constant 0 : i32
    %c0_i32_0 = arith.constant 0 : i32
    %c0_i32_1 = arith.constant 0 : i32
    return %arg0, %c0_i32, %c0_i32_0 : i32, i32, i32
  }
  func.func @transform_2(%arg0: i32) -> (i32, i32, i32) {
    %c0_i32 = arith.constant 0 : i32
    %c0_i32_0 = arith.constant 0 : i32
    %c0_i32_1 = arith.constant 0 : i32
    return %arg0, %c0_i32, %c0_i32_0 : i32, i32, i32
  }
  func.func @transform_3(%arg0: i32) -> (i32, i32, i32) {
    %c0_i32 = arith.constant 0 : i32
    %c0_i32_0 = arith.constant 0 : i32
    %c0_i32_1 = arith.constant 0 : i32
    return %arg0, %c0_i32, %c0_i32_0 : i32, i32, i32
  }
  func.func @transform_4(%arg0: i32) -> (i32, i32) {
    %c0_i32 = arith.constant 0 : i32
    %c0_i32_0 = arith.constant 0 : i32
    %c0_i32_1 = arith.constant 0 : i32
    return %c0_i32, %c0_i32_0 : i32, i32
  }
  func.func @transform_5(%arg0: i32) -> (i32, i32) {
    %c0_i32 = arith.constant 0 : i32
    %c0_i32_0 = arith.constant 0 : i32
    %c0_i32_1 = arith.constant 0 : i32
    return %c0_i32, %c0_i32_0 : i32, i32
  }
  func.func @transform_6(%arg0: i32) -> (i32, i32) {
    %c0_i32 = arith.constant 0 : i32
    %c0_i32_0 = arith.constant 0 : i32
    %c0_i32_1 = arith.constant 0 : i32
    return %c0_i32, %c0_i32_0 : i32, i32
  }
  func.func @transform_7(%arg0: i32) -> (i32, i32) {
    %c0_i32 = arith.constant 0 : i32
    %c0_i32_0 = arith.constant 0 : i32
    %c0_i32_1 = arith.constant 0 : i32
    return %c0_i32, %c0_i32_0 : i32, i32
  }
  func.func @transform_8(%arg0: i32) -> (i32, i32) {
    %c0_i32 = arith.constant 0 : i32
    %c0_i32_0 = arith.constant 0 : i32
    %c0_i32_1 = arith.constant 0 : i32
    return %c0_i32, %c0_i32_0 : i32, i32
  }
  func.func @transform_9(%arg0: i32) -> (i32, i32) {
    %c0_i32 = arith.constant 0 : i32
    %c0_i32_0 = arith.constant 0 : i32
    %c0_i32_1 = arith.constant 0 : i32
    return %c0_i32, %c0_i32_0 : i32, i32
  }
  func.func @transform_10(%arg0: i32) -> (i32, i32) {
    %c0_i32 = arith.constant 0 : i32
    %c0_i32_0 = arith.constant 0 : i32
    %c0_i32_1 = arith.constant 0 : i32
    return %c0_i32, %c0_i32_0 : i32, i32
  }
  func.func @transform_11(%arg0: i32) -> (i32, i32, i32) {
    %c0_i32 = arith.constant 0 : i32
    %c0_i32_0 = arith.constant 0 : i32
    %c0_i32_1 = arith.constant 0 : i32
    %c0_i32_2 = arith.constant 0 : i32
    return %c0_i32, %c0_i32_0, %c0_i32_1 : i32, i32, i32
  }
  func.func @transform_12(%arg0: i32) -> (i32, i32, i32) {
    %c0_i32 = arith.constant 0 : i32
    %c0_i32_0 = arith.constant 0 : i32
    %c0_i32_1 = arith.constant 0 : i32
    %c0_i32_2 = arith.constant 0 : i32
    return %c0_i32, %c0_i32_0, %c0_i32_1 : i32, i32, i32
  }
  func.func @transform_13(%arg0: i32) -> (i32, i32, i32) {
    %c0_i32 = arith.constant 0 : i32
    %c0_i32_0 = arith.constant 0 : i32
    %c0_i32_1 = arith.constant 0 : i32
    %c0_i32_2 = arith.constant 0 : i32
    return %c0_i32, %c0_i32_0, %c0_i32_1 : i32, i32, i32
  }
  func.func @transform_14(%arg0: i32) -> (i32, i32, i32) {
    %c0_i32 = arith.constant 0 : i32
    %c0_i32_0 = arith.constant 0 : i32
    %c0_i32_1 = arith.constant 0 : i32
    %c0_i32_2 = arith.constant 0 : i32
    return %c0_i32, %c0_i32_0, %c0_i32_1 : i32, i32, i32
  }
  func.func @transform_15(%arg0: i32) -> (i32, i32, i32) {
    %c0_i32 = arith.constant 0 : i32
    %c0_i32_0 = arith.constant 0 : i32
    %c0_i32_1 = arith.constant 0 : i32
    %c0_i32_2 = arith.constant 0 : i32
    return %c0_i32, %c0_i32_0, %c0_i32_1 : i32, i32, i32
  }
  func.func @transform_16(%arg0: i32) -> (i32, i32) {
    %c0_i32 = arith.constant 0 : i32
    %c0_i32_0 = arith.constant 0 : i32
    %c0_i32_1 = arith.constant 0 : i32
    return %c0_i32, %c0_i32_0 : i32, i32
  }
  func.func @transform_17(%arg0: i32) -> (i32, i32) {
    %c0_i32 = arith.constant 0 : i32
    %c0_i32_0 = arith.constant 0 : i32
    %c0_i32_1 = arith.constant 0 : i32
    return %c0_i32, %c0_i32_0 : i32, i32
  }
  func.func @transform_18(%arg0: i32) -> (i32, i32) {
    %c0_i32 = arith.constant 0 : i32
    %c0_i32_0 = arith.constant 0 : i32
    %c0_i32_1 = arith.constant 0 : i32
    return %c0_i32, %c0_i32_0 : i32, i32
  }
  func.func @transform_19(%arg0: i32) -> (i32, i32) {
    %c0_i32 = arith.constant 0 : i32
    %c0_i32_0 = arith.constant 0 : i32
    %c0_i32_1 = arith.constant 0 : i32
    return %c0_i32, %c0_i32_0 : i32, i32
  }
  func.func @transform_20(%arg0: i32) -> (i32, i32) {
    %c0_i32 = arith.constant 0 : i32
    %c0_i32_0 = arith.constant 0 : i32
    %c0_i32_1 = arith.constant 0 : i32
    return %c0_i32, %c0_i32_0 : i32, i32
  }
  func.func @transform_21(%arg0: i32) -> (i32, i32) {
    %c0_i32 = arith.constant 0 : i32
    %c0_i32_0 = arith.constant 0 : i32
    %c0_i32_1 = arith.constant 0 : i32
    return %c0_i32, %c0_i32_0 : i32, i32
  }
  func.func @transform_22(%arg0: i32) -> (i32, i32, i32) {
    %c0_i32 = arith.constant 0 : i32
    %c0_i32_0 = arith.constant 0 : i32
    %c0_i32_1 = arith.constant 0 : i32
    return %arg0, %c0_i32, %c0_i32_0 : i32, i32, i32
  }
  func.func @transform_23(%arg0: i32) -> (i32, i32, i32) {
    %c0_i32 = arith.constant 0 : i32
    %c0_i32_0 = arith.constant 0 : i32
    %c0_i32_1 = arith.constant 0 : i32
    return %arg0, %c0_i32, %c0_i32_0 : i32, i32, i32
  }
}

</mosaic_0001>

<llo_original>
// kernel: tpu_custom_call.1
$region0: #{tpu_custom_call.1}
  #allocation0 [shape = 'u32[]', space=smem, size = 0x4, offset = 0x4, fixed_abs, tag = 'smem constant byte address 0x4 - core index']
  #allocation1 [shape = 'u32[144,128]{1,0:T(1,128)}', space=vmem, size = 0x12000, scoped, tag = 'internal scratch']
  #allocation2 [shape = 'f32[1,1]{1,0:T(1,128)S(1)}', space=vmem, size = 0x200, scoped, tag = 'scoped memory for tpu_custom_call.1']
  %s0 = inlined_call_operand.vmem [shape: f32[8,16,16], index: 0, kind: input, shape index: {}]
  %s1 = inlined_call_operand.vmem [shape: f32[8,256,8], index: 1, kind: input, shape index: {}]
  %s2 = inlined_call_operand.vmem [shape: f32[8,256,1], index: 2, kind: input, shape index: {}]
  %s3 = inlined_call_operand.vmem [shape: f32[8,16,16], index: 3, kind: input, shape index: {}]
  %s4 = inlined_call_operand.vmem [shape: f32[16,32], index: 4, kind: input, shape index: {}]
  %s5 = inlined_call_operand.vmem [shape: f32[1,32], index: 5, kind: input, shape index: {}]
  %s6 = inlined_call_operand.vmem [shape: f32[8,32], index: 6, kind: input, shape index: {}]
  %s7 = inlined_call_operand.vmem [shape: f32[1,32], index: 7, kind: input, shape index: {}]
  %s8 = inlined_call_operand.vmem [shape: f32[1,32], index: 8, kind: input, shape index: {}]
  %s9 = inlined_call_operand.vmem [shape: f32[1,32], index: 9, kind: input, shape index: {}]
  %s10 = inlined_call_operand.vmem [shape: f32[1,32], index: 10, kind: input, shape index: {}]
  %s11 = inlined_call_operand.vmem [shape: f32[2,32,64], index: 11, kind: input, shape index: {}]
  %s12 = inlined_call_operand.vmem [shape: f32[2,1,64], index: 12, kind: input, shape index: {}]
  %s13 = inlined_call_operand.vmem [shape: f32[2,32,64], index: 13, kind: input, shape index: {}]
  %s14 = inlined_call_operand.vmem [shape: f32[2,32,32], index: 14, kind: input, shape index: {}]
  %s15 = inlined_call_operand.vmem [shape: f32[2,1,32], index: 15, kind: input, shape index: {}]
  %s16 = inlined_call_operand.vmem [shape: f32[32,16], index: 16, kind: input, shape index: {}]
  %s17 = inlined_call_operand.vmem [shape: f32[1,16], index: 17, kind: input, shape index: {}]
  %s18 = inlined_call_operand.vmem [shape: f32[16,8], index: 18, kind: input, shape index: {}]
  %s19 = inlined_call_operand.vmem [shape: f32[1,8], index: 19, kind: input, shape index: {}]
  %s20 = inlined_call_operand.vmem [shape: f32[8,1], index: 20, kind: input, shape index: {}]
  %s21 = inlined_call_operand.<no memory space> [shape: f32[1,1], index: 21, kind: input, shape index: {}]
  %s22 = inlined_call_operand.vmem [shape: f32[8,1,1], index: 22, kind: output, shape index: {0}]
  %s23 = inlined_call_operand.hbm [shape: f32[8,1,32], index: 23, kind: output, shape index: {1}]
  %24 = xla_tuple %s22, %s23
  %s25 = sld [smem:[#allocation0]]
  $region129: #{tpu_custom_call.1} parent=0
    _
  %s27 = ssub.s32 1, %s25
  %s28 = scalar_select 0, %s27, %s25
  %v29 = vstv %s21
  %30 = vst [vmem:[#allocation2] sm:$0x1] %v29
  $region1: #{tpu_custom_call.1} parent=0
    #allocation3 [shape = 'u8[1024]{0}', space=vmem, size = 0x400, scoped, tag = 'output window, operand 1']
    #allocation4 [shape = 's32[2]{0}', space=sflag, size = 0x8, scoped, tag = 'scoped memory for tpu_custom_call.1']
    %31 = vsyncpa [#allocation4], 0
    %s32 = scalar_lea.sflag [#allocation4], 1
    %33 = vsyncpa %s32, 0
    loop: start=0, step=1, limit=10
    $region2: #{tpu_custom_call.1} parent=1 // loop_pre_header
      _
    $region3: #{tpu_custom_call.1} parent=1 // loop_header
      %s35 = sphi 0, %s39
      %p36 = scmp.ge.s32.totalorder %s35, 10
      %s45 = sphi 0, %s47
      %s48 = sphi 0, %s45
      %s49 = sphi 0, %s48
      %s65 = sphi 0, %s49
      %s71 = sphi 0, %s73
      %s74 = sphi 0, %s71
      %s75 = sphi 0, %s74
      %s91 = sphi 0, %s75
      %s97 = sphi 0, %s99
      %s100 = sphi 0, %s97
      %s101 = sphi 0, %s100
      %s117 = sphi 0, %s101
      %s123 = sphi 0, %s125
      %s126 = sphi 0, %s123
      %s127 = sphi 0, %s126
      %s143 = sphi 0, %s127
      %s147 = sphi 0, %s147
      %s149 = sphi 0, %s147
      %s150 = sphi 0, %s149
      %s164 = sphi 0, %s150
      %s168 = sphi 0, %s168
      %s170 = sphi 0, %s168
      %s171 = sphi 0, %s170
      %s185 = sphi 0, %s171
      %s189 = sphi 0, %s189
      %s191 = sphi 0, %s189
      %s192 = sphi 0, %s191
      %s206 = sphi 0, %s192
      %s210 = sphi 0, %s210
      %s212 = sphi 0, %s210
      %s213 = sphi 0, %s212
      %s227 = sphi 0, %s213
      %s231 = sphi 0, %s231
      %s233 = sphi 0, %s231
      %s234 = sphi 0, %s233
      %s248 = sphi 0, %s234
      %s252 = sphi 0, %s252
      %s254 = sphi 0, %s252
      %s255 = sphi 0, %s254
      %s269 = sphi 0, %s255
      %s273 = sphi 0, %s273
      %s275 = sphi 0, %s273
      %s276 = sphi 0, %s275
      %s290 = sphi 0, %s276
      %s294 = sphi 0, %s294
      %s296 = sphi 0, %s294
      %s297 = sphi 0, %s296
      %s311 = sphi 0, %s297
      %s315 = sphi 0, %s315
      %s317 = sphi 0, %s315
      %s318 = sphi 0, %s317
      %s332 = sphi 0, %s318
      %s336 = sphi 0, %s336
      %s338 = sphi 0, %s336
      %s339 = sphi 0, %s338
      %s353 = sphi 0, %s339
      %s357 = sphi 0, %s357
      %s359 = sphi 0, %s357
      %s360 = sphi 0, %s359
      %s374 = sphi 0, %s360
      %s378 = sphi 0, %s378
      %s380 = sphi 0, %s378
      %s381 = sphi 0, %s380
      %s395 = sphi 0, %s381
      %s399 = sphi 0, %s399
      %s401 = sphi 0, %s399
      %s402 = sphi 0, %s401
      %s416 = sphi 0, %s402
      %s420 = sphi 0, %s420
      %s422 = sphi 0, %s420
      %s423 = sphi 0, %s422
      %s437 = sphi 0, %s423
      %s441 = sphi 0, %s441
      %s443 = sphi 0, %s441
      %s444 = sphi 0, %s443
      %s458 = sphi 0, %s444
      %s462 = sphi 0, %s462
      %s464 = sphi 0, %s462
      %s465 = sphi 0, %s464
      %s479 = sphi 0, %s465
      %s483 = sphi 0, %s483
      %s485 = sphi 0, %s483
      %s486 = sphi 0, %s485
      %s500 = sphi 0, %s486
      %s504 = sphi 0, %s504
      %s506 = sphi 0, %s504
      %s507 = sphi 0, %s506
      %s521 = sphi 0, %s507
      %s527 = sphi 0, %s529
      %s530 = sphi 0, %s527
      %s531 = sphi 0, %s530
      %s547 = sphi 0, %s531
      %s553 = sphi 0, %s555
      %s556 = sphi 0, %s553
      %s557 = sphi 0, %s556
      %s573 = sphi 0, %s557
    $region4: #{tpu_custom_call.1} parent=1 // loop_header_branch
      %38 = sbr.rel (%p36) target = $region8
    $region5: #{tpu_custom_call.1} parent=1 // loop_body
      %s40 = ssub.s32 %s35, 1
      %s41 = ssub.s32 %s35, 2
      %s42 = sadd.s32 %s35, 1
      %s43 = ssub.s32 %s35, %s42
      %p44 = scmp.eq.s32.totalorder %s43, 0
      %s46 = sadd.s32 %s45, 1
      %s47 = scalar_select %p44, %s45, %s46
      %p50 = pneg %p44
      %p51 = scmp.eq.s32.totalorder %s35, 7
      %p52 = por %p50, %p51
      %p53 = scmp.ne.s32.totalorder %s45, %s48
      %p54 = scmp.eq.s32.totalorder %s35, 0
      %p55 = por %p53, %p54
      %p56 = scmp.ne.s32.totalorder %s45, %s48
      %p57 = scmp.eq.s32.totalorder %s40, 7
      %p58 = por %p56, %p57
      %p59 = scmp.ne.s32.totalorder %s48, %s49
      %p60 = scmp.eq.s32.totalorder %s40, 0
      %p61 = por %p59, %p60
      %p62 = scmp.ne.s32.totalorder %s48, %s49
      %p63 = scmp.eq.s32.totalorder %s41, 7
      %p64 = por %p62, %p63
      %p66 = scmp.ne.s32.totalorder %s49, %s65
      %p67 = scmp.eq.s32.totalorder %s41, 0
      %p68 = por %p66, %p67
      %s69 = ssub.s32 %s35, %s42
      %p70 = scmp.eq.s32.totalorder %s69, 0
      %s72 = sadd.s32 %s71, 1
      %s73 = scalar_select %p70, %s71, %s72
      %p76 = pneg %p70
      %p77 = scmp.eq.s32.totalorder %s35, 7
      %p78 = por %p76, %p77
      %p79 = scmp.ne.s32.totalorder %s71, %s74
      %p80 = scmp.eq.s32.totalorder %s35, 0
      %p81 = por %p79, %p80
      %p82 = scmp.ne.s32.totalorder %s71, %s74
      %p83 = scmp.eq.s32.totalorder %s40, 7
      %p84 = por %p82, %p83
      %p85 = scmp.ne.s32.totalorder %s74, %s75
      %p86 = scmp.eq.s32.totalorder %s40, 0
      %p87 = por %p85, %p86
      %p88 = scmp.ne.s32.totalorder %s74, %s75
      %p89 = scmp.eq.s32.totalorder %s41, 7
      %p90 = por %p88, %p89
      %p92 = scmp.ne.s32.totalorder %s75, %s91
      %p93 = scmp.eq.s32.totalorder %s41, 0
      %p94 = por %p92, %p93
      %s95 = ssub.s32 %s35, %s42
      %p96 = scmp.eq.s32.totalorder %s95, 0
      %s98 = sadd.s32 %s97, 1
      %s99 = scalar_select %p96, %s97, %s98
      %p102 = pneg %p96
      %p103 = scmp.eq.s32.totalorder %s35, 7
      %p104 = por %p102, %p103
      %p105 = scmp.ne.s32.totalorder %s97, %s100
      %p106 = scmp.eq.s32.totalorder %s35, 0
      %p107 = por %p105, %p106
      %p108 = scmp.ne.s32.totalorder %s97, %s100
      %p109 = scmp.eq.s32.totalorder %s40, 7
      %p110 = por %p108, %p109
      %p111 = scmp.ne.s32.totalorder %s100, %s101
      %p112 = scmp.eq.s32.totalorder %s40, 0
      %p113 = por %p111, %p112
      %p114 = scmp.ne.s32.totalorder %s100, %s101
      %p115 = scmp.eq.s32.totalorder %s41, 7
      %p116 = por %p114, %p115
      %p118 = scmp.ne.s32.totalorder %s101, %s117
      %p119 = scmp.eq.s32.totalorder %s41, 0
      %p120 = por %p118, %p119
      %s121 = ssub.s32 %s35, %s42
      %p122 = scmp.eq.s32.totalorder %s121, 0
      %s124 = sadd.s32 %s123, 1
      %s125 = scalar_select %p122, %s123, %s124
      %p128 = pneg %p122
      %p129 = scmp.eq.s32.totalorder %s35, 7
      %p130 = por %p128, %p129
      %p131 = scmp.ne.s32.totalorder %s123, %s126
      %p132 = scmp.eq.s32.totalorder %s35, 0
      %p133 = por %p131, %p132
      %p134 = scmp.ne.s32.totalorder %s123, %s126
      %p135 = scmp.eq.s32.totalorder %s40, 7
      %p136 = por %p134, %p135
      %p137 = scmp.ne.s32.totalorder %s126, %s127
      %p138 = scmp.eq.s32.totalorder %s40, 0
      %p139 = por %p137, %p138
      %p140 = scmp.ne.s32.totalorder %s126, %s127
      %p141 = scmp.eq.s32.totalorder %s41, 7
      %p142 = por %p140, %p141
      %p144 = scmp.ne.s32.totalorder %s127, %s143
      %p145 = scmp.eq.s32.totalorder %s41, 0
      %p146 = por %p144, %p145
      %s148 = sadd.s32 %s147, 1
      %p151 = scmp.eq.s32.totalorder %s35, 7
      %p152 = scmp.ne.s32.totalorder %s147, %s149
      %p153 = scmp.eq.s32.totalorder %s35, 0
      %p154 = por %p152, %p153
      %p155 = scmp.ne.s32.totalorder %s147, %s149
      %p156 = scmp.eq.s32.totalorder %s40, 7
      %p157 = por %p155, %p156
      %p158 = scmp.ne.s32.totalorder %s149, %s150
      %p159 = scmp.eq.s32.totalorder %s40, 0
      %p160 = por %p158, %p159
      %p161 = scmp.ne.s32.totalorder %s149, %s150
      %p162 = scmp.eq.s32.totalorder %s41, 7
      %p163 = por %p161, %p162
      %p165 = scmp.ne.s32.totalorder %s150, %s164
      %p166 = scmp.eq.s32.totalorder %s41, 0
      %p167 = por %p165, %p166
      %s169 = sadd.s32 %s168, 1
      %p172 = scmp.eq.s32.totalorder %s35, 7
      %p173 = scmp.ne.s32.totalorder %s168, %s170
      %p174 = scmp.eq.s32.totalorder %s35, 0
      %p175 = por %p173, %p174
      %p176 = scmp.ne.s32.totalorder %s168, %s170
      %p177 = scmp.eq.s32.totalorder %s40, 7
      %p178 = por %p176, %p177
      %p179 = scmp.ne.s32.totalorder %s170, %s171
      %p180 = scmp.eq.s32.totalorder %s40, 0
      %p181 = por %p179, %p180
      %p182 = scmp.ne.s32.totalorder %s170, %s171
      %p183 = scmp.eq.s32.totalorder %s41, 7
      %p184 = por %p182, %p183
      %p186 = scmp.ne.s32.totalorder %s171, %s185
      %p187 = scmp.eq.s32.totalorder %s41, 0
      %p188 = por %p186, %p187
      %s190 = sadd.s32 %s189, 1
      %p193 = scmp.eq.s32.totalorder %s35, 7
      %p194 = scmp.ne.s32.totalorder %s189, %s191
      %p195 = scmp.eq.s32.totalorder %s35, 0
      %p196 = por %p194, %p195
      %p197 = scmp.ne.s32.totalorder %s189, %s191
      %p198 = scmp.eq.s32.totalorder %s40, 7
      %p199 = por %p197, %p198
      %p200 = scmp.ne.s32.totalorder %s191, %s192
      %p201 = scmp.eq.s32.totalorder %s40, 0
      %p202 = por %p200, %p201
      %p203 = scmp.ne.s32.totalorder %s191, %s192
      %p204 = scmp.eq.s32.totalorder %s41, 7
      %p205 = por %p203, %p204
      %p207 = scmp.ne.s32.totalorder %s192, %s206
      %p208 = scmp.eq.s32.totalorder %s41, 0
      %p209 = por %p207, %p208
      %s211 = sadd.s32 %s210, 1
      %p214 = scmp.eq.s32.totalorder %s35, 7
      %p215 = scmp.ne.s32.totalorder %s210, %s212
      %p216 = scmp.eq.s32.totalorder %s35, 0
      %p217 = por %p215, %p216
      %p218 = scmp.ne.s32.totalorder %s210, %s212
      %p219 = scmp.eq.s32.totalorder %s40, 7
      %p220 = por %p218, %p219
      %p221 = scmp.ne.s32.totalorder %s212, %s213
      %p222 = scmp.eq.s32.totalorder %s40, 0
      %p223 = por %p221, %p222
      %p224 = scmp.ne.s32.totalorder %s212, %s213
      %p225 = scmp.eq.s32.totalorder %s41, 7
      %p226 = por %p224, %p225
      %p228 = scmp.ne.s32.totalorder %s213, %s227
      %p229 = scmp.eq.s32.totalorder %s41, 0
      %p230 = por %p228, %p229
      %s232 = sadd.s32 %s231, 1
      %p235 = scmp.eq.s32.totalorder %s35, 7
      %p236 = scmp.ne.s32.totalorder %s231, %s233
      %p237 = scmp.eq.s32.totalorder %s35, 0
      %p238 = por %p236, %p237
      %p239 = scmp.ne.s32.totalorder %s231, %s233
      %p240 = scmp.eq.s32.totalorder %s40, 7
      %p241 = por %p239, %p240
      %p242 = scmp.ne.s32.totalorder %s233, %s234
      %p243 = scmp.eq.s32.totalorder %s40, 0
      %p244 = por %p242, %p243
      %p245 = scmp.ne.s32.totalorder %s233, %s234
      %p246 = scmp.eq.s32.totalorder %s41, 7
      %p247 = por %p245, %p246
      %p249 = scmp.ne.s32.totalorder %s234, %s248
      %p250 = scmp.eq.s32.totalorder %s41, 0
      %p251 = por %p249, %p250
      %s253 = sadd.s32 %s252, 1
      %p256 = scmp.eq.s32.totalorder %s35, 7
      %p257 = scmp.ne.s32.totalorder %s252, %s254
      %p258 = scmp.eq.s32.totalorder %s35, 0
      %p259 = por %p257, %p258
      %p260 = scmp.ne.s32.totalorder %s252, %s254
      %p261 = scmp.eq.s32.totalorder %s40, 7
      %p262 = por %p260, %p261
      %p263 = scmp.ne.s32.totalorder %s254, %s255
      %p264 = scmp.eq.s32.totalorder %s40, 0
      %p265 = por %p263, %p264
      %p266 = scmp.ne.s32.totalorder %s254, %s255
      %p267 = scmp.eq.s32.totalorder %s41, 7
      %p268 = por %p266, %p267
      %p270 = scmp.ne.s32.totalorder %s255, %s269
      %p271 = scmp.eq.s32.totalorder %s41, 0
      %p272 = por %p270, %p271
      %s274 = sadd.s32 %s273, 1
      %p277 = scmp.eq.s32.totalorder %s35, 7
      %p278 = scmp.ne.s32.totalorder %s273, %s275
      %p279 = scmp.eq.s32.totalorder %s35, 0
      %p280 = por %p278, %p279
      %p281 = scmp.ne.s32.totalorder %s273, %s275
      %p282 = scmp.eq.s32.totalorder %s40, 7
      %p283 = por %p281, %p282
      %p284 = scmp.ne.s32.totalorder %s275, %s276
      %p285 = scmp.eq.s32.totalorder %s40, 0
      %p286 = por %p284, %p285
      %p287 = scmp.ne.s32.totalorder %s275, %s276
      %p288 = scmp.eq.s32.totalorder %s41, 7
      %p289 = por %p287, %p288
      %p291 = scmp.ne.s32.totalorder %s276, %s290
      %p292 = scmp.eq.s32.totalorder %s41, 0
      %p293 = por %p291, %p292
      %s295 = sadd.s32 %s294, 1
      %p298 = scmp.eq.s32.totalorder %s35, 7
      %p299 = scmp.ne.s32.totalorder %s294, %s296
      %p300 = scmp.eq.s32.totalorder %s35, 0
      %p301 = por %p299, %p300
      %p302 = scmp.ne.s32.totalorder %s294, %s296
      %p303 = scmp.eq.s32.totalorder %s40, 7
      %p304 = por %p302, %p303
      %p305 = scmp.ne.s32.totalorder %s296, %s297
      %p306 = scmp.eq.s32.totalorder %s40, 0
      %p307 = por %p305, %p306
      %p308 = scmp.ne.s32.totalorder %s296, %s297
      %p309 = scmp.eq.s32.totalorder %s41, 7
      %p310 = por %p308, %p309
      %p312 = scmp.ne.s32.totalorder %s297, %s311
      %p313 = scmp.eq.s32.totalorder %s41, 0
      %p314 = por %p312, %p313
      %s316 = sadd.s32 %s315, 1
      %p319 = scmp.eq.s32.totalorder %s35, 7
      %p320 = scmp.ne.s32.totalorder %s315, %s317
      %p321 = scmp.eq.s32.totalorder %s35, 0
      %p322 = por %p320, %p321
      %p323 = scmp.ne.s32.totalorder %s315, %s317
      %p324 = scmp.eq.s32.totalorder %s40, 7
      %p325 = por %p323, %p324
      %p326 = scmp.ne.s32.totalorder %s317, %s318
      %p327 = scmp.eq.s32.totalorder %s40, 0
      %p328 = por %p326, %p327
      %p329 = scmp.ne.s32.totalorder %s317, %s318
      %p330 = scmp.eq.s32.totalorder %s41, 7
      %p331 = por %p329, %p330
      %p333 = scmp.ne.s32.totalorder %s318, %s332
      %p334 = scmp.eq.s32.totalorder %s41, 0
      %p335 = por %p333, %p334
      %s337 = sadd.s32 %s336, 1
      %p340 = scmp.eq.s32.totalorder %s35, 7
      %p341 = scmp.ne.s32.totalorder %s336, %s338
      %p342 = scmp.eq.s32.totalorder %s35, 0
      %p343 = por %p341, %p342
      %p344 = scmp.ne.s32.totalorder %s336, %s338
      %p345 = scmp.eq.s32.totalorder %s40, 7
      %p346 = por %p344, %p345
      %p347 = scmp.ne.s32.totalorder %s338, %s339
      %p348 = scmp.eq.s32.totalorder %s40, 0
      %p349 = por %p347, %p348
      %p350 = scmp.ne.s32.totalorder %s338, %s339
      %p351 = scmp.eq.s32.totalorder %s41, 7
      %p352 = por %p350, %p351
      %p354 = scmp.ne.s32.totalorder %s339, %s353
      %p355 = scmp.eq.s32.totalorder %s41, 0
      %p356 = por %p354, %p355
      %s358 = sadd.s32 %s357, 1
      %p361 = scmp.eq.s32.totalorder %s35, 7
      %p362 = scmp.ne.s32.totalorder %s357, %s359
      %p363 = scmp.eq.s32.totalorder %s35, 0
      %p364 = por %p362, %p363
      %p365 = scmp.ne.s32.totalorder %s357, %s359
      %p366 = scmp.eq.s32.totalorder %s40, 7
      %p367 = por %p365, %p366
      %p368 = scmp.ne.s32.totalorder %s359, %s360
      %p369 = scmp.eq.s32.totalorder %s40, 0
      %p370 = por %p368, %p369
      %p371 = scmp.ne.s32.totalorder %s359, %s360
      %p372 = scmp.eq.s32.totalorder %s41, 7
      %p373 = por %p371, %p372
      %p375 = scmp.ne.s32.totalorder %s360, %s374
      %p376 = scmp.eq.s32.totalorder %s41, 0
      %p377 = por %p375, %p376
      %s379 = sadd.s32 %s378, 1
      %p382 = scmp.eq.s32.totalorder %s35, 7
      %p383 = scmp.ne.s32.totalorder %s378, %s380
      %p384 = scmp.eq.s32.totalorder %s35, 0
      %p385 = por %p383, %p384
      %p386 = scmp.ne.s32.totalorder %s378, %s380
      %p387 = scmp.eq.s32.totalorder %s40, 7
      %p388 = por %p386, %p387
      %p389 = scmp.ne.s32.totalorder %s380, %s381
      %p390 = scmp.eq.s32.totalorder %s40, 0
      %p391 = por %p389, %p390
      %p392 = scmp.ne.s32.totalorder %s380, %s381
      %p393 = scmp.eq.s32.totalorder %s41, 7
      %p394 = por %p392, %p393
      %p396 = scmp.ne.s32.totalorder %s381, %s395
      %p397 = scmp.eq.s32.totalorder %s41, 0
      %p398 = por %p396, %p397
      %s400 = sadd.s32 %s399, 1
      %p403 = scmp.eq.s32.totalorder %s35, 7
      %p404 = scmp.ne.s32.totalorder %s399, %s401
      %p405 = scmp.eq.s32.totalorder %s35, 0
      %p406 = por %p404, %p405
      %p407 = scmp.ne.s32.totalorder %s399, %s401
      %p408 = scmp.eq.s32.totalorder %s40, 7
      %p409 = por %p407, %p408
      %p410 = scmp.ne.s32.totalorder %s401, %s402
      %p411 = scmp.eq.s32.totalorder %s40, 0
      %p412 = por %p410, %p411
      %p413 = scmp.ne.s32.totalorder %s401, %s402
      %p414 = scmp.eq.s32.totalorder %s41, 7
      %p415 = por %p413, %p414
      %p417 = scmp.ne.s32.totalorder %s402, %s416
      %p418 = scmp.eq.s32.totalorder %s41, 0
      %p419 = por %p417, %p418
      %s421 = sadd.s32 %s420, 1
      %p424 = scmp.eq.s32.totalorder %s35, 7
      %p425 = scmp.ne.s32.totalorder %s420, %s422
      %p426 = scmp.eq.s32.totalorder %s35, 0
      %p427 = por %p425, %p426
      %p428 = scmp.ne.s32.totalorder %s420, %s422
      %p429 = scmp.eq.s32.totalorder %s40, 7
      %p430 = por %p428, %p429
      %p431 = scmp.ne.s32.totalorder %s422, %s423
      %p432 = scmp.eq.s32.totalorder %s40, 0
      %p433 = por %p431, %p432
      %p434 = scmp.ne.s32.totalorder %s422, %s423
      %p435 = scmp.eq.s32.totalorder %s41, 7
      %p436 = por %p434, %p435
      %p438 = scmp.ne.s32.totalorder %s423, %s437
      %p439 = scmp.eq.s32.totalorder %s41, 0
      %p440 = por %p438, %p439
      %s442 = sadd.s32 %s441, 1
      %p445 = scmp.eq.s32.totalorder %s35, 7
      %p446 = scmp.ne.s32.totalorder %s441, %s443
      %p447 = scmp.eq.s32.totalorder %s35, 0
      %p448 = por %p446, %p447
      %p449 = scmp.ne.s32.totalorder %s441, %s443
      %p450 = scmp.eq.s32.totalorder %s40, 7
      %p451 = por %p449, %p450
      %p452 = scmp.ne.s32.totalorder %s443, %s444
      %p453 = scmp.eq.s32.totalorder %s40, 0
      %p454 = por %p452, %p453
      %p455 = scmp.ne.s32.totalorder %s443, %s444
      %p456 = scmp.eq.s32.totalorder %s41, 7
      %p457 = por %p455, %p456
      %p459 = scmp.ne.s32.totalorder %s444, %s458
      %p460 = scmp.eq.s32.totalorder %s41, 0
      %p461 = por %p459, %p460
      %s463 = sadd.s32 %s462, 1
      %p466 = scmp.eq.s32.totalorder %s35, 7
      %p467 = scmp.ne.s32.totalorder %s462, %s464
      %p468 = scmp.eq.s32.totalorder %s35, 0
      %p469 = por %p467, %p468
      %p470 = scmp.ne.s32.totalorder %s462, %s464
      %p471 = scmp.eq.s32.totalorder %s40, 7
      %p472 = por %p470, %p471
      %p473 = scmp.ne.s32.totalorder %s464, %s465
      %p474 = scmp.eq.s32.totalorder %s40, 0
      %p475 = por %p473, %p474
      %p476 = scmp.ne.s32.totalorder %s464, %s465
      %p477 = scmp.eq.s32.totalorder %s41, 7
      %p478 = por %p476, %p477
      %p480 = scmp.ne.s32.totalorder %s465, %s479
      %p481 = scmp.eq.s32.totalorder %s41, 0
      %p482 = por %p480, %p481
      %s484 = sadd.s32 %s483, 1
      %p487 = scmp.eq.s32.totalorder %s35, 7
      %p488 = scmp.ne.s32.totalorder %s483, %s485
      %p489 = scmp.eq.s32.totalorder %s35, 0
      %p490 = por %p488, %p489
      %p491 = scmp.ne.s32.totalorder %s483, %s485
      %p492 = scmp.eq.s32.totalorder %s40, 7
      %p493 = por %p491, %p492
      %p494 = scmp.ne.s32.totalorder %s485, %s486
      %p495 = scmp.eq.s32.totalorder %s40, 0
      %p496 = por %p494, %p495
      %p497 = scmp.ne.s32.totalorder %s485, %s486
      %p498 = scmp.eq.s32.totalorder %s41, 7
      %p499 = por %p497, %p498
      %p501 = scmp.ne.s32.totalorder %s486, %s500
      %p502 = scmp.eq.s32.totalorder %s41, 0
      %p503 = por %p501, %p502
      %s505 = sadd.s32 %s504, 1
      %p508 = scmp.eq.s32.totalorder %s35, 7
      %p509 = scmp.ne.s32.totalorder %s504, %s506
      %p510 = scmp.eq.s32.totalorder %s35, 0
      %p511 = por %p509, %p510
      %p512 = scmp.ne.s32.totalorder %s504, %s506
      %p513 = scmp.eq.s32.totalorder %s40, 7
      %p514 = por %p512, %p513
      %p515 = scmp.ne.s32.totalorder %s506, %s507
      %p516 = scmp.eq.s32.totalorder %s40, 0
      %p517 = por %p515, %p516
      %p518 = scmp.ne.s32.totalorder %s506, %s507
      %p519 = scmp.eq.s32.totalorder %s41, 7
      %p520 = por %p518, %p519
      %p522 = scmp.ne.s32.totalorder %s507, %s521
      %p523 = scmp.eq.s32.totalorder %s41, 0
      %p524 = por %p522, %p523
      %s525 = ssub.s32 %s35, %s42
      %p526 = scmp.eq.s32.totalorder %s525, 0
      %s528 = sadd.s32 %s527, 1
      %s529 = scalar_select %p526, %s527, %s528
      %p532 = pneg %p526
      %p533 = scmp.eq.s32.totalorder %s35, 7
      %p534 = por %p532, %p533
      %p535 = scmp.ne.s32.totalorder %s527, %s530
      %p536 = scmp.eq.s32.totalorder %s35, 0
      %p537 = por %p535, %p536
      %p538 = scmp.ne.s32.totalorder %s527, %s530
      %p539 = scmp.eq.s32.totalorder %s40, 7
      %p540 = por %p538, %p539
      %p541 = scmp.ne.s32.totalorder %s530, %s531
      %p542 = scmp.eq.s32.totalorder %s40, 0
      %p543 = por %p541, %p542
      %p544 = scmp.ne.s32.totalorder %s530, %s531
      %p545 = scmp.eq.s32.totalorder %s41, 7
      %p546 = por %p544, %p545
      %p548 = scmp.ne.s32.totalorder %s531, %s547
      %p549 = scmp.eq.s32.totalorder %s41, 0
      %p550 = por %p548, %p549
      %s551 = ssub.s32 %s35, %s42
      %p552 = scmp.eq.s32.totalorder %s551, 0
      %s554 = sadd.s32 %s553, 1
      %s555 = scalar_select %p552, %s553, %s554
      %p558 = pneg %p552
      %p559 = scmp.eq.s32.totalorder %s35, 7
      %p560 = por %p558, %p559
      %p561 = scmp.ne.s32.totalorder %s553, %s556
      %p562 = scmp.eq.s32.totalorder %s35, 0
      %p563 = por %p561, %p562
      %p564 = scmp.ne.s32.totalorder %s553, %s556
      %p565 = scmp.eq.s32.totalorder %s40, 7
      %p566 = por %p564, %p565
      %p567 = scmp.ne.s32.totalorder %s556, %s557
      %p568 = scmp.eq.s32.totalorder %s40, 0
      %p569 = por %p567, %p568
      %p570 = scmp.ne.s32.totalorder %s556, %s557
      %p571 = scmp.eq.s32.totalorder %s41, 7
      %p572 = por %p570, %p571
      %p574 = scmp.ne.s32.totalorder %s557, %s573
      %p575 = scmp.eq.s32.totalorder %s41, 0
      %p576 = por %p574, %p575
      %p577 = scmp.le.s32.totalorder 1, %s35
      %p578 = scmp.lt.s32.totalorder %s35, 9
      %p579 = pnand %p577, %p578
      %p580 = pneg %p579
      // Predicated region
      $region9: #{tpu_custom_call.1} parent=5 // pred_check
        _
      $region10: #{tpu_custom_call.1} parent=5 // pred_check_branch
        %582 = sbr.rel (%p579) target = $region12
      $region11: #{tpu_custom_call.1} parent=5 // pred_region
        %s583 = ssub.s32 %s35, 1
        // Predicated region
        $region13: #{tpu_custom_call.1} parent=11 // pred_check
          %p584 = pneg %p160
        $region14: #{tpu_custom_call.1} parent=11 // pred_check_branch
          %586 = sbr.rel (%p584) target = $region16
        $region15: #{tpu_custom_call.1} parent=11 // pred_region
          _
        $region16: #{tpu_custom_call.1} parent=11 // pred_fallthru
          _
        // Predicated region
        $region17: #{tpu_custom_call.1} parent=11 // pred_check
          %p587 = pneg %p181
        $region18: #{tpu_custom_call.1} parent=11 // pred_check_branch
          %589 = sbr.rel (%p587) target = $region20
        $region19: #{tpu_custom_call.1} parent=11 // pred_region
          _
        $region20: #{tpu_custom_call.1} parent=11 // pred_fallthru
          _
        // Predicated region
        $region21: #{tpu_custom_call.1} parent=11 // pred_check
          %p590 = pneg %p202
        $region22: #{tpu_custom_call.1} parent=11 // pred_check_branch
          %592 = sbr.rel (%p590) target = $region24
        $region23: #{tpu_custom_call.1} parent=11 // pred_region
          _
        $region24: #{tpu_custom_call.1} parent=11 // pred_fallthru
          _
        // Predicated region
        $region25: #{tpu_custom_call.1} parent=11 // pred_check
          %p593 = pneg %p223
        $region26: #{tpu_custom_call.1} parent=11 // pred_check_branch
          %595 = sbr.rel (%p593) target = $region28
        $region27: #{tpu_custom_call.1} parent=11 // pred_region
          _
        $region28: #{tpu_custom_call.1} parent=11 // pred_fallthru
          _
        // Predicated region
        $region29: #{tpu_custom_call.1} parent=11 // pred_check
          %p596 = pneg %p244
        $region30: #{tpu_custom_call.1} parent=11 // pred_check_branch
          %598 = sbr.rel (%p596) target = $region32
        $region31: #{tpu_custom_call.1} parent=11 // pred_region
          _
        $region32: #{tpu_custom_call.1} parent=11 // pred_fallthru
          _
        // Predicated region
        $region33: #{tpu_custom_call.1} parent=11 // pred_check
          %p599 = pneg %p265
        $region34: #{tpu_custom_call.1} parent=11 // pred_check_branch
          %601 = sbr.rel (%p599) target = $region36
        $region35: #{tpu_custom_call.1} parent=11 // pred_region
          _
        $region36: #{tpu_custom_call.1} parent=11 // pred_fallthru
          _
        // Predicated region
        $region37: #{tpu_custom_call.1} parent=11 // pred_check
          %p602 = pneg %p286
        $region38: #{tpu_custom_call.1} parent=11 // pred_check_branch
          %604 = sbr.rel (%p602) target = $region40
        $region39: #{tpu_custom_call.1} parent=11 // pred_region
          _
        $region40: #{tpu_custom_call.1} parent=11 // pred_fallthru
          _
        // Predicated region
        $region41: #{tpu_custom_call.1} parent=11 // pred_check
          %p605 = pneg %p307
        $region42: #{tpu_custom_call.1} parent=11 // pred_check_branch
          %607 = sbr.rel (%p605) target = $region44
        $region43: #{tpu_custom_call.1} parent=11 // pred_region
          _
        $region44: #{tpu_custom_call.1} parent=11 // pred_fallthru
          _
        // Predicated region
        $region45: #{tpu_custom_call.1} parent=11 // pred_check
          %p608 = pneg %p328
        $region46: #{tpu_custom_call.1} parent=11 // pred_check_branch
          %610 = sbr.rel (%p608) target = $region48
        $region47: #{tpu_custom_call.1} parent=11 // pred_region
          _
        $region48: #{tpu_custom_call.1} parent=11 // pred_fallthru
          _
        // Predicated region
        $region49: #{tpu_custom_call.1} parent=11 // pred_check
          %p611 = pneg %p349
        $region50: #{tpu_custom_call.1} parent=11 // pred_check_branch
          %613 = sbr.rel (%p611) target = $region52
        $region51: #{tpu_custom_call.1} parent=11 // pred_region
          _
        $region52: #{tpu_custom_call.1} parent=11 // pred_fallthru
          _
        // Predicated region
        $region53: #{tpu_custom_call.1} parent=11 // pred_check
          %p614 = pneg %p370
        $region54: #{tpu_custom_call.1} parent=11 // pred_check_branch
          %616 = sbr.rel (%p614) target = $region56
        $region55: #{tpu_custom_call.1} parent=11 // pred_region
          _
        $region56: #{tpu_custom_call.1} parent=11 // pred_fallthru
          _
        // Predicated region
        $region57: #{tpu_custom_call.1} parent=11 // pred_check
          %p617 = pneg %p391
        $region58: #{tpu_custom_call.1} parent=11 // pred_check_branch
          %619 = sbr.rel (%p617) target = $region60
        $region59: #{tpu_custom_call.1} parent=11 // pred_region
          _
        $region60: #{tpu_custom_call.1} parent=11 // pred_fallthru
          _
        // Predicated region
        $region61: #{tpu_custom_call.1} parent=11 // pred_check
          %p620 = pneg %p412
        $region62: #{tpu_custom_call.1} parent=11 // pred_check_branch
          %622 = sbr.rel (%p620) target = $region64
        $region63: #{tpu_custom_call.1} parent=11 // pred_region
          _
        $region64: #{tpu_custom_call.1} parent=11 // pred_fallthru
          _
        // Predicated region
        $region65: #{tpu_custom_call.1} parent=11 // pred_check
          %p623 = pneg %p433
        $region66: #{tpu_custom_call.1} parent=11 // pred_check_branch
          %625 = sbr.rel (%p623) target = $region68
        $region67: #{tpu_custom_call.1} parent=11 // pred_region
          _
        $region68: #{tpu_custom_call.1} parent=11 // pred_fallthru
          _
        // Predicated region
        $region69: #{tpu_custom_call.1} parent=11 // pred_check
          %p626 = pneg %p454
        $region70: #{tpu_custom_call.1} parent=11 // pred_check_branch
          %628 = sbr.rel (%p626) target = $region72
        $region71: #{tpu_custom_call.1} parent=11 // pred_region
          _
        $region72: #{tpu_custom_call.1} parent=11 // pred_fallthru
          _
        // Predicated region
        $region73: #{tpu_custom_call.1} parent=11 // pred_check
          %p629 = pneg %p475
        $region74: #{tpu_custom_call.1} parent=11 // pred_check_branch
          %631 = sbr.rel (%p629) target = $region76
        $region75: #{tpu_custom_call.1} parent=11 // pred_region
          _
        $region76: #{tpu_custom_call.1} parent=11 // pred_fallthru
          _
        // Predicated region
        $region77: #{tpu_custom_call.1} parent=11 // pred_check
          %p632 = pneg %p496
        $region78: #{tpu_custom_call.1} parent=11 // pred_check_branch
          %634 = sbr.rel (%p632) target = $region80
        $region79: #{tpu_custom_call.1} parent=11 // pred_region
          _
        $region80: #{tpu_custom_call.1} parent=11 // pred_fallthru
          _
        // Predicated region
        $region81: #{tpu_custom_call.1} parent=11 // pred_check
          %p635 = pneg %p517
        $region82: #{tpu_custom_call.1} parent=11 // pred_check_branch
          %637 = sbr.rel (%p635) target = $region84
        $region83: #{tpu_custom_call.1} parent=11 // pred_region
          _
        $region84: #{tpu_custom_call.1} parent=11 // pred_fallthru
          _
      $region12: #{tpu_custom_call.1} parent=5 // pred_fallthru
        _
      %p638 = scmp.lt.s32.totalorder %s35, 8
      // Predicated region
      $region85: #{tpu_custom_call.1} parent=5 // pred_check
        %p639 = pneg %p638
      $region86: #{tpu_custom_call.1} parent=5 // pred_check_branch
        %641 = sbr.rel (%p639) target = $region88
      $region87: #{tpu_custom_call.1} parent=5 // pred_region
        // Predicated region
        $region89: #{tpu_custom_call.1} parent=87 // pred_check
          %p642 = pneg %p55
        $region90: #{tpu_custom_call.1} parent=87 // pred_check_branch
          %644 = sbr.rel (%p642) target = $region92
        $region91: #{tpu_custom_call.1} parent=87 // pred_region
          %p645 = scmp.lt.s32.totalorder %s35, 7
          %s646 = scalar_select %p645, %s35, 7
          %s647 = smul.addr %s646, 2
          %s648 = smul.addr %s647, 8
          %s649 = scalar_lea.vmem %s0, %s648
        $region92: #{tpu_custom_call.1} parent=87 // pred_fallthru
          _
        // Predicated region
        $region93: #{tpu_custom_call.1} parent=87 // pred_check
          %p650 = pneg %p81
        $region94: #{tpu_custom_call.1} parent=87 // pred_check_branch
          %652 = sbr.rel (%p650) target = $region96
        $region95: #{tpu_custom_call.1} parent=87 // pred_region
          %p653 = scmp.lt.s32.totalorder %s35, 7
          %s654 = scalar_select %p653, %s35, 7
          %s655 = smul.addr %s654, 32
          %s656 = smul.addr %s655, 8
          %s657 = scalar_lea.vmem %s1, %s656
        $region96: #{tpu_custom_call.1} parent=87 // pred_fallthru
          _
        // Predicated region
        $region97: #{tpu_custom_call.1} parent=87 // pred_check
          %p658 = pneg %p107
        $region98: #{tpu_custom_call.1} parent=87 // pred_check_branch
          %660 = sbr.rel (%p658) target = $region100
        $region99: #{tpu_custom_call.1} parent=87 // pred_region
          %p661 = scmp.lt.s32.totalorder %s35, 7
          %s662 = scalar_select %p661, %s35, 7
          %s663 = smul.addr %s662, 32
          %s664 = smul.addr %s663, 8
          %s665 = scalar_lea.vmem %s2, %s664
        $region100: #{tpu_custom_call.1} parent=87 // pred_fallthru
          _
        // Predicated region
        $region101: #{tpu_custom_call.1} parent=87 // pred_check
          %p666 = pneg %p133
        $region102: #{tpu_custom_call.1} parent=87 // pred_check_branch
          %668 = sbr.rel (%p666) target = $region104
        $region103: #{tpu_custom_call.1} parent=87 // pred_region
          %p669 = scmp.lt.s32.totalorder %s35, 7
          %s670 = scalar_select %p669, %s35, 7
          %s671 = smul.addr %s670, 2
          %s672 = smul.addr %s671, 8
          %s673 = scalar_lea.vmem %s3, %s672
        $region104: #{tpu_custom_call.1} parent=87 // pred_fallthru
          _
      $region88: #{tpu_custom_call.1} parent=5 // pred_fallthru
        _
      %p674 = scmp.le.s32.totalorder 1, %s35
      %p675 = scmp.lt.s32.totalorder %s35, 9
      %p676 = pnand %p674, %p675
      %p677 = pneg %p676
      // Predicated region
      $region105: #{tpu_custom_call.1} parent=5 // pred_check
        _
      $region106: #{tpu_custom_call.1} parent=5 // pred_check_branch
        %679 = sbr.rel (%p676) target = $region108
      $region107: #{tpu_custom_call.1} parent=5 // pred_region
        %s680 = ssub.s32 %s35, 1
        %p681 = scmp.lt.s32.totalorder %s40, 7
        %s682 = scalar_select %p681, %s40, 7
        %s683 = smul.addr %s682, 2
        %s684 = smul.addr %s683, 8
        %s685 = scalar_lea.vmem %s0, %s684
        %p686 = pneg %p61
        %p687 = pneg %p58
        %p688 = scmp.lt.s32.totalorder %s40, 7
        %s689 = scalar_select %p688, %s40, 7
        %s690 = smul.addr %s689, 32
        %s691 = smul.addr %s690, 8
        %s692 = scalar_lea.vmem %s1, %s691
        %p693 = pneg %p87
        %p694 = pneg %p84
        %p695 = scmp.lt.s32.totalorder %s40, 7
        %s696 = scalar_select %p695, %s40, 7
        %s697 = smul.addr %s696, 32
        %s698 = smul.addr %s697, 8
        %s699 = scalar_lea.vmem %s2, %s698
        %p700 = pneg %p113
        %p701 = pneg %p110
        %p702 = scmp.lt.s32.totalorder %s40, 7
        %s703 = scalar_select %p702, %s40, 7
        %s704 = smul.addr %s703, 2
        %s705 = smul.addr %s704, 8
        %s706 = scalar_lea.vmem %s3, %s705
        %p707 = pneg %p139
        %p708 = pneg %p136
        %p709 = pneg %p160
        %p710 = pneg %p157
        %p711 = pneg %p181
        %p712 = pneg %p178
        %p713 = pneg %p202
        %p714 = pneg %p199
        %p715 = pneg %p223
        %p716 = pneg %p220
        %p717 = pneg %p244
        %p718 = pneg %p241
        %p719 = pneg %p265
        %p720 = pneg %p262
        %p721 = pneg %p286
        %p722 = pneg %p283
        %p723 = pneg %p307
        %p724 = pneg %p304
        %p725 = pneg %p328
        %p726 = pneg %p325
        %p727 = pneg %p349
        %p728 = pneg %p346
        %p729 = pneg %p370
        %p730 = pneg %p367
        %p731 = pneg %p391
        %p732 = pneg %p388
        %p733 = pneg %p412
        %p734 = pneg %p409
        %p735 = pneg %p433
        %p736 = pneg %p430
        %p737 = pneg %p454
        %p738 = pneg %p451
        %p739 = pneg %p475
        %p740 = pneg %p472
        %p741 = pneg %p496
        %p742 = pneg %p493
        %p743 = pneg %p517
        %p744 = pneg %p514
        %p745 = pneg %p543
        %p746 = pneg %p540
        %p747 = scmp.lt.s32.totalorder %s40, 7
        %s748 = scalar_select %p747, %s40, 7
        %s749 = scalar_lea.vmem %s22, %s748
        %p750 = pneg %p569
        %p751 = pneg %p566
        %s752 = sand.u32 %s556, 1
        %s753 = scalar_lea.sflag [#allocation4], %s752
        %s754 = sand.u32 %s556, 1
        %s755 = scalar_lea.vmem [#allocation3], %s754
        %p756 = scmp.lt.s32.totalorder %s40, 7
        %s757 = scalar_select %p756, %s40, 7
        %s758 = smul.addr %s757, 2
        %s759 = smul.addr %s758, 8
        %s760 = scalar_lea.vmem %s0, %s759
        %p761 = scmp.lt.s32.totalorder %s40, 7
        %s762 = scalar_select %p761, %s40, 7
        %s763 = smul.addr %s762, 32
        %s764 = smul.addr %s763, 8
        %s765 = scalar_lea.vmem %s1, %s764
        %p766 = scmp.lt.s32.totalorder %s40, 7
        %s767 = scalar_select %p766, %s40, 7
        %s768 = smul.addr %s767, 32
        %s769 = smul.addr %s768, 8
        %s770 = scalar_lea.vmem %s2, %s769
        %p771 = scmp.lt.s32.totalorder %s40, 7
        %s772 = scalar_select %p771, %s40, 7
        %s773 = smul.addr %s772, 2
        %s774 = smul.addr %s773, 8
        %s775 = scalar_lea.vmem %s3, %s774
        %p776 = scmp.lt.s32.totalorder %s40, 7
        %s777 = scalar_select %p776, %s40, 7
        %s778 = scalar_lea.vmem %s22, %s777
        %v779 = vld [vmem:[%s760] sm:$0xff]
        %v780 = vld [vmem:[%s760 + $0x8] sm:$0xff]
        %v781 = vld [vmem:[%s4] sm:$0xff]
        %v782 = vld [vmem:[%s4 + $0x8] sm:$0xff]
        %v783 = vld [vmem:[%s5] sm:$0x1]
        %v785 = vlaneseq
        %v786 = vshrl.u32 %v785, 7
        %v787 = vsub.s32 0, %v786
        %v788 = vrot.slane %v783, %v787
        %vm790 = vcmask 130048
        %v792 = vsel %vm790, %v779, 0
        %v795 = vsel %vm790, %v780, 0
        %797 = vmatprep.subr.mxu0 0.0
        %798 = vmatpush1.msra.mxu0 %v781
        %799 = vmatprep.subr.mxu0 0.0
        %800 = vmatpush1.msra.mxu0 %v782
        %801 = vmatprep.subr.mxu0 0.0
        %802 = vmatpush1.msra.mxu0 0.0
        %803 = vmatprep.subr.mxu0 0.0
        %804 = vmatpush1.msra.mxu0 0.0
        %805 = vmatprep.subr.mxu0 0.0
        %806 = vmatpush1.msra.mxu0 0.0
        %807 = vmatprep.subr.mxu0 0.0
        %808 = vmatpush1.msra.mxu0 0.0
        %809 = vmatprep.subr.mxu0 0.0
        %810 = vmatpush1.msra.mxu0 0.0
        %811 = vmatprep.subr.mxu0 0.0
        %812 = vmatpush1.msra.mxu0 0.0
        %813 = vmatprep.subr.mxu0 0.0
        %814 = vmatpush1.msra.mxu0 0.0
        %815 = vmatprep.subr.mxu0 0.0
        %816 = vmatpush1.msra.mxu0 0.0
        %817 = vmatprep.subr.mxu0 0.0
        %818 = vmatpush1.msra.mxu0 0.0
        %819 = vmatprep.subr.mxu0 0.0
        %820 = vmatpush1.msra.mxu0 0.0
        %821 = vmatprep.subr.mxu0 0.0
        %822 = vmatpush1.msra.mxu0 0.0
        %823 = vmatprep.subr.mxu0 0.0
        %824 = vmatpush1.msra.mxu0 0.0
        %825 = vmatprep.subr.mxu0 0.0
        %826 = vmatpush1.msra.mxu0 0.0
        %827 = vmatprep.subr.mxu0 0.0
        %828 = vmatpush1.msra.mxu0 0.0
        %829 = vmatprep.subr.mxu0 0.0
        %830 = vmatpush1.msra.mxu0 0.0
        %831 = vmatprep.subr.mxu0 0.0
        %832 = vmatpush1.msra.mxu0 0.0
        %833 = vmatprep.subr.mxu0 0.0
        %834 = vmatpush1.msra.mxu0 0.0
        %835 = vmatprep.subr.mxu0 0.0
        %836 = vmatpush1.msra.mxu0 0.0
        %837 = vmatprep.subr.mxu0 0.0
        %838 = vmatpush1.msra.mxu0 0.0
        %839 = vmatprep.subr.mxu0 0.0
        %840 = vmatpush1.msra.mxu0 0.0
        %841 = vmatprep.subr.mxu0 0.0
        %842 = vmatpush1.msra.mxu0 0.0
        %843 = vmatprep.subr.mxu0 0.0
        %844 = vmatpush1.msra.mxu0 0.0
        %845 = vmatprep.subr.mxu0 0.0
        %846 = vmatpush1.msra.mxu0 0.0
        %847 = vmatprep.subr.mxu0 0.0
        %848 = vmatpush1.msra.mxu0 0.0
        %849 = vmatprep.subr.mxu0 0.0
        %850 = vmatpush1.msra.mxu0 0.0
        %851 = vmatprep.subr.mxu0 0.0
        %852 = vmatpush1.msra.mxu0 0.0
        %853 = vmatprep.subr.mxu0 0.0
        %854 = vmatpush1.msra.mxu0 0.0
        %855 = vmatprep.subr.mxu0 0.0
        %856 = vmatpush1.msra.mxu0 0.0
        %857 = vmatprep.subr.mxu0 0.0
        %858 = vmatpush1.msra.mxu0 0.0
        %859 = vmatprep.subr.mxu0 0.0
        %860 = vmatpush1.msra.mxu0 0.0
        %861 = vmatprep.mubr.f32.mxu0 0.0
        %862 = vmatmul.mubr.f32.gmra.mrb[0].mxu0 %v792
        %v863 = vpop.f32.mrb[0].mxu0
        %v864 = vadd.f32 %v788, %v863
        %v865 = vpop.f32.mrb[0].mxu0
        %866 = vmatprep.mubr.f32.mxu0 0.0
        %867 = vmatmul.mubr.f32.gmra.mrb[0].mxu0 %v795
        %v868 = vpop.f32.mrb[0].mxu0
        %v869 = vadd.f32 %v788, %v868
        %v870 = vpop.f32.mrb[0].mxu0
        %871 = vdwg.mxu0
        %v872 = vld [vmem:[%s765] sm:$0xff]
        %v873 = vld [vmem:[%s765 + $0x8] sm:$0xff]
        %v874 = vld [vmem:[%s765 + $0x10] sm:$0xff]
        %v875 = vld [vmem:[%s765 + $0x18] sm:$0xff]
        %v876 = vld [vmem:[%s765 + $0x20] sm:$0xff]
        %v877 = vld [vmem:[%s765 + $0x28] sm:$0xff]
        %v878 = vld [vmem:[%s765 + $0x30] sm:$0xff]
        %v879 = vld [vmem:[%s765 + $0x38] sm:$0xff]
        %v880 = vld [vmem:[%s765 + $0x40] sm:$0xff]
        %v881 = vld [vmem:[%s765 + $0x48] sm:$0xff]
        %v882 = vld [vmem:[%s765 + $0x50] sm:$0xff]
        %v883 = vld [vmem:[%s765 + $0x58] sm:$0xff]
        %v884 = vld [vmem:[%s765 + $0x60] sm:$0xff]
        %v885 = vld [vmem:[%s765 + $0x68] sm:$0xff]
        %v886 = vld [vmem:[%s765 + $0x70] sm:$0xff]
        %v887 = vld [vmem:[%s765 + $0x78] sm:$0xff]
        %v888 = vld [vmem:[%s765 + $0x80] sm:$0xff]
        %v889 = vld [vmem:[%s765 + $0x88] sm:$0xff]
        %v890 = vld [vmem:[%s765 + $0x90] sm:$0xff]
        %v891 = vld [vmem:[%s765 + $0x98] sm:$0xff]
        %v892 = vld [vmem:[%s765 + $0xa0] sm:$0xff]
        %v893 = vld [vmem:[%s765 + $0xa8] sm:$0xff]
        %v894 = vld [vmem:[%s765 + $0xb0] sm:$0xff]
        %v895 = vld [vmem:[%s765 + $0xb8] sm:$0xff]
        %v896 = vld [vmem:[%s765 + $0xc0] sm:$0xff]
        %v897 = vld [vmem:[%s765 + $0xc8] sm:$0xff]
        %v898 = vld [vmem:[%s765 + $0xd0] sm:$0xff]
        %v899 = vld [vmem:[%s765 + $0xd8] sm:$0xff]
        %v900 = vld [vmem:[%s765 + $0xe0] sm:$0xff]
        %v901 = vld [vmem:[%s765 + $0xe8] sm:$0xff]
        %v902 = vld [vmem:[%s765 + $0xf0] sm:$0xff]
        %v903 = vld [vmem:[%s765 + $0xf8] sm:$0xff]
        %v904 = vld [vmem:[%s6] sm:$0xff]
        %v905 = vld [vmem:[%s7] sm:$0x1]
        %v907 = vlaneseq
        %v908 = vshrl.u32 %v907, 7
        %v909 = vsub.s32 0, %v908
        %v910 = vrot.slane %v905, %v909
        %vm912 = vcmask 64512
        %v914 = vsel %vm912, %v872, 0
        %v917 = vsel %vm912, %v873, 0
        %v920 = vsel %vm912, %v874, 0
        %v923 = vsel %vm912, %v875, 0
        %v926 = vsel %vm912, %v876, 0
        %v929 = vsel %vm912, %v877, 0
        %v932 = vsel %vm912, %v878, 0
        %v935 = vsel %vm912, %v879, 0
        %v938 = vsel %vm912, %v880, 0
        %v941 = vsel %vm912, %v881, 0
        %v944 = vsel %vm912, %v882, 0
        %v947 = vsel %vm912, %v883, 0
        %v950 = vsel %vm912, %v884, 0
        %v953 = vsel %vm912, %v885, 0
        %v956 = vsel %vm912, %v886, 0
        %v959 = vsel %vm912, %v887, 0
        %v962 = vsel %vm912, %v888, 0
        %v965 = vsel %vm912, %v889, 0
        %v968 = vsel %vm912, %v890, 0
        %v971 = vsel %vm912, %v891, 0
        %v974 = vsel %vm912, %v892, 0
        %v977 = vsel %vm912, %v893, 0
        %v980 = vsel %vm912, %v894, 0
        %v983 = vsel %vm912, %v895, 0
        %v986 = vsel %vm912, %v896, 0
        %v989 = vsel %vm912, %v897, 0
        %v992 = vsel %vm912, %v898, 0
        %v995 = vsel %vm912, %v899, 0
        %v998 = vsel %vm912, %v900, 0
        %v1001 = vsel %vm912, %v901, 0
        %v1004 = vsel %vm912, %v902, 0
        %v1007 = vsel %vm912, %v903, 0
        %1009 = vmatprep.subr.mxu0 0.0
        %1010 = vmatpush1.msra.mxu0 %v904
        %1011 = vmatprep.subr.mxu0 0.0
        %1012 = vmatpush1.msra.mxu0 0.0
        %1013 = vmatprep.subr.mxu0 0.0
        %1014 = vmatpush1.msra.mxu0 0.0
        %1015 = vmatprep.subr.mxu0 0.0
        %1016 = vmatpush1.msra.mxu0 0.0
        %1017 = vmatprep.subr.mxu0 0.0
        %1018 = vmatpush1.msra.mxu0 0.0
        %1019 = vmatprep.subr.mxu0 0.0
        %1020 = vmatpush1.msra.mxu0 0.0
        %1021 = vmatprep.subr.mxu0 0.0
        %1022 = vmatpush1.msra.mxu0 0.0
        %1023 = vmatprep.subr.mxu0 0.0
        %1024 = vmatpush1.msra.mxu0 0.0
        %1025 = vmatprep.subr.mxu0 0.0
        %1026 = vmatpush1.msra.mxu0 0.0
        %1027 = vmatprep.subr.mxu0 0.0
        %1028 = vmatpush1.msra.mxu0 0.0
        %1029 = vmatprep.subr.mxu0 0.0
        %1030 = vmatpush1.msra.mxu0 0.0
        %1031 = vmatprep.subr.mxu0 0.0
        %1032 = vmatpush1.msra.mxu0 0.0
        %1033 = vmatprep.subr.mxu0 0.0
        %1034 = vmatpush1.msra.mxu0 0.0
        %1035 = vmatprep.subr.mxu0 0.0
        %1036 = vmatpush1.msra.mxu0 0.0
        %1037 = vmatprep.subr.mxu0 0.0
        %1038 = vmatpush1.msra.mxu0 0.0
        %1039 = vmatprep.subr.mxu0 0.0
        %1040 = vmatpush1.msra.mxu0 0.0
        %1041 = vmatprep.subr.mxu0 0.0
        %1042 = vmatpush1.msra.mxu0 0.0
        %1043 = vmatprep.subr.mxu0 0.0
        %1044 = vmatpush1.msra.mxu0 0.0
        %1045 = vmatprep.subr.mxu0 0.0
        %1046 = vmatpush1.msra.mxu0 0.0
        %1047 = vmatprep.subr.mxu0 0.0
        %1048 = vmatpush1.msra.mxu0 0.0
        %1049 = vmatprep.subr.mxu0 0.0
        %1050 = vmatpush1.msra.mxu0 0.0
        %1051 = vmatprep.subr.mxu0 0.0
        %1052 = vmatpush1.msra.mxu0 0.0
        %1053 = vmatprep.subr.mxu0 0.0
        %1054 = vmatpush1.msra.mxu0 0.0
        %1055 = vmatprep.subr.mxu0 0.0
        %1056 = vmatpush1.msra.mxu0 0.0
        %1057 = vmatprep.subr.mxu0 0.0
        %1058 = vmatpush1.msra.mxu0 0.0
        %1059 = vmatprep.subr.mxu0 0.0
        %1060 = vmatpush1.msra.mxu0 0.0
        %1061 = vmatprep.subr.mxu0 0.0
        %1062 = vmatpush1.msra.mxu0 0.0
        %1063 = vmatprep.subr.mxu0 0.0
        %1064 = vmatpush1.msra.mxu0 0.0
        %1065 = vmatprep.subr.mxu0 0.0
        %1066 = vmatpush1.msra.mxu0 0.0
        %1067 = vmatprep.subr.mxu0 0.0
        %1068 = vmatpush1.msra.mxu0 0.0
        %1069 = vmatprep.subr.mxu0 0.0
        %1070 = vmatpush1.msra.mxu0 0.0
        %1071 = vmatprep.subr.mxu0 0.0
        %1072 = vmatpush1.msra.mxu0 0.0
        %1073 = vmatprep.mubr.f32.mxu0 0.0
        %1074 = vmatmul.mubr.f32.gmra.mrb[0].mxu0 %v914
        %v1075 = vpop.f32.mrb[0].mxu0
        %v1076 = vadd.f32 %v910, %v1075
        %v1077 = vpop.f32.mrb[0].mxu0
        %1078 = vmatprep.mubr.f32.mxu0 0.0
        %1079 = vmatmul.mubr.f32.gmra.mrb[0].mxu0 %v917
        %v1080 = vpop.f32.mrb[0].mxu0
        %v1081 = vadd.f32 %v910, %v1080
        %v1082 = vpop.f32.mrb[0].mxu0
        %1083 = vmatprep.mubr.f32.mxu0 0.0
        %1084 = vmatmul.mubr.f32.gmra.mrb[0].mxu0 %v920
        %v1085 = vpop.f32.mrb[0].mxu0
        %v1086 = vadd.f32 %v910, %v1085
        %v1087 = vpop.f32.mrb[0].mxu0
        %1088 = vmatprep.mubr.f32.mxu0 0.0
        %1089 = vmatmul.mubr.f32.gmra.mrb[0].mxu0 %v923
        %v1090 = vpop.f32.mrb[0].mxu0
        %v1091 = vadd.f32 %v910, %v1090
        %v1092 = vpop.f32.mrb[0].mxu0
        %1093 = vmatprep.mubr.f32.mxu0 0.0
        %1094 = vmatmul.mubr.f32.gmra.mrb[0].mxu0 %v926
        %v1095 = vpop.f32.mrb[0].mxu0
        %v1096 = vadd.f32 %v910, %v1095
        %v1097 = vpop.f32.mrb[0].mxu0
        %1098 = vmatprep.mubr.f32.mxu0 0.0
        %1099 = vmatmul.mubr.f32.gmra.mrb[0].mxu0 %v929
        %v1100 = vpop.f32.mrb[0].mxu0
        %v1101 = vadd.f32 %v910, %v1100
        %v1102 = vpop.f32.mrb[0].mxu0
        %1103 = vmatprep.mubr.f32.mxu0 0.0
        %1104 = vmatmul.mubr.f32.gmra.mrb[0].mxu0 %v932
        %v1105 = vpop.f32.mrb[0].mxu0
        %v1106 = vadd.f32 %v910, %v1105
        %v1107 = vpop.f32.mrb[0].mxu0
        %1108 = vmatprep.mubr.f32.mxu0 0.0
        %1109 = vmatmul.mubr.f32.gmra.mrb[0].mxu0 %v935
        %v1110 = vpop.f32.mrb[0].mxu0
        %v1111 = vadd.f32 %v910, %v1110
        %v1112 = vpop.f32.mrb[0].mxu0
        %1113 = vmatprep.mubr.f32.mxu0 0.0
        %1114 = vmatmul.mubr.f32.gmra.mrb[0].mxu0 %v938
        %v1115 = vpop.f32.mrb[0].mxu0
        %v1116 = vadd.f32 %v910, %v1115
        %v1117 = vpop.f32.mrb[0].mxu0
        %1118 = vmatprep.mubr.f32.mxu0 0.0
        %1119 = vmatmul.mubr.f32.gmra.mrb[0].mxu0 %v941
        %v1120 = vpop.f32.mrb[0].mxu0
        %v1121 = vadd.f32 %v910, %v1120
        %v1122 = vpop.f32.mrb[0].mxu0
        %1123 = vmatprep.mubr.f32.mxu0 0.0
        %1124 = vmatmul.mubr.f32.gmra.mrb[0].mxu0 %v944
        %v1125 = vpop.f32.mrb[0].mxu0
        %v1126 = vadd.f32 %v910, %v1125
        %v1127 = vpop.f32.mrb[0].mxu0
        %1128 = vmatprep.mubr.f32.mxu0 0.0
        %1129 = vmatmul.mubr.f32.gmra.mrb[0].mxu0 %v947
        %v1130 = vpop.f32.mrb[0].mxu0
        %v1131 = vadd.f32 %v910, %v1130
        %v1132 = vpop.f32.mrb[0].mxu0
        %1133 = vmatprep.mubr.f32.mxu0 0.0
        %1134 = vmatmul.mubr.f32.gmra.mrb[0].mxu0 %v950
        %v1135 = vpop.f32.mrb[0].mxu0
        %v1136 = vadd.f32 %v910, %v1135
        %v1137 = vpop.f32.mrb[0].mxu0
        %1138 = vmatprep.mubr.f32.mxu0 0.0
        %1139 = vmatmul.mubr.f32.gmra.mrb[0].mxu0 %v953
        %v1140 = vpop.f32.mrb[0].mxu0
        %v1141 = vadd.f32 %v910, %v1140
        %v1142 = vpop.f32.mrb[0].mxu0
        %1143 = vmatprep.mubr.f32.mxu0 0.0
        %1144 = vmatmul.mubr.f32.gmra.mrb[0].mxu0 %v956
        %v1145 = vpop.f32.mrb[0].mxu0
        %v1146 = vadd.f32 %v910, %v1145
        %v1147 = vpop.f32.mrb[0].mxu0
        %1148 = vmatprep.mubr.f32.mxu0 0.0
        %1149 = vmatmul.mubr.f32.gmra.mrb[0].mxu0 %v959
        %v1150 = vpop.f32.mrb[0].mxu0
        %v1151 = vadd.f32 %v910, %v1150
        %v1152 = vpop.f32.mrb[0].mxu0
        %1153 = vmatprep.mubr.f32.mxu0 0.0
        %1154 = vmatmul.mubr.f32.gmra.mrb[0].mxu0 %v962
        %v1155 = vpop.f32.mrb[0].mxu0
        %v1156 = vadd.f32 %v910, %v1155
        %v1157 = vpop.f32.mrb[0].mxu0
        %1158 = vmatprep.mubr.f32.mxu0 0.0
        %1159 = vmatmul.mubr.f32.gmra.mrb[0].mxu0 %v965
        %v1160 = vpop.f32.mrb[0].mxu0
        %v1161 = vadd.f32 %v910, %v1160
        %v1162 = vpop.f32.mrb[0].mxu0
        %1163 = vmatprep.mubr.f32.mxu0 0.0
        %1164 = vmatmul.mubr.f32.gmra.mrb[0].mxu0 %v968
        %v1165 = vpop.f32.mrb[0].mxu0
        %v1166 = vadd.f32 %v910, %v1165
        %v1167 = vpop.f32.mrb[0].mxu0
        %1168 = vmatprep.mubr.f32.mxu0 0.0
        %1169 = vmatmul.mubr.f32.gmra.mrb[0].mxu0 %v971
        %v1170 = vpop.f32.mrb[0].mxu0
        %v1171 = vadd.f32 %v910, %v1170
        %v1172 = vpop.f32.mrb[0].mxu0
        %1173 = vmatprep.mubr.f32.mxu0 0.0
        %1174 = vmatmul.mubr.f32.gmra.mrb[0].mxu0 %v974
        %v1175 = vpop.f32.mrb[0].mxu0
        %v1176 = vadd.f32 %v910, %v1175
        %v1177 = vpop.f32.mrb[0].mxu0
        %1178 = vmatprep.mubr.f32.mxu0 0.0
        %1179 = vmatmul.mubr.f32.gmra.mrb[0].mxu0 %v977
        %v1180 = vpop.f32.mrb[0].mxu0
        %v1181 = vadd.f32 %v910, %v1180
        %v1182 = vpop.f32.mrb[0].mxu0
        %1183 = vmatprep.mubr.f32.mxu0 0.0
        %1184 = vmatmul.mubr.f32.gmra.mrb[0].mxu0 %v980
        %v1185 = vpop.f32.mrb[0].mxu0
        %v1186 = vadd.f32 %v910, %v1185
        %v1187 = vpop.f32.mrb[0].mxu0
        %1188 = vmatprep.mubr.f32.mxu0 0.0
        %1189 = vmatmul.mubr.f32.gmra.mrb[0].mxu0 %v983
        %v1190 = vpop.f32.mrb[0].mxu0
        %v1191 = vadd.f32 %v910, %v1190
        %v1192 = vpop.f32.mrb[0].mxu0
        %1193 = vmatprep.mubr.f32.mxu0 0.0
        %1194 = vmatmul.mubr.f32.gmra.mrb[0].mxu0 %v986
        %v1195 = vpop.f32.mrb[0].mxu0
        %v1196 = vadd.f32 %v910, %v1195
        %v1197 = vpop.f32.mrb[0].mxu0
        %1198 = vmatprep.mubr.f32.mxu0 0.0
        %1199 = vmatmul.mubr.f32.gmra.mrb[0].mxu0 %v989
        %v1200 = vpop.f32.mrb[0].mxu0
        %v1201 = vadd.f32 %v910, %v1200
        %v1202 = vpop.f32.mrb[0].mxu0
        %1203 = vmatprep.mubr.f32.mxu0 0.0
        %1204 = vmatmul.mubr.f32.gmra.mrb[0].mxu0 %v992
        %v1205 = vpop.f32.mrb[0].mxu0
        %v1206 = vadd.f32 %v910, %v1205
        %v1207 = vpop.f32.mrb[0].mxu0
        %1208 = vmatprep.mubr.f32.mxu0 0.0
        %1209 = vmatmul.mubr.f32.gmra.mrb[0].mxu0 %v995
        %v1210 = vpop.f32.mrb[0].mxu0
        %v1211 = vadd.f32 %v910, %v1210
        %v1212 = vpop.f32.mrb[0].mxu0
        %1213 = vmatprep.mubr.f32.mxu0 0.0
        %1214 = vmatmul.mubr.f32.gmra.mrb[0].mxu0 %v998
        %v1215 = vpop.f32.mrb[0].mxu0
        %v1216 = vadd.f32 %v910, %v1215
        %v1217 = vpop.f32.mrb[0].mxu0
        %1218 = vmatprep.mubr.f32.mxu0 0.0
        %1219 = vmatmul.mubr.f32.gmra.mrb[0].mxu0 %v1001
        %v1220 = vpop.f32.mrb[0].mxu0
        %v1221 = vadd.f32 %v910, %v1220
        %v1222 = vpop.f32.mrb[0].mxu0
        %1223 = vmatprep.mubr.f32.mxu0 0.0
        %1224 = vmatmul.mubr.f32.gmra.mrb[0].mxu0 %v1004
        %v1225 = vpop.f32.mrb[0].mxu0
        %v1226 = vadd.f32 %v910, %v1225
        %v1227 = vpop.f32.mrb[0].mxu0
        %1228 = vmatprep.mubr.f32.mxu0 0.0
        %1229 = vmatmul.mubr.f32.gmra.mrb[0].mxu0 %v1007
        %v1230 = vpop.f32.mrb[0].mxu0
        %v1231 = vadd.f32 %v910, %v1230
        %v1232 = vpop.f32.mrb[0].mxu0
        %1233 = vdwg.mxu0
        %v1234 = vld [vmem:[%s770] sm:$0xff]
        %v1235 = vld [vmem:[%s770 + $0x8] sm:$0xff]
        %v1236 = vld [vmem:[%s770 + $0x10] sm:$0xff]
        %v1237 = vld [vmem:[%s770 + $0x18] sm:$0xff]
        %v1238 = vld [vmem:[%s770 + $0x20] sm:$0xff]
        %v1239 = vld [vmem:[%s770 + $0x28] sm:$0xff]
        %v1240 = vld [vmem:[%s770 + $0x30] sm:$0xff]
        %v1241 = vld [vmem:[%s770 + $0x38] sm:$0xff]
        %v1242 = vld [vmem:[%s770 + $0x40] sm:$0xff]
        %v1243 = vld [vmem:[%s770 + $0x48] sm:$0xff]
        %v1244 = vld [vmem:[%s770 + $0x50] sm:$0xff]
        %v1245 = vld [vmem:[%s770 + $0x58] sm:$0xff]
        %v1246 = vld [vmem:[%s770 + $0x60] sm:$0xff]
        %v1247 = vld [vmem:[%s770 + $0x68] sm:$0xff]
        %v1248 = vld [vmem:[%s770 + $0x70] sm:$0xff]
        %v1249 = vld [vmem:[%s770 + $0x78] sm:$0xff]
        %v1250 = vld [vmem:[%s770 + $0x80] sm:$0xff]
        %v1251 = vld [vmem:[%s770 + $0x88] sm:$0xff]
        %v1252 = vld [vmem:[%s770 + $0x90] sm:$0xff]
        %v1253 = vld [vmem:[%s770 + $0x98] sm:$0xff]
        %v1254 = vld [vmem:[%s770 + $0xa0] sm:$0xff]
        %v1255 = vld [vmem:[%s770 + $0xa8] sm:$0xff]
        %v1256 = vld [vmem:[%s770 + $0xb0] sm:$0xff]
        %v1257 = vld [vmem:[%s770 + $0xb8] sm:$0xff]
        %v1258 = vld [vmem:[%s770 + $0xc0] sm:$0xff]
        %v1259 = vld [vmem:[%s770 + $0xc8] sm:$0xff]
        %v1260 = vld [vmem:[%s770 + $0xd0] sm:$0xff]
        %v1261 = vld [vmem:[%s770 + $0xd8] sm:$0xff]
        %v1262 = vld [vmem:[%s770 + $0xe0] sm:$0xff]
        %v1263 = vld [vmem:[%s770 + $0xe8] sm:$0xff]
        %v1264 = vld [vmem:[%s770 + $0xf0] sm:$0xff]
        %v1265 = vld [vmem:[%s770 + $0xf8] sm:$0xff]
        %v1266 = vld [vmem:[%s8] sm:$0x1]
        %1268 = vset.pattern.permute.xlu0 0
        %1269 = vperm.xlu0 %1268, %v1234
        %v1270 = vpop.permute.xlu0 %1269
        %1273 = vset.pattern.permute.xlu0 0
        %1274 = vperm.xlu0 %1273, %v1235
        %v1275 = vpop.permute.xlu0 %1274
        %1278 = vset.pattern.permute.xlu0 0
        %1279 = vperm.xlu0 %1278, %v1236
        %v1280 = vpop.permute.xlu0 %1279
        %1283 = vset.pattern.permute.xlu0 0
        %1284 = vperm.xlu0 %1283, %v1237
        %v1285 = vpop.permute.xlu0 %1284
        %1288 = vset.pattern.permute.xlu0 0
        %1289 = vperm.xlu0 %1288, %v1238
        %v1290 = vpop.permute.xlu0 %1289
        %1293 = vset.pattern.permute.xlu0 0
        %1294 = vperm.xlu0 %1293, %v1239
        %v1295 = vpop.permute.xlu0 %1294
        %1298 = vset.pattern.permute.xlu0 0
        %1299 = vperm.xlu0 %1298, %v1240
        %v1300 = vpop.permute.xlu0 %1299
        %1303 = vset.pattern.permute.xlu0 0
        %1304 = vperm.xlu0 %1303, %v1241
        %v1305 = vpop.permute.xlu0 %1304
        %1308 = vset.pattern.permute.xlu0 0
        %1309 = vperm.xlu0 %1308, %v1242
        %v1310 = vpop.permute.xlu0 %1309
        %1313 = vset.pattern.permute.xlu0 0
        %1314 = vperm.xlu0 %1313, %v1243
        %v1315 = vpop.permute.xlu0 %1314
        %1318 = vset.pattern.permute.xlu0 0
        %1319 = vperm.xlu0 %1318, %v1244
        %v1320 = vpop.permute.xlu0 %1319
        %1323 = vset.pattern.permute.xlu0 0
        %1324 = vperm.xlu0 %1323, %v1245
        %v1325 = vpop.permute.xlu0 %1324
        %1328 = vset.pattern.permute.xlu0 0
        %1329 = vperm.xlu0 %1328, %v1246
        %v1330 = vpop.permute.xlu0 %1329
        %1333 = vset.pattern.permute.xlu0 0
        %1334 = vperm.xlu0 %1333, %v1247
        %v1335 = vpop.permute.xlu0 %1334
        %1338 = vset.pattern.permute.xlu0 0
        %1339 = vperm.xlu0 %1338, %v1248
        %v1340 = vpop.permute.xlu0 %1339
        %1343 = vset.pattern.permute.xlu0 0
        %1344 = vperm.xlu0 %1343, %v1249
        %v1345 = vpop.permute.xlu0 %1344
        %1348 = vset.pattern.permute.xlu0 0
        %1349 = vperm.xlu0 %1348, %v1250
        %v1350 = vpop.permute.xlu0 %1349
        %1353 = vset.pattern.permute.xlu0 0
        %1354 = vperm.xlu0 %1353, %v1251
        %v1355 = vpop.permute.xlu0 %1354
        %1358 = vset.pattern.permute.xlu0 0
        %1359 = vperm.xlu0 %1358, %v1252
        %v1360 = vpop.permute.xlu0 %1359
        %1363 = vset.pattern.permute.xlu0 0
        %1364 = vperm.xlu0 %1363, %v1253
        %v1365 = vpop.permute.xlu0 %1364
        %1368 = vset.pattern.permute.xlu0 0
        %1369 = vperm.xlu0 %1368, %v1254
        %v1370 = vpop.permute.xlu0 %1369
        %1373 = vset.pattern.permute.xlu0 0
        %1374 = vperm.xlu0 %1373, %v1255
        %v1375 = vpop.permute.xlu0 %1374
        %1378 = vset.pattern.permute.xlu0 0
        %1379 = vperm.xlu0 %1378, %v1256
        %v1380 = vpop.permute.xlu0 %1379
        %1383 = vset.pattern.permute.xlu0 0
        %1384 = vperm.xlu0 %1383, %v1257
        %v1385 = vpop.permute.xlu0 %1384
        %1388 = vset.pattern.permute.xlu0 0
        %1389 = vperm.xlu0 %1388, %v1258
        %v1390 = vpop.permute.xlu0 %1389
        %1393 = vset.pattern.permute.xlu0 0
        %1394 = vperm.xlu0 %1393, %v1259
        %v1395 = vpop.permute.xlu0 %1394
        %1398 = vset.pattern.permute.xlu0 0
        %1399 = vperm.xlu0 %1398, %v1260
        %v1400 = vpop.permute.xlu0 %1399
        %1403 = vset.pattern.permute.xlu0 0
        %1404 = vperm.xlu0 %1403, %v1261
        %v1405 = vpop.permute.xlu0 %1404
        %1408 = vset.pattern.permute.xlu0 0
        %1409 = vperm.xlu0 %1408, %v1262
        %v1410 = vpop.permute.xlu0 %1409
        %1413 = vset.pattern.permute.xlu0 0
        %1414 = vperm.xlu0 %1413, %v1263
        %v1415 = vpop.permute.xlu0 %1414
        %1418 = vset.pattern.permute.xlu0 0
        %1419 = vperm.xlu0 %1418, %v1264
        %v1420 = vpop.permute.xlu0 %1419
        %1423 = vset.pattern.permute.xlu0 0
        %1424 = vperm.xlu0 %1423, %v1265
        %v1425 = vpop.permute.xlu0 %1424
        %v1428 = vlaneseq
        %v1429 = vshrl.u32 %v1428, 7
        %v1430 = vsub.s32 0, %v1429
        %v1431 = vrot.slane %v1266, %v1430
        %v1433 = vmul.f32 %v1270, %v1431
        %v1434 = vmul.f32 %v1275, %v1431
        %v1435 = vmul.f32 %v1280, %v1431
        %v1436 = vmul.f32 %v1285, %v1431
        %v1437 = vmul.f32 %v1290, %v1431
        %v1438 = vmul.f32 %v1295, %v1431
        %v1439 = vmul.f32 %v1300, %v1431
        %v1440 = vmul.f32 %v1305, %v1431
        %v1441 = vmul.f32 %v1310, %v1431
        %v1442 = vmul.f32 %v1315, %v1431
        %v1443 = vmul.f32 %v1320, %v1431
        %v1444 = vmul.f32 %v1325, %v1431
        %v1445 = vmul.f32 %v1330, %v1431
        %v1446 = vmul.f32 %v1335, %v1431
        %v1447 = vmul.f32 %v1340, %v1431
        %v1448 = vmul.f32 %v1345, %v1431
        %v1449 = vmul.f32 %v1350, %v1431
        %v1450 = vmul.f32 %v1355, %v1431
        %v1451 = vmul.f32 %v1360, %v1431
        %v1452 = vmul.f32 %v1365, %v1431
        %v1453 = vmul.f32 %v1370, %v1431
        %v1454 = vmul.f32 %v1375, %v1431
        %v1455 = vmul.f32 %v1380, %v1431
        %v1456 = vmul.f32 %v1385, %v1431
        %v1457 = vmul.f32 %v1390, %v1431
        %v1458 = vmul.f32 %v1395, %v1431
        %v1459 = vmul.f32 %v1400, %v1431
        %v1460 = vmul.f32 %v1405, %v1431
        %v1461 = vmul.f32 %v1410, %v1431
        %v1462 = vmul.f32 %v1415, %v1431
        %v1463 = vmul.f32 %v1420, %v1431
        %v1464 = vmul.f32 %v1425, %v1431
        %v1465 = vld [vmem:[%s9] sm:$0x1]
        %v1467 = vlaneseq
        %v1468 = vshrl.u32 %v1467, 7
        %v1469 = vsub.s32 0, %v1468
        %v1470 = vrot.slane %v1465, %v1469
        %v1472 = vadd.f32 %v1433, %v1470
        %v1473 = vadd.f32 %v1434, %v1470
        %v1474 = vadd.f32 %v1435, %v1470
        %v1475 = vadd.f32 %v1436, %v1470
        %v1476 = vadd.f32 %v1437, %v1470
        %v1477 = vadd.f32 %v1438, %v1470
        %v1478 = vadd.f32 %v1439, %v1470
        %v1479 = vadd.f32 %v1440, %v1470
        %v1480 = vadd.f32 %v1441, %v1470
        %v1481 = vadd.f32 %v1442, %v1470
        %v1482 = vadd.f32 %v1443, %v1470
        %v1483 = vadd.f32 %v1444, %v1470
        %v1484 = vadd.f32 %v1445, %v1470
        %v1485 = vadd.f32 %v1446, %v1470
        %v1486 = vadd.f32 %v1447, %v1470
        %v1487 = vadd.f32 %v1448, %v1470
        %v1488 = vadd.f32 %v1449, %v1470
        %v1489 = vadd.f32 %v1450, %v1470
        %v1490 = vadd.f32 %v1451, %v1470
        %v1491 = vadd.f32 %v1452, %v1470
        %v1492 = vadd.f32 %v1453, %v1470
        %v1493 = vadd.f32 %v1454, %v1470
        %v1494 = vadd.f32 %v1455, %v1470
        %v1495 = vadd.f32 %v1456, %v1470
        %v1496 = vadd.f32 %v1457, %v1470
        %v1497 = vadd.f32 %v1458, %v1470
        %v1498 = vadd.f32 %v1459, %v1470
        %v1499 = vadd.f32 %v1460, %v1470
        %v1500 = vadd.f32 %v1461, %v1470
        %v1501 = vadd.f32 %v1462, %v1470
        %v1502 = vadd.f32 %v1463, %v1470
        %v1503 = vadd.f32 %v1464, %v1470
        %v1504 = vmul.f32 %v1472, -0.5
        %v1505 = vmul.f32 %v1473, -0.5
        %v1506 = vmul.f32 %v1474, -0.5
        %v1507 = vmul.f32 %v1475, -0.5
        %v1508 = vmul.f32 %v1476, -0.5
        %v1509 = vmul.f32 %v1477, -0.5
        %v1510 = vmul.f32 %v1478, -0.5
        %v1511 = vmul.f32 %v1479, -0.5
        %v1512 = vmul.f32 %v1480, -0.5
        %v1513 = vmul.f32 %v1481, -0.5
        %v1514 = vmul.f32 %v1482, -0.5
        %v1515 = vmul.f32 %v1483, -0.5
        %v1516 = vmul.f32 %v1484, -0.5
        %v1517 = vmul.f32 %v1485, -0.5
        %v1518 = vmul.f32 %v1486, -0.5
        %v1519 = vmul.f32 %v1487, -0.5
        %v1520 = vmul.f32 %v1488, -0.5
        %v1521 = vmul.f32 %v1489, -0.5
        %v1522 = vmul.f32 %v1490, -0.5
        %v1523 = vmul.f32 %v1491, -0.5
        %v1524 = vmul.f32 %v1492, -0.5
        %v1525 = vmul.f32 %v1493, -0.5
        %v1526 = vmul.f32 %v1494, -0.5
        %v1527 = vmul.f32 %v1495, -0.5
        %v1528 = vmul.f32 %v1496, -0.5
        %v1529 = vmul.f32 %v1497, -0.5
        %v1530 = vmul.f32 %v1498, -0.5
        %v1531 = vmul.f32 %v1499, -0.5
        %v1532 = vmul.f32 %v1500, -0.5
        %v1533 = vmul.f32 %v1501, -0.5
        %v1534 = vmul.f32 %v1502, -0.5
        %v1535 = vmul.f32 %v1503, -0.5
        %v1536 = vmul.f32 %v1504, %v1472
        %v1537 = vmul.f32 %v1505, %v1473
        %v1538 = vmul.f32 %v1506, %v1474
        %v1539 = vmul.f32 %v1507, %v1475
        %v1540 = vmul.f32 %v1508, %v1476
        %v1541 = vmul.f32 %v1509, %v1477
        %v1542 = vmul.f32 %v1510, %v1478
        %v1543 = vmul.f32 %v1511, %v1479
        %v1544 = vmul.f32 %v1512, %v1480
        %v1545 = vmul.f32 %v1513, %v1481
        %v1546 = vmul.f32 %v1514, %v1482
        %v1547 = vmul.f32 %v1515, %v1483
        %v1548 = vmul.f32 %v1516, %v1484
        %v1549 = vmul.f32 %v1517, %v1485
        %v1550 = vmul.f32 %v1518, %v1486
        %v1551 = vmul.f32 %v1519, %v1487
        %v1552 = vmul.f32 %v1520, %v1488
        %v1553 = vmul.f32 %v1521, %v1489
        %v1554 = vmul.f32 %v1522, %v1490
        %v1555 = vmul.f32 %v1523, %v1491
        %v1556 = vmul.f32 %v1524, %v1492
        %v1557 = vmul.f32 %v1525, %v1493
        %v1558 = vmul.f32 %v1526, %v1494
        %v1559 = vmul.f32 %v1527, %v1495
        %v1560 = vmul.f32 %v1528, %v1496
        %v1561 = vmul.f32 %v1529, %v1497
        %v1562 = vmul.f32 %v1530, %v1498
        %v1563 = vmul.f32 %v1531, %v1499
        %v1564 = vmul.f32 %v1532, %v1500
        %v1565 = vmul.f32 %v1533, %v1501
        %v1566 = vmul.f32 %v1534, %v1502
        %v1567 = vmul.f32 %v1535, %v1503
        %v1568 = vmul.f32 %v1536, 1.442695
        %v1569 = vpow.pop %v1568
        %v1570 = vmul.f32 %v1537, 1.442695
        %v1571 = vpow.pop %v1570
        %v1572 = vmul.f32 %v1538, 1.442695
        %v1573 = vpow.pop %v1572
        %v1574 = vmul.f32 %v1539, 1.442695
        %v1575 = vpow.pop %v1574
        %v1576 = vmul.f32 %v1540, 1.442695
        %v1577 = vpow.pop %v1576
        %v1578 = vmul.f32 %v1541, 1.442695
        %v1579 = vpow.pop %v1578
        %v1580 = vmul.f32 %v1542, 1.442695
        %v1581 = vpow.pop %v1580
        %v1582 = vmul.f32 %v1543, 1.442695
        %v1583 = vpow.pop %v1582
        %v1584 = vmul.f32 %v1544, 1.442695
        %v1585 = vpow.pop %v1584
        %v1586 = vmul.f32 %v1545, 1.442695
        %v1587 = vpow.pop %v1586
        %v1588 = vmul.f32 %v1546, 1.442695
        %v1589 = vpow.pop %v1588
        %v1590 = vmul.f32 %v1547, 1.442695
        %v1591 = vpow.pop %v1590
        %v1592 = vmul.f32 %v1548, 1.442695
        %v1593 = vpow.pop %v1592
        %v1594 = vmul.f32 %v1549, 1.442695
        %v1595 = vpow.pop %v1594
        %v1596 = vmul.f32 %v1550, 1.442695
        %v1597 = vpow.pop %v1596
        %v1598 = vmul.f32 %v1551, 1.442695
        %v1599 = vpow.pop %v1598
        %v1600 = vmul.f32 %v1552, 1.442695
        %v1601 = vpow.pop %v1600
        %v1602 = vmul.f32 %v1553, 1.442695
        %v1603 = vpow.pop %v1602
        %v1604 = vmul.f32 %v1554, 1.442695
        %v1605 = vpow.pop %v1604
        %v1606 = vmul.f32 %v1555, 1.442695
        %v1607 = vpow.pop %v1606
        %v1608 = vmul.f32 %v1556, 1.442695
        %v1609 = vpow.pop %v1608
        %v1610 = vmul.f32 %v1557, 1.442695
        %v1611 = vpow.pop %v1610
        %v1612 = vmul.f32 %v1558, 1.442695
        %v1613 = vpow.pop %v1612
        %v1614 = vmul.f32 %v1559, 1.442695
        %v1615 = vpow.pop %v1614
        %v1616 = vmul.f32 %v1560, 1.442695
        %v1617 = vpow.pop %v1616
        %v1618 = vmul.f32 %v1561, 1.442695
        %v1619 = vpow.pop %v1618
        %v1620 = vmul.f32 %v1562, 1.442695
        %v1621 = vpow.pop %v1620
        %v1622 = vmul.f32 %v1563, 1.442695
        %v1623 = vpow.pop %v1622
        %v1624 = vmul.f32 %v1564, 1.442695
        %v1625 = vpow.pop %v1624
        %v1626 = vmul.f32 %v1565, 1.442695
        %v1627 = vpow.pop %v1626
        %v1628 = vmul.f32 %v1566, 1.442695
        %v1629 = vpow.pop %v1628
        %v1630 = vmul.f32 %v1567, 1.442695
        %v1631 = vpow.pop %v1630
        %v1632 = vld [vmem:[%s10] sm:$0x1]
        %v1634 = vlaneseq
        %v1635 = vshrl.u32 %v1634, 7
        %v1636 = vsub.s32 0, %v1635
        %v1637 = vrot.slane %v1632, %v1636
        %v1639 = vmul.f32 %v1569, %v1637
        %v1640 = vmul.f32 %v1571, %v1637
        %v1641 = vmul.f32 %v1573, %v1637
        %v1642 = vmul.f32 %v1575, %v1637
        %v1643 = vmul.f32 %v1577, %v1637
        %v1644 = vmul.f32 %v1579, %v1637
        %v1645 = vmul.f32 %v1581, %v1637
        %v1646 = vmul.f32 %v1583, %v1637
        %v1647 = vmul.f32 %v1585, %v1637
        %v1648 = vmul.f32 %v1587, %v1637
        %v1649 = vmul.f32 %v1589, %v1637
        %v1650 = vmul.f32 %v1591, %v1637
        %v1651 = vmul.f32 %v1593, %v1637
        %v1652 = vmul.f32 %v1595, %v1637
        %v1653 = vmul.f32 %v1597, %v1637
        %v1654 = vmul.f32 %v1599, %v1637
        %v1655 = vmul.f32 %v1601, %v1637
        %v1656 = vmul.f32 %v1603, %v1637
        %v1657 = vmul.f32 %v1605, %v1637
        %v1658 = vmul.f32 %v1607, %v1637
        %v1659 = vmul.f32 %v1609, %v1637
        %v1660 = vmul.f32 %v1611, %v1637
        %v1661 = vmul.f32 %v1613, %v1637
        %v1662 = vmul.f32 %v1615, %v1637
        %v1663 = vmul.f32 %v1617, %v1637
        %v1664 = vmul.f32 %v1619, %v1637
        %v1665 = vmul.f32 %v1621, %v1637
        %v1666 = vmul.f32 %v1623, %v1637
        %v1667 = vmul.f32 %v1625, %v1637
        %v1668 = vmul.f32 %v1627, %v1637
        %v1669 = vmul.f32 %v1629, %v1637
        %v1670 = vmul.f32 %v1631, %v1637
        %v1671 = vadd.f32 %v1076, %v1639
        %v1672 = vadd.f32 %v1081, %v1640
        %v1673 = vadd.f32 %v1086, %v1641
        %v1674 = vadd.f32 %v1091, %v1642
        %v1675 = vadd.f32 %v1096, %v1643
        %v1676 = vadd.f32 %v1101, %v1644
        %v1677 = vadd.f32 %v1106, %v1645
        %v1678 = vadd.f32 %v1111, %v1646
        %v1679 = vadd.f32 %v1116, %v1647
        %v1680 = vadd.f32 %v1121, %v1648
        %v1681 = vadd.f32 %v1126, %v1649
        %v1682 = vadd.f32 %v1131, %v1650
        %v1683 = vadd.f32 %v1136, %v1651
        %v1684 = vadd.f32 %v1141, %v1652
        %v1685 = vadd.f32 %v1146, %v1653
        %v1686 = vadd.f32 %v1151, %v1654
        %v1687 = vadd.f32 %v1156, %v1655
        %v1688 = vadd.f32 %v1161, %v1656
        %v1689 = vadd.f32 %v1166, %v1657
        %v1690 = vadd.f32 %v1171, %v1658
        %v1691 = vadd.f32 %v1176, %v1659
        %v1692 = vadd.f32 %v1181, %v1660
        %v1693 = vadd.f32 %v1186, %v1661
        %v1694 = vadd.f32 %v1191, %v1662
        %v1695 = vadd.f32 %v1196, %v1663
        %v1696 = vadd.f32 %v1201, %v1664
        %v1697 = vadd.f32 %v1206, %v1665
        %v1698 = vadd.f32 %v1211, %v1666
        %v1699 = vadd.f32 %v1216, %v1667
        %v1700 = vadd.f32 %v1221, %v1668
        %v1701 = vadd.f32 %v1226, %v1669
        %v1702 = vadd.f32 %v1231, %v1670
        %v1703 = vld [vmem:[%s775] sm:$0xff]
        %v1704 = vld [vmem:[%s775 + $0x8] sm:$0xff]
        %v1705 = vlaneseq
        %v1706 = vshrl.u32 %v1705, 7
        %v1707 = vsub.s32 0, %v1706
        %v1708 = vrot.slane %v1703, %v1707
        %1710 = vbcast.lane.b32.xlu0 %v1708, 256
        %v1711 = vpop.permute.xlu0 %1710
        %s1713 = sor.u32 256, 8
        %1714 = vbcast.lane.b32.xlu0 %v1708, %s1713
        %v1715 = vpop.permute.xlu0 %1714
        %v1716 = vlaneseq
        %v1717 = vshrl.u32 %v1716, 7
        %v1718 = vsub.s32 1, %v1717
        %v1719 = vrot.slane %v1703, %v1718
        %1721 = vbcast.lane.b32.xlu0 %v1719, 256
        %v1722 = vpop.permute.xlu0 %1721
        %s1724 = sor.u32 256, 8
        %1725 = vbcast.lane.b32.xlu0 %v1719, %s1724
        %v1726 = vpop.permute.xlu0 %1725
        %v1727 = vlaneseq
        %v1728 = vshrl.u32 %v1727, 7
        %v1729 = vsub.s32 2, %v1728
        %v1730 = vrot.slane %v1703, %v1729
        %1732 = vbcast.lane.b32.xlu0 %v1730, 256
        %v1733 = vpop.permute.xlu0 %1732
        %s1735 = sor.u32 256, 8
        %1736 = vbcast.lane.b32.xlu0 %v1730, %s1735
        %v1737 = vpop.permute.xlu0 %1736
        %v1738 = vlaneseq
        %v1739 = vshrl.u32 %v1738, 7
        %v1740 = vsub.s32 3, %v1739
        %v1741 = vrot.slane %v1703, %v1740
        %1743 = vbcast.lane.b32.xlu0 %v1741, 256
        %v1744 = vpop.permute.xlu0 %1743
        %s1746 = sor.u32 256, 8
        %1747 = vbcast.lane.b32.xlu0 %v1741, %s1746
        %v1748 = vpop.permute.xlu0 %1747
        %v1749 = vlaneseq
        %v1750 = vshrl.u32 %v1749, 7
        %v1751 = vsub.s32 4, %v1750
        %v1752 = vrot.slane %v1703, %v1751
        %1754 = vbcast.lane.b32.xlu0 %v1752, 256
        %v1755 = vpop.permute.xlu0 %1754
        %s1757 = sor.u32 256, 8
        %1758 = vbcast.lane.b32.xlu0 %v1752, %s1757
        %v1759 = vpop.permute.xlu0 %1758
        %v1760 = vlaneseq
        %v1761 = vshrl.u32 %v1760, 7
        %v1762 = vsub.s32 5, %v1761
        %v1763 = vrot.slane %v1703, %v1762
        %1765 = vbcast.lane.b32.xlu0 %v1763, 256
        %v1766 = vpop.permute.xlu0 %1765
        %s1768 = sor.u32 256, 8
        %1769 = vbcast.lane.b32.xlu0 %v1763, %s1768
        %v1770 = vpop.permute.xlu0 %1769
        %v1771 = vlaneseq
        %v1772 = vshrl.u32 %v1771, 7
        %v1773 = vsub.s32 6, %v1772
        %v1774 = vrot.slane %v1703, %v1773
        %1776 = vbcast.lane.b32.xlu0 %v1774, 256
        %v1777 = vpop.permute.xlu0 %1776
        %s1779 = sor.u32 256, 8
        %1780 = vbcast.lane.b32.xlu0 %v1774, %s1779
        %v1781 = vpop.permute.xlu0 %1780
        %v1782 = vlaneseq
        %v1783 = vshrl.u32 %v1782, 7
        %v1784 = vsub.s32 7, %v1783
        %v1785 = vrot.slane %v1703, %v1784
        %1787 = vbcast.lane.b32.xlu0 %v1785, 256
        %v1788 = vpop.permute.xlu0 %1787
        %s1790 = sor.u32 256, 8
        %1791 = vbcast.lane.b32.xlu0 %v1785, %s1790
        %v1792 = vpop.permute.xlu0 %1791
        %v1793 = vlaneseq
        %v1794 = vshrl.u32 %v1793, 7
        %v1795 = vsub.s32 0, %v1794
        %v1796 = vrot.slane %v1704, %v1795
        %1798 = vbcast.lane.b32.xlu0 %v1796, 256
        %v1799 = vpop.permute.xlu0 %1798
        %s1801 = sor.u32 256, 8
        %1802 = vbcast.lane.b32.xlu0 %v1796, %s1801
        %v1803 = vpop.permute.xlu0 %1802
        %v1804 = vlaneseq
        %v1805 = vshrl.u32 %v1804, 7
        %v1806 = vsub.s32 1, %v1805
        %v1807 = vrot.slane %v1704, %v1806
        %1809 = vbcast.lane.b32.xlu0 %v1807, 256
        %v1810 = vpop.permute.xlu0 %1809
        %s1812 = sor.u32 256, 8
        %1813 = vbcast.lane.b32.xlu0 %v1807, %s1812
        %v1814 = vpop.permute.xlu0 %1813
        %v1815 = vlaneseq
        %v1816 = vshrl.u32 %v1815, 7
        %v1817 = vsub.s32 2, %v1816
        %v1818 = vrot.slane %v1704, %v1817
        %1820 = vbcast.lane.b32.xlu0 %v1818, 256
        %v1821 = vpop.permute.xlu0 %1820
        %s1823 = sor.u32 256, 8
        %1824 = vbcast.lane.b32.xlu0 %v1818, %s1823
        %v1825 = vpop.permute.xlu0 %1824
        %v1826 = vlaneseq
        %v1827 = vshrl.u32 %v1826, 7
        %v1828 = vsub.s32 3, %v1827
        %v1829 = vrot.slane %v1704, %v1828
        %1831 = vbcast.lane.b32.xlu0 %v1829, 256
        %v1832 = vpop.permute.xlu0 %1831
        %s1834 = sor.u32 256, 8
        %1835 = vbcast.lane.b32.xlu0 %v1829, %s1834
        %v1836 = vpop.permute.xlu0 %1835
        %v1837 = vlaneseq
        %v1838 = vshrl.u32 %v1837, 7
        %v1839 = vsub.s32 4, %v1838
        %v1840 = vrot.slane %v1704, %v1839
        %1842 = vbcast.lane.b32.xlu0 %v1840, 256
        %v1843 = vpop.permute.xlu0 %1842
        %s1845 = sor.u32 256, 8
        %1846 = vbcast.lane.b32.xlu0 %v1840, %s1845
        %v1847 = vpop.permute.xlu0 %1846
        %v1848 = vlaneseq
        %v1849 = vshrl.u32 %v1848, 7
        %v1850 = vsub.s32 5, %v1849
        %v1851 = vrot.slane %v1704, %v1850
        %1853 = vbcast.lane.b32.xlu0 %v1851, 256
        %v1854 = vpop.permute.xlu0 %1853
        %s1856 = sor.u32 256, 8
        %1857 = vbcast.lane.b32.xlu0 %v1851, %s1856
        %v1858 = vpop.permute.xlu0 %1857
        %v1859 = vlaneseq
        %v1860 = vshrl.u32 %v1859, 7
        %v1861 = vsub.s32 6, %v1860
        %v1862 = vrot.slane %v1704, %v1861
        %1864 = vbcast.lane.b32.xlu0 %v1862, 256
        %v1865 = vpop.permute.xlu0 %1864
        %s1867 = sor.u32 256, 8
        %1868 = vbcast.lane.b32.xlu0 %v1862, %s1867
        %v1869 = vpop.permute.xlu0 %1868
        %v1870 = vlaneseq
        %v1871 = vshrl.u32 %v1870, 7
        %v1872 = vsub.s32 7, %v1871
        %v1873 = vrot.slane %v1704, %v1872
        %1875 = vbcast.lane.b32.xlu0 %v1873, 256
        %v1876 = vpop.permute.xlu0 %1875
        %s1878 = sor.u32 256, 8
        %1879 = vbcast.lane.b32.xlu0 %v1873, %s1878
        %v1880 = vpop.permute.xlu0 %1879
        %v1881 = vld [vmem:[%s11] sm:$0xff]
        %v1882 = vld [vmem:[%s11 + $0x8] sm:$0xff]
        %v1883 = vld [vmem:[%s11 + $0x10] sm:$0xff]
        %v1884 = vld [vmem:[%s11 + $0x18] sm:$0xff]
        %v1885 = vld [vmem:[%s12] sm:$0x1]
        %v1887 = vlaneseq
        %v1888 = vshrl.u32 %v1887, 7
        %v1889 = vsub.s32 0, %v1888
        %v1890 = vrot.slane %v1885, %v1889
        %vm1892 = vcmask 261120
        %v1894 = vsel %vm1892, %v864, 0
        %v1897 = vsel %vm1892, %v869, 0
        %1899 = vmatprep.subr.mxu0 0.0
        %1900 = vmatpush1.msra.mxu0 %v1881
        %1901 = vmatprep.subr.mxu0 0.0
        %1902 = vmatpush1.msra.mxu0 %v1882
        %1903 = vmatprep.subr.mxu0 0.0
        %1904 = vmatpush1.msra.mxu0 %v1883
        %1905 = vmatprep.subr.mxu0 0.0
        %1906 = vmatpush1.msra.mxu0 %v1884
        %1907 = vmatprep.subr.mxu0 0.0
        %1908 = vmatpush1.msra.mxu0 0.0
        %1909 = vmatprep.subr.mxu0 0.0
        %1910 = vmatpush1.msra.mxu0 0.0
        %1911 = vmatprep.subr.mxu0 0.0
        %1912 = vmatpush1.msra.mxu0 0.0
        %1913 = vmatprep.subr.mxu0 0.0
        %1914 = vmatpush1.msra.mxu0 0.0
        %1915 = vmatprep.subr.mxu0 0.0
        %1916 = vmatpush1.msra.mxu0 0.0
        %1917 = vmatprep.subr.mxu0 0.0
        %1918 = vmatpush1.msra.mxu0 0.0
        %1919 = vmatprep.subr.mxu0 0.0
        %1920 = vmatpush1.msra.mxu0 0.0
        %1921 = vmatprep.subr.mxu0 0.0
        %1922 = vmatpush1.msra.mxu0 0.0
        %1923 = vmatprep.subr.mxu0 0.0
        %1924 = vmatpush1.msra.mxu0 0.0
        %1925 = vmatprep.subr.mxu0 0.0
        %1926 = vmatpush1.msra.mxu0 0.0
        %1927 = vmatprep.subr.mxu0 0.0
        %1928 = vmatpush1.msra.mxu0 0.0
        %1929 = vmatprep.subr.mxu0 0.0
        %1930 = vmatpush1.msra.mxu0 0.0
        %1931 = vmatprep.subr.mxu0 0.0
        %1932 = vmatpush1.msra.mxu0 0.0
        %1933 = vmatprep.subr.mxu0 0.0
        %1934 = vmatpush1.msra.mxu0 0.0
        %1935 = vmatprep.subr.mxu0 0.0
        %1936 = vmatpush1.msra.mxu0 0.0
        %1937 = vmatprep.subr.mxu0 0.0
        %1938 = vmatpush1.msra.mxu0 0.0
        %1939 = vmatprep.subr.mxu0 0.0
        %1940 = vmatpush1.msra.mxu0 0.0
        %1941 = vmatprep.subr.mxu0 0.0
        %1942 = vmatpush1.msra.mxu0 0.0
        %1943 = vmatprep.subr.mxu0 0.0
        %1944 = vmatpush1.msra.mxu0 0.0
        %1945 = vmatprep.subr.mxu0 0.0
        %1946 = vmatpush1.msra.mxu0 0.0
        %1947 = vmatprep.subr.mxu0 0.0
        %1948 = vmatpush1.msra.mxu0 0.0
        %1949 = vmatprep.subr.mxu0 0.0
        %1950 = vmatpush1.msra.mxu0 0.0
        %1951 = vmatprep.subr.mxu0 0.0
        %1952 = vmatpush1.msra.mxu0 0.0
        %1953 = vmatprep.subr.mxu0 0.0
        %1954 = vmatpush1.msra.mxu0 0.0
        %1955 = vmatprep.subr.mxu0 0.0
        %1956 = vmatpush1.msra.mxu0 0.0
        %1957 = vmatprep.subr.mxu0 0.0
        %1958 = vmatpush1.msra.mxu0 0.0
        %1959 = vmatprep.subr.mxu0 0.0
        %1960 = vmatpush1.msra.mxu0 0.0
        %1961 = vmatprep.subr.mxu0 0.0
        %1962 = vmatpush1.msra.mxu0 0.0
        %1963 = vmatprep.mubr.f32.mxu0 0.0
        %1964 = vmatmul.mubr.f32.gmra.mrb[0].mxu0 %v1894
        %v1965 = vpop.f32.mrb[0].mxu0
        %v1966 = vadd.f32 %v1890, %v1965
        %v1967 = vpop.f32.mrb[0].mxu0
        %1968 = vmatprep.mubr.f32.mxu0 0.0
        %1969 = vmatmul.mubr.f32.gmra.mrb[0].mxu0 %v1897
        %v1970 = vpop.f32.mrb[0].mxu0
        %v1971 = vadd.f32 %v1890, %v1970
        %v1972 = vpop.f32.mrb[0].mxu0
        %1973 = vdwg.mxu0
        %v1974 = vld [vmem:[%s13] sm:$0xff]
        %v1975 = vld [vmem:[%s13 + $0x8] sm:$0xff]
        %v1976 = vld [vmem:[%s13 + $0x10] sm:$0xff]
        %v1977 = vld [vmem:[%s13 + $0x18] sm:$0xff]
        %1978 = vmatprep.subr.mxu0 0.0
        %1979 = vmatpush1.msra.mxu0 %v1974
        %1980 = vmatprep.subr.mxu0 0.0
        %1981 = vmatpush1.msra.mxu0 %v1975
        %1982 = vmatprep.subr.mxu0 0.0
        %1983 = vmatpush1.msra.mxu0 %v1976
        %1984 = vmatprep.subr.mxu0 0.0
        %1985 = vmatpush1.msra.mxu0 %v1977
        %1986 = vmatprep.subr.mxu0 0.0
        %1987 = vmatpush1.msra.mxu0 0.0
        %1988 = vmatprep.subr.mxu0 0.0
        %1989 = vmatpush1.msra.mxu0 0.0
        %1990 = vmatprep.subr.mxu0 0.0
        %1991 = vmatpush1.msra.mxu0 0.0
        %1992 = vmatprep.subr.mxu0 0.0
        %1993 = vmatpush1.msra.mxu0 0.0
        %1994 = vmatprep.subr.mxu0 0.0
        %1995 = vmatpush1.msra.mxu0 0.0
        %1996 = vmatprep.subr.mxu0 0.0
        %1997 = vmatpush1.msra.mxu0 0.0
        %1998 = vmatprep.subr.mxu0 0.0
        %1999 = vmatpush1.msra.mxu0 0.0
        %2000 = vmatprep.subr.mxu0 0.0
        %2001 = vmatpush1.msra.mxu0 0.0
        %2002 = vmatprep.subr.mxu0 0.0
        %2003 = vmatpush1.msra.mxu0 0.0
        %2004 = vmatprep.subr.mxu0 0.0
        %2005 = vmatpush1.msra.mxu0 0.0
        %2006 = vmatprep.subr.mxu0 0.0
        %2007 = vmatpush1.msra.mxu0 0.0
        %2008 = vmatprep.subr.mxu0 0.0
        %2009 = vmatpush1.msra.mxu0 0.0
        %2010 = vmatprep.subr.mxu0 0.0
        %2011 = vmatpush1.msra.mxu0 0.0
        %2012 = vmatprep.subr.mxu0 0.0
        %2013 = vmatpush1.msra.mxu0 0.0
        %2014 = vmatprep.subr.mxu0 0.0
        %2015 = vmatpush1.msra.mxu0 0.0
        %2016 = vmatprep.subr.mxu0 0.0
        %2017 = vmatpush1.msra.mxu0 0.0
        %2018 = vmatprep.subr.mxu0 0.0
        %2019 = vmatpush1.msra.mxu0 0.0
        %2020 = vmatprep.subr.mxu0 0.0
        %2021 = vmatpush1.msra.mxu0 0.0
        %2022 = vmatprep.subr.mxu0 0.0
        %2023 = vmatpush1.msra.mxu0 0.0
        %2024 = vmatprep.subr.mxu0 0.0
        %2025 = vmatpush1.msra.mxu0 0.0
        %2026 = vmatprep.subr.mxu0 0.0
        %2027 = vmatpush1.msra.mxu0 0.0
        %2028 = vmatprep.subr.mxu0 0.0
        %2029 = vmatpush1.msra.mxu0 0.0
        %2030 = vmatprep.subr.mxu0 0.0
        %2031 = vmatpush1.msra.mxu0 0.0
        %2032 = vmatprep.subr.mxu0 0.0
        %2033 = vmatpush1.msra.mxu0 0.0
        %2034 = vmatprep.subr.mxu0 0.0
        %2035 = vmatpush1.msra.mxu0 0.0
        %2036 = vmatprep.subr.mxu0 0.0
        %2037 = vmatpush1.msra.mxu0 0.0
        %2038 = vmatprep.subr.mxu0 0.0
        %2039 = vmatpush1.msra.mxu0 0.0
        %2040 = vmatprep.subr.mxu0 0.0
        %2041 = vmatpush1.msra.mxu0 0.0
        %2042 = vmatprep.mubr.f32.mxu0 0.0
        %2043 = vmatmul.mubr.f32.gmra.mrb[0].mxu0 %v1894
        %v2044 = vpop.f32.mrb[0].mxu0
        %v2045 = vadd.f32 0.0, %v2044
        %v2046 = vpop.f32.mrb[0].mxu0
        %2047 = vmatprep.mubr.f32.mxu0 0.0
        %2048 = vmatmul.mubr.f32.gmra.mrb[0].mxu0 %v1897
        %v2049 = vpop.f32.mrb[0].mxu0
        %v2050 = vadd.f32 0.0, %v2049
        %v2051 = vpop.f32.mrb[0].mxu0
        %2052 = vdwg.mxu0
        %v2053 = vld [vmem:[%s14] sm:$0xff]
        %v2054 = vld [vmem:[%s14 + $0x8] sm:$0xff]
        %v2055 = vld [vmem:[%s14 + $0x10] sm:$0xff]
        %v2056 = vld [vmem:[%s14 + $0x18] sm:$0xff]
        %v2057 = vld [vmem:[%s15] sm:$0x1]
        %v2059 = vlaneseq
        %v2060 = vshrl.u32 %v2059, 7
        %v2061 = vsub.s32 0, %v2060
        %v2062 = vrot.slane %v2057, %v2061
        %v2065 = vsel %vm1892, %v1671, 0
        %v2068 = vsel %vm1892, %v1672, 0
        %v2071 = vsel %vm1892, %v1673, 0
        %v2074 = vsel %vm1892, %v1674, 0
        %v2077 = vsel %vm1892, %v1675, 0
        %v2080 = vsel %vm1892, %v1676, 0
        %v2083 = vsel %vm1892, %v1677, 0
        %v2086 = vsel %vm1892, %v1678, 0
        %v2089 = vsel %vm1892, %v1679, 0
        %v2092 = vsel %vm1892, %v1680, 0
        %v2095 = vsel %vm1892, %v1681, 0
        %v2098 = vsel %vm1892, %v1682, 0
        %v2101 = vsel %vm1892, %v1683, 0
        %v2104 = vsel %vm1892, %v1684, 0
        %v2107 = vsel %vm1892, %v1685, 0
        %v2110 = vsel %vm1892, %v1686, 0
        %v2113 = vsel %vm1892, %v1687, 0
        %v2116 = vsel %vm1892, %v1688, 0
        %v2119 = vsel %vm1892, %v1689, 0
        %v2122 = vsel %vm1892, %v1690, 0
        %v2125 = vsel %vm1892, %v1691, 0
        %v2128 = vsel %vm1892, %v1692, 0
        %v2131 = vsel %vm1892, %v1693, 0
        %v2134 = vsel %vm1892, %v1694, 0
        %v2137 = vsel %vm1892, %v1695, 0
        %v2140 = vsel %vm1892, %v1696, 0
        %v2143 = vsel %vm1892, %v1697, 0
        %v2146 = vsel %vm1892, %v1698, 0
        %v2149 = vsel %vm1892, %v1699, 0
        %v2152 = vsel %vm1892, %v1700, 0
        %v2155 = vsel %vm1892, %v1701, 0
        %v2158 = vsel %vm1892, %v1702, 0
        %2160 = vmatprep.subr.mxu0 0.0
        %2161 = vmatpush1.msra.mxu0 %v2053
        %2162 = vmatprep.subr.mxu0 0.0
        %2163 = vmatpush1.msra.mxu0 %v2054
        %2164 = vmatprep.subr.mxu0 0.0
        %2165 = vmatpush1.msra.mxu0 %v2055
        %2166 = vmatprep.subr.mxu0 0.0
        %2167 = vmatpush1.msra.mxu0 %v2056
        %2168 = vmatprep.subr.mxu0 0.0
        %2169 = vmatpush1.msra.mxu0 0.0
        %2170 = vmatprep.subr.mxu0 0.0
        %2171 = vmatpush1.msra.mxu0 0.0
        %2172 = vmatprep.subr.mxu0 0.0
        %2173 = vmatpush1.msra.mxu0 0.0
        %2174 = vmatprep.subr.mxu0 0.0
        %2175 = vmatpush1.msra.mxu0 0.0
        %2176 = vmatprep.subr.mxu0 0.0
        %2177 = vmatpush1.msra.mxu0 0.0
        %2178 = vmatprep.subr.mxu0 0.0
        %2179 = vmatpush1.msra.mxu0 0.0
        %2180 = vmatprep.subr.mxu0 0.0
        %2181 = vmatpush1.msra.mxu0 0.0
        %2182 = vmatprep.subr.mxu0 0.0
        %2183 = vmatpush1.msra.mxu0 0.0
        %2184 = vmatprep.subr.mxu0 0.0
        %2185 = vmatpush1.msra.mxu0 0.0
        %2186 = vmatprep.subr.mxu0 0.0
        %2187 = vmatpush1.msra.mxu0 0.0
        %2188 = vmatprep.subr.mxu0 0.0
        %2189 = vmatpush1.msra.mxu0 0.0
        %2190 = vmatprep.subr.mxu0 0.0
        %2191 = vmatpush1.msra.mxu0 0.0
        %2192 = vmatprep.subr.mxu0 0.0
        %2193 = vmatpush1.msra.mxu0 0.0
        %2194 = vmatprep.subr.mxu0 0.0
        %2195 = vmatpush1.msra.mxu0 0.0
        %2196 = vmatprep.subr.mxu0 0.0
        %2197 = vmatpush1.msra.mxu0 0.0
        %2198 = vmatprep.subr.mxu0 0.0
        %2199 = vmatpush1.msra.mxu0 0.0
        %2200 = vmatprep.subr.mxu0 0.0
        %2201 = vmatpush1.msra.mxu0 0.0
        %2202 = vmatprep.subr.mxu0 0.0
        %2203 = vmatpush1.msra.mxu0 0.0
        %2204 = vmatprep.subr.mxu0 0.0
        %2205 = vmatpush1.msra.mxu0 0.0
        %2206 = vmatprep.subr.mxu0 0.0
        %2207 = vmatpush1.msra.mxu0 0.0
        %2208 = vmatprep.subr.mxu0 0.0
        %2209 = vmatpush1.msra.mxu0 0.0
        %2210 = vmatprep.subr.mxu0 0.0
        %2211 = vmatpush1.msra.mxu0 0.0
        %2212 = vmatprep.subr.mxu0 0.0
        %2213 = vmatpush1.msra.mxu0 0.0
        %2214 = vmatprep.subr.mxu0 0.0
        %2215 = vmatpush1.msra.mxu0 0.0
        %2216 = vmatprep.subr.mxu0 0.0
        %2217 = vmatpush1.msra.mxu0 0.0
        %2218 = vmatprep.subr.mxu0 0.0
        %2219 = vmatpush1.msra.mxu0 0.0
        %2220 = vmatprep.subr.mxu0 0.0
        %2221 = vmatpush1.msra.mxu0 0.0
        %2222 = vmatprep.subr.mxu0 0.0
        %2223 = vmatpush1.msra.mxu0 0.0
        %2224 = vmatprep.mubr.f32.mxu0 0.0
        %2225 = vmatmul.mubr.f32.gmra.mrb[0].mxu0 %v2065
        %v2226 = vpop.f32.mrb[0].mxu0
        %v2227 = vadd.f32 %v2062, %v2226
        %v2228 = vpop.f32.mrb[0].mxu0
        %2229 = vmatprep.mubr.f32.mxu0 0.0
        %2230 = vmatmul.mubr.f32.gmra.mrb[0].mxu0 %v2068
        %v2231 = vpop.f32.mrb[0].mxu0
        %v2232 = vadd.f32 %v2062, %v2231
        %v2233 = vpop.f32.mrb[0].mxu0
        %2234 = vmatprep.mubr.f32.mxu0 0.0
        %2235 = vmatmul.mubr.f32.gmra.mrb[0].mxu0 %v2071
        %v2236 = vpop.f32.mrb[0].mxu0
        %v2237 = vadd.f32 %v2062, %v2236
        %v2238 = vpop.f32.mrb[0].mxu0
        %2239 = vmatprep.mubr.f32.mxu0 0.0
        %2240 = vmatmul.mubr.f32.gmra.mrb[0].mxu0 %v2074
        %v2241 = vpop.f32.mrb[0].mxu0
        %v2242 = vadd.f32 %v2062, %v2241
        %v2243 = vpop.f32.mrb[0].mxu0
        %2244 = vmatprep.mubr.f32.mxu0 0.0
        %2245 = vmatmul.mubr.f32.gmra.mrb[0].mxu0 %v2077
        %v2246 = vpop.f32.mrb[0].mxu0
        %v2247 = vadd.f32 %v2062, %v2246
        %v2248 = vpop.f32.mrb[0].mxu0
        %2249 = vmatprep.mubr.f32.mxu0 0.0
        %2250 = vmatmul.mubr.f32.gmra.mrb[0].mxu0 %v2080
        %v2251 = vpop.f32.mrb[0].mxu0
        %v2252 = vadd.f32 %v2062, %v2251
        %v2253 = vpop.f32.mrb[0].mxu0
        %2254 = vmatprep.mubr.f32.mxu0 0.0
        %2255 = vmatmul.mubr.f32.gmra.mrb[0].mxu0 %v2083
        %v2256 = vpop.f32.mrb[0].mxu0
        %v2257 = vadd.f32 %v2062, %v2256
        %v2258 = vpop.f32.mrb[0].mxu0
        %2259 = vmatprep.mubr.f32.mxu0 0.0
        %2260 = vmatmul.mubr.f32.gmra.mrb[0].mxu0 %v2086
        %v2261 = vpop.f32.mrb[0].mxu0
        %v2262 = vadd.f32 %v2062, %v2261
        %v2263 = vpop.f32.mrb[0].mxu0
        %2264 = vmatprep.mubr.f32.mxu0 0.0
        %2265 = vmatmul.mubr.f32.gmra.mrb[0].mxu0 %v2089
        %v2266 = vpop.f32.mrb[0].mxu0
        %v2267 = vadd.f32 %v2062, %v2266
        %v2268 = vpop.f32.mrb[0].mxu0
        %2269 = vmatprep.mubr.f32.mxu0 0.0
        %2270 = vmatmul.mubr.f32.gmra.mrb[0].mxu0 %v2092
        %v2271 = vpop.f32.mrb[0].mxu0
        %v2272 = vadd.f32 %v2062, %v2271
        %v2273 = vpop.f32.mrb[0].mxu0
        %2274 = vmatprep.mubr.f32.mxu0 0.0
        %2275 = vmatmul.mubr.f32.gmra.mrb[0].mxu0 %v2095
        %v2276 = vpop.f32.mrb[0].mxu0
        %v2277 = vadd.f32 %v2062, %v2276
        %v2278 = vpop.f32.mrb[0].mxu0
        %2279 = vmatprep.mubr.f32.mxu0 0.0
        %2280 = vmatmul.mubr.f32.gmra.mrb[0].mxu0 %v2098
        %v2281 = vpop.f32.mrb[0].mxu0
        %v2282 = vadd.f32 %v2062, %v2281
        %v2283 = vpop.f32.mrb[0].mxu0
        %2284 = vmatprep.mubr.f32.mxu0 0.0
        %2285 = vmatmul.mubr.f32.gmra.mrb[0].mxu0 %v2101
        %v2286 = vpop.f32.mrb[0].mxu0
        %v2287 = vadd.f32 %v2062, %v2286
        %v2288 = vpop.f32.mrb[0].mxu0
        %2289 = vmatprep.mubr.f32.mxu0 0.0
        %2290 = vmatmul.mubr.f32.gmra.mrb[0].mxu0 %v2104
        %v2291 = vpop.f32.mrb[0].mxu0
        %v2292 = vadd.f32 %v2062, %v2291
        %v2293 = vpop.f32.mrb[0].mxu0
        %2294 = vmatprep.mubr.f32.mxu0 0.0
        %2295 = vmatmul.mubr.f32.gmra.mrb[0].mxu0 %v2107
        %v2296 = vpop.f32.mrb[0].mxu0
        %v2297 = vadd.f32 %v2062, %v2296
        %v2298 = vpop.f32.mrb[0].mxu0
        %2299 = vmatprep.mubr.f32.mxu0 0.0
        %2300 = vmatmul.mubr.f32.gmra.mrb[0].mxu0 %v2110
        %v2301 = vpop.f32.mrb[0].mxu0
        %v2302 = vadd.f32 %v2062, %v2301
        %v2303 = vpop.f32.mrb[0].mxu0
        %2304 = vmatprep.mubr.f32.mxu0 0.0
        %2305 = vmatmul.mubr.f32.gmra.mrb[0].mxu0 %v2113
        %v2306 = vpop.f32.mrb[0].mxu0
        %v2307 = vadd.f32 %v2062, %v2306
        %v2308 = vpop.f32.mrb[0].mxu0
        %2309 = vmatprep.mubr.f32.mxu0 0.0
        %2310 = vmatmul.mubr.f32.gmra.mrb[0].mxu0 %v2116
        %v2311 = vpop.f32.mrb[0].mxu0
        %v2312 = vadd.f32 %v2062, %v2311
        %v2313 = vpop.f32.mrb[0].mxu0
        %2314 = vmatprep.mubr.f32.mxu0 0.0
        %2315 = vmatmul.mubr.f32.gmra.mrb[0].mxu0 %v2119
        %v2316 = vpop.f32.mrb[0].mxu0
        %v2317 = vadd.f32 %v2062, %v2316
        %v2318 = vpop.f32.mrb[0].mxu0
        %2319 = vmatprep.mubr.f32.mxu0 0.0
        %2320 = vmatmul.mubr.f32.gmra.mrb[0].mxu0 %v2122
        %v2321 = vpop.f32.mrb[0].mxu0
        %v2322 = vadd.f32 %v2062, %v2321
        %v2323 = vpop.f32.mrb[0].mxu0
        %2324 = vmatprep.mubr.f32.mxu0 0.0
        %2325 = vmatmul.mubr.f32.gmra.mrb[0].mxu0 %v2125
        %v2326 = vpop.f32.mrb[0].mxu0
        %v2327 = vadd.f32 %v2062, %v2326
        %v2328 = vpop.f32.mrb[0].mxu0
        %2329 = vmatprep.mubr.f32.mxu0 0.0
        %2330 = vmatmul.mubr.f32.gmra.mrb[0].mxu0 %v2128
        %v2331 = vpop.f32.mrb[0].mxu0
        %v2332 = vadd.f32 %v2062, %v2331
        %v2333 = vpop.f32.mrb[0].mxu0
        %2334 = vmatprep.mubr.f32.mxu0 0.0
        %2335 = vmatmul.mubr.f32.gmra.mrb[0].mxu0 %v2131
        %v2336 = vpop.f32.mrb[0].mxu0
        %v2337 = vadd.f32 %v2062, %v2336
        %v2338 = vpop.f32.mrb[0].mxu0
        %2339 = vmatprep.mubr.f32.mxu0 0.0
        %2340 = vmatmul.mubr.f32.gmra.mrb[0].mxu0 %v2134
        %v2341 = vpop.f32.mrb[0].mxu0
        %v2342 = vadd.f32 %v2062, %v2341
        %v2343 = vpop.f32.mrb[0].mxu0
        %2344 = vmatprep.mubr.f32.mxu0 0.0
        %2345 = vmatmul.mubr.f32.gmra.mrb[0].mxu0 %v2137
        %v2346 = vpop.f32.mrb[0].mxu0
        %v2347 = vadd.f32 %v2062, %v2346
        %v2348 = vpop.f32.mrb[0].mxu0
        %2349 = vmatprep.mubr.f32.mxu0 0.0
        %2350 = vmatmul.mubr.f32.gmra.mrb[0].mxu0 %v2140
        %v2351 = vpop.f32.mrb[0].mxu0
        %v2352 = vadd.f32 %v2062, %v2351
        %v2353 = vpop.f32.mrb[0].mxu0
        %2354 = vmatprep.mubr.f32.mxu0 0.0
        %2355 = vmatmul.mubr.f32.gmra.mrb[0].mxu0 %v2143
        %v2356 = vpop.f32.mrb[0].mxu0
        %v2357 = vadd.f32 %v2062, %v2356
        %v2358 = vpop.f32.mrb[0].mxu0
        %2359 = vmatprep.mubr.f32.mxu0 0.0
        %2360 = vmatmul.mubr.f32.gmra.mrb[0].mxu0 %v2146
        %v2361 = vpop.f32.mrb[0].mxu0
        %v2362 = vadd.f32 %v2062, %v2361
        %v2363 = vpop.f32.mrb[0].mxu0
        %2364 = vmatprep.mubr.f32.mxu0 0.0
        %2365 = vmatmul.mubr.f32.gmra.mrb[0].mxu0 %v2149
        %v2366 = vpop.f32.mrb[0].mxu0
        %v2367 = vadd.f32 %v2062, %v2366
        %v2368 = vpop.f32.mrb[0].mxu0
        %2369 = vmatprep.mubr.f32.mxu0 0.0
        %2370 = vmatmul.mubr.f32.gmra.mrb[0].mxu0 %v2152
        %v2371 = vpop.f32.mrb[0].mxu0
        %v2372 = vadd.f32 %v2062, %v2371
        %v2373 = vpop.f32.mrb[0].mxu0
        %2374 = vmatprep.mubr.f32.mxu0 0.0
        %2375 = vmatmul.mubr.f32.gmra.mrb[0].mxu0 %v2155
        %v2376 = vpop.f32.mrb[0].mxu0
        %v2377 = vadd.f32 %v2062, %v2376
        %v2378 = vpop.f32.mrb[0].mxu0
        %2379 = vmatprep.mubr.f32.mxu0 0.0
        %2380 = vmatmul.mubr.f32.gmra.mrb[0].mxu0 %v2158
        %v2381 = vpop.f32.mrb[0].mxu0
        %v2382 = vadd.f32 %v2062, %v2381
        %v2383 = vpop.f32.mrb[0].mxu0
        %2384 = vdwg.mxu0
        %v2387 = vcombine.high %v2045, %v2045
        %v2389 = vunpack.c.l.s4 1966171168
        %v2390 = vunpack.c.0.s8 %v2389
        %v2391 = vlaneseq
        %v2392 = vshrl.u32 %v2391, 7
        %v2393 = vsub.s32 %v2390, %v2392
        %v2394 = vrot.slane %v2045, %v2393
        %v2396 = vunpack.c.l.s4 1966171168
        %v2397 = vunpack.c.0.s8 %v2396
        %v2398 = vlaneseq
        %v2399 = vshrl.u32 %v2398, 7
        %v2400 = vsub.s32 %v2397, %v2399
        %v2401 = vrot.slane %v2387, %v2400
        %v2402 = vcombine.high %v2394, %v2394
        %v2403 = vcombine.high %v2401, %v2401
        %v2405 = vunpack.c.l.s4 1966171168
        %v2406 = vunpack.c.0.s8 %v2405
        %v2407 = vlaneseq
        %v2408 = vshrl.u32 %v2407, 7
        %v2409 = vsub.s32 %v2406, %v2408
        %v2410 = vrot.slane %v2394, %v2409
        %v2412 = vunpack.c.l.s4 1966171168
        %v2413 = vunpack.c.0.s8 %v2412
        %v2414 = vlaneseq
        %v2415 = vshrl.u32 %v2414, 7
        %v2416 = vsub.s32 %v2413, %v2415
        %v2417 = vrot.slane %v2401, %v2416
        %v2419 = vunpack.c.l.s4 1966171168
        %v2420 = vunpack.c.0.s8 %v2419
        %v2421 = vlaneseq
        %v2422 = vshrl.u32 %v2421, 7
        %v2423 = vsub.s32 %v2420, %v2422
        %v2424 = vrot.slane %v2402, %v2423
        %v2426 = vunpack.c.l.s4 1966171168
        %v2427 = vunpack.c.0.s8 %v2426
        %v2428 = vlaneseq
        %v2429 = vshrl.u32 %v2428, 7
        %v2430 = vsub.s32 %v2427, %v2429
        %v2431 = vrot.slane %v2403, %v2430
        %v2432 = vcombine.high %v2410, %v2410
        %v2433 = vcombine.high %v2417, %v2417
        %v2434 = vcombine.high %v2424, %v2424
        %v2435 = vcombine.high %v2431, %v2431
        %v2436 = vcombine.high %v2050, %v2050
        %v2438 = vunpack.c.l.s4 1966171168
        %v2439 = vunpack.c.0.s8 %v2438
        %v2440 = vlaneseq
        %v2441 = vshrl.u32 %v2440, 7
        %v2442 = vsub.s32 %v2439, %v2441
        %v2443 = vrot.slane %v2050, %v2442
        %v2445 = vunpack.c.l.s4 1966171168
        %v2446 = vunpack.c.0.s8 %v2445
        %v2447 = vlaneseq
        %v2448 = vshrl.u32 %v2447, 7
        %v2449 = vsub.s32 %v2446, %v2448
        %v2450 = vrot.slane %v2436, %v2449
        %v2451 = vcombine.high %v2443, %v2443
        %v2452 = vcombine.high %v2450, %v2450
        %v2454 = vunpack.c.l.s4 1966171168
        %v2455 = vunpack.c.0.s8 %v2454
        %v2456 = vlaneseq
        %v2457 = vshrl.u32 %v2456, 7
        %v2458 = vsub.s32 %v2455, %v2457
        %v2459 = vrot.slane %v2443, %v2458
        %v2461 = vunpack.c.l.s4 1966171168
        %v2462 = vunpack.c.0.s8 %v2461
        %v2463 = vlaneseq
        %v2464 = vshrl.u32 %v2463, 7
        %v2465 = vsub.s32 %v2462, %v2464
        %v2466 = vrot.slane %v2450, %v2465
        %v2468 = vunpack.c.l.s4 1966171168
        %v2469 = vunpack.c.0.s8 %v2468
        %v2470 = vlaneseq
        %v2471 = vshrl.u32 %v2470, 7
        %v2472 = vsub.s32 %v2469, %v2471
        %v2473 = vrot.slane %v2451, %v2472
        %v2475 = vunpack.c.l.s4 1966171168
        %v2476 = vunpack.c.0.s8 %v2475
        %v2477 = vlaneseq
        %v2478 = vshrl.u32 %v2477, 7
        %v2479 = vsub.s32 %v2476, %v2478
        %v2480 = vrot.slane %v2452, %v2479
        %v2481 = vcombine.high %v2459, %v2459
        %v2482 = vcombine.high %v2466, %v2466
        %v2483 = vcombine.high %v2473, %v2473
        %v2484 = vcombine.high %v2480, %v2480
        %v2485 = vlaneseq
        %v2486 = vshrl.u32 %v2485, 7
        %v2487 = vsub.s32 0, %v2486
        %v2488 = vrot.slane %v2410, %v2487
        %v2489 = vlaneseq
        %v2490 = vshrl.u32 %v2489, 7
        %v2491 = vsub.s32 0, %v2490
        %v2492 = vrot.slane %v2424, %v2491
        %v2493 = vlaneseq
        %v2494 = vshrl.u32 %v2493, 7
        %v2495 = vsub.s32 0, %v2494
        %v2496 = vrot.slane %v2432, %v2495
        %v2497 = vlaneseq
        %v2498 = vshrl.u32 %v2497, 7
        %v2499 = vsub.s32 0, %v2498
        %v2500 = vrot.slane %v2434, %v2499
        %v2501 = vlaneseq
        %v2502 = vshrl.u32 %v2501, 7
        %v2503 = vsub.s32 0, %v2502
        %v2504 = vrot.slane %v2417, %v2503
        %v2505 = vlaneseq
        %v2506 = vshrl.u32 %v2505, 7
        %v2507 = vsub.s32 0, %v2506
        %v2508 = vrot.slane %v2431, %v2507
        %v2509 = vlaneseq
        %v2510 = vshrl.u32 %v2509, 7
        %v2511 = vsub.s32 0, %v2510
        %v2512 = vrot.slane %v2433, %v2511
        %v2513 = vlaneseq
        %v2514 = vshrl.u32 %v2513, 7
        %v2515 = vsub.s32 0, %v2514
        %v2516 = vrot.slane %v2435, %v2515
        %v2517 = vlaneseq
        %v2518 = vshrl.u32 %v2517, 7
        %v2519 = vsub.s32 0, %v2518
        %v2520 = vrot.slane %v2459, %v2519
        %v2521 = vlaneseq
        %v2522 = vshrl.u32 %v2521, 7
        %v2523 = vsub.s32 0, %v2522
        %v2524 = vrot.slane %v2473, %v2523
        %v2525 = vlaneseq
        %v2526 = vshrl.u32 %v2525, 7
        %v2527 = vsub.s32 0, %v2526
        %v2528 = vrot.slane %v2481, %v2527
        %v2529 = vlaneseq
        %v2530 = vshrl.u32 %v2529, 7
        %v2531 = vsub.s32 0, %v2530
        %v2532 = vrot.slane %v2483, %v2531
        %v2533 = vlaneseq
        %v2534 = vshrl.u32 %v2533, 7
        %v2535 = vsub.s32 0, %v2534
        %v2536 = vrot.slane %v2466, %v2535
        %v2537 = vlaneseq
        %v2538 = vshrl.u32 %v2537, 7
        %v2539 = vsub.s32 0, %v2538
        %v2540 = vrot.slane %v2480, %v2539
        %v2541 = vlaneseq
        %v2542 = vshrl.u32 %v2541, 7
        %v2543 = vsub.s32 0, %v2542
        %v2544 = vrot.slane %v2482, %v2543
        %v2545 = vlaneseq
        %v2546 = vshrl.u32 %v2545, 7
        %v2547 = vsub.s32 0, %v2546
        %v2548 = vrot.slane %v2484, %v2547
        %2565 = vrot.lane.b32.xlu0 %v2045, 96
        %v2566 = vpop.permute.xlu0 %2565
        %2567 = vrot.lane.b32.xlu0 %v2050, 96
        %v2568 = vpop.permute.xlu0 %2567
        %v2571 = vadd.f32 %v2488, %v2566
        %v2572 = vadd.f32 %v2488, %v2568
        %v2573 = vadd.f32 %v2492, %v2566
        %v2574 = vadd.f32 %v2492, %v2568
        %v2575 = vadd.f32 %v2496, %v2566
        %v2576 = vadd.f32 %v2496, %v2568
        %v2577 = vadd.f32 %v2500, %v2566
        %v2578 = vadd.f32 %v2500, %v2568
        %v2579 = vadd.f32 %v2504, %v2566
        %v2580 = vadd.f32 %v2504, %v2568
        %v2581 = vadd.f32 %v2508, %v2566
        %v2582 = vadd.f32 %v2508, %v2568
        %v2583 = vadd.f32 %v2512, %v2566
        %v2584 = vadd.f32 %v2512, %v2568
        %v2585 = vadd.f32 %v2516, %v2566
        %v2586 = vadd.f32 %v2516, %v2568
        %v2587 = vadd.f32 %v2520, %v2566
        %v2588 = vadd.f32 %v2520, %v2568
        %v2589 = vadd.f32 %v2524, %v2566
        %v2590 = vadd.f32 %v2524, %v2568
        %v2591 = vadd.f32 %v2528, %v2566
        %v2592 = vadd.f32 %v2528, %v2568
        %v2593 = vadd.f32 %v2532, %v2566
        %v2594 = vadd.f32 %v2532, %v2568
        %v2595 = vadd.f32 %v2536, %v2566
        %v2596 = vadd.f32 %v2536, %v2568
        %v2597 = vadd.f32 %v2540, %v2566
        %v2598 = vadd.f32 %v2540, %v2568
        %v2599 = vadd.f32 %v2544, %v2566
        %v2600 = vadd.f32 %v2544, %v2568
        %v2601 = vadd.f32 %v2548, %v2566
        %v2602 = vadd.f32 %v2548, %v2568
        %v2603 = vadd.f32 %v2571, %v2227
        %v2604 = vadd.f32 %v2572, %v2232
        %v2605 = vadd.f32 %v2573, %v2237
        %v2606 = vadd.f32 %v2574, %v2242
        %v2607 = vadd.f32 %v2575, %v2247
        %v2608 = vadd.f32 %v2576, %v2252
        %v2609 = vadd.f32 %v2577, %v2257
        %v2610 = vadd.f32 %v2578, %v2262
        %v2611 = vadd.f32 %v2579, %v2267
        %v2612 = vadd.f32 %v2580, %v2272
        %v2613 = vadd.f32 %v2581, %v2277
        %v2614 = vadd.f32 %v2582, %v2282
        %v2615 = vadd.f32 %v2583, %v2287
        %v2616 = vadd.f32 %v2584, %v2292
        %v2617 = vadd.f32 %v2585, %v2297
        %v2618 = vadd.f32 %v2586, %v2302
        %v2619 = vadd.f32 %v2587, %v2307
        %v2620 = vadd.f32 %v2588, %v2312
        %v2621 = vadd.f32 %v2589, %v2317
        %v2622 = vadd.f32 %v2590, %v2322
        %v2623 = vadd.f32 %v2591, %v2327
        %v2624 = vadd.f32 %v2592, %v2332
        %v2625 = vadd.f32 %v2593, %v2337
        %v2626 = vadd.f32 %v2594, %v2342
        %v2627 = vadd.f32 %v2595, %v2347
        %v2628 = vadd.f32 %v2596, %v2352
        %v2629 = vadd.f32 %v2597, %v2357
        %v2630 = vadd.f32 %v2598, %v2362
        %v2631 = vadd.f32 %v2599, %v2367
        %v2632 = vadd.f32 %v2600, %v2372
        %v2633 = vadd.f32 %v2601, %v2377
        %v2634 = vadd.f32 %v2602, %v2382
        %v2635 = vxor.u32 %v2603, 2147483648
        %v2636 = vxor.u32 %v2604, 2147483648
        %v2637 = vxor.u32 %v2605, 2147483648
        %v2638 = vxor.u32 %v2606, 2147483648
        %v2639 = vxor.u32 %v2607, 2147483648
        %v2640 = vxor.u32 %v2608, 2147483648
        %v2641 = vxor.u32 %v2609, 2147483648
        %v2642 = vxor.u32 %v2610, 2147483648
        %v2643 = vxor.u32 %v2611, 2147483648
        %v2644 = vxor.u32 %v2612, 2147483648
        %v2645 = vxor.u32 %v2613, 2147483648
        %v2646 = vxor.u32 %v2614, 2147483648
        %v2647 = vxor.u32 %v2615, 2147483648
        %v2648 = vxor.u32 %v2616, 2147483648
        %v2649 = vxor.u32 %v2617, 2147483648
        %v2650 = vxor.u32 %v2618, 2147483648
        %v2651 = vxor.u32 %v2619, 2147483648
        %v2652 = vxor.u32 %v2620, 2147483648
        %v2653 = vxor.u32 %v2621, 2147483648
        %v2654 = vxor.u32 %v2622, 2147483648
        %v2655 = vxor.u32 %v2623, 2147483648
        %v2656 = vxor.u32 %v2624, 2147483648
        %v2657 = vxor.u32 %v2625, 2147483648
        %v2658 = vxor.u32 %v2626, 2147483648
        %v2659 = vxor.u32 %v2627, 2147483648
        %v2660 = vxor.u32 %v2628, 2147483648
        %v2661 = vxor.u32 %v2629, 2147483648
        %v2662 = vxor.u32 %v2630, 2147483648
        %v2663 = vxor.u32 %v2631, 2147483648
        %v2664 = vxor.u32 %v2632, 2147483648
        %v2665 = vxor.u32 %v2633, 2147483648
        %v2666 = vxor.u32 %v2634, 2147483648
        %v2667 = vmul.f32 %v2635, 1.442695
        %v2668 = vpow.pop %v2667
        %v2669 = vmul.f32 %v2636, 1.442695
        %v2670 = vpow.pop %v2669
        %v2671 = vmul.f32 %v2637, 1.442695
        %v2672 = vpow.pop %v2671
        %v2673 = vmul.f32 %v2638, 1.442695
        %v2674 = vpow.pop %v2673
        %v2675 = vmul.f32 %v2639, 1.442695
        %v2676 = vpow.pop %v2675
        %v2677 = vmul.f32 %v2640, 1.442695
        %v2678 = vpow.pop %v2677
        %v2679 = vmul.f32 %v2641, 1.442695
        %v2680 = vpow.pop %v2679
        %v2681 = vmul.f32 %v2642, 1.442695
        %v2682 = vpow.pop %v2681
        %v2683 = vmul.f32 %v2643, 1.442695
        %v2684 = vpow.pop %v2683
        %v2685 = vmul.f32 %v2644, 1.442695
        %v2686 = vpow.pop %v2685
        %v2687 = vmul.f32 %v2645, 1.442695
        %v2688 = vpow.pop %v2687
        %v2689 = vmul.f32 %v2646, 1.442695
        %v2690 = vpow.pop %v2689
        %v2691 = vmul.f32 %v2647, 1.442695
        %v2692 = vpow.pop %v2691
        %v2693 = vmul.f32 %v2648, 1.442695
        %v2694 = vpow.pop %v2693
        %v2695 = vmul.f32 %v2649, 1.442695
        %v2696 = vpow.pop %v2695
        %v2697 = vmul.f32 %v2650, 1.442695
        %v2698 = vpow.pop %v2697
        %v2699 = vmul.f32 %v2651, 1.442695
        %v2700 = vpow.pop %v2699
        %v2701 = vmul.f32 %v2652, 1.442695
        %v2702 = vpow.pop %v2701
        %v2703 = vmul.f32 %v2653, 1.442695
        %v2704 = vpow.pop %v2703
        %v2705 = vmul.f32 %v2654, 1.442695
        %v2706 = vpow.pop %v2705
        %v2707 = vmul.f32 %v2655, 1.442695
        %v2708 = vpow.pop %v2707
        %v2709 = vmul.f32 %v2656, 1.442695
        %v2710 = vpow.pop %v2709
        %v2711 = vmul.f32 %v2657, 1.442695
        %v2712 = vpow.pop %v2711
        %v2713 = vmul.f32 %v2658, 1.442695
        %v2714 = vpow.pop %v2713
        %v2715 = vmul.f32 %v2659, 1.442695
        %v2716 = vpow.pop %v2715
        %v2717 = vmul.f32 %v2660, 1.442695
        %v2718 = vpow.pop %v2717
        %v2719 = vmul.f32 %v2661, 1.442695
        %v2720 = vpow.pop %v2719
        %v2721 = vmul.f32 %v2662, 1.442695
        %v2722 = vpow.pop %v2721
        %v2723 = vmul.f32 %v2663, 1.442695
        %v2724 = vpow.pop %v2723
        %v2725 = vmul.f32 %v2664, 1.442695
        %v2726 = vpow.pop %v2725
        %v2727 = vmul.f32 %v2665, 1.442695
        %v2728 = vpow.pop %v2727
        %v2729 = vmul.f32 %v2666, 1.442695
        %v2730 = vpow.pop %v2729
        %v2731 = vadd.f32 %v2668, 1.0
        %v2732 = vadd.f32 %v2670, 1.0
        %v2733 = vadd.f32 %v2672, 1.0
        %v2734 = vadd.f32 %v2674, 1.0
        %v2735 = vadd.f32 %v2676, 1.0
        %v2736 = vadd.f32 %v2678, 1.0
        %v2737 = vadd.f32 %v2680, 1.0
        %v2738 = vadd.f32 %v2682, 1.0
        %v2739 = vadd.f32 %v2684, 1.0
        %v2740 = vadd.f32 %v2686, 1.0
        %v2741 = vadd.f32 %v2688, 1.0
        %v2742 = vadd.f32 %v2690, 1.0
        %v2743 = vadd.f32 %v2692, 1.0
        %v2744 = vadd.f32 %v2694, 1.0
        %v2745 = vadd.f32 %v2696, 1.0
        %v2746 = vadd.f32 %v2698, 1.0
        %v2747 = vadd.f32 %v2700, 1.0
        %v2748 = vadd.f32 %v2702, 1.0
        %v2749 = vadd.f32 %v2704, 1.0
        %v2750 = vadd.f32 %v2706, 1.0
        %v2751 = vadd.f32 %v2708, 1.0
        %v2752 = vadd.f32 %v2710, 1.0
        %v2753 = vadd.f32 %v2712, 1.0
        %v2754 = vadd.f32 %v2714, 1.0
        %v2755 = vadd.f32 %v2716, 1.0
        %v2756 = vadd.f32 %v2718, 1.0
        %v2757 = vadd.f32 %v2720, 1.0
        %v2758 = vadd.f32 %v2722, 1.0
        %v2759 = vadd.f32 %v2724, 1.0
        %v2760 = vadd.f32 %v2726, 1.0
        %v2761 = vadd.f32 %v2728, 1.0
        %v2762 = vadd.f32 %v2730, 1.0
        %v2763 = vrcp.pop %v2731
        %v2764 = vmul.f32 1.0, %v2763
        %v2765 = vrcp.pop %v2732
        %v2766 = vmul.f32 1.0, %v2765
        %v2767 = vrcp.pop %v2733
        %v2768 = vmul.f32 1.0, %v2767
        %v2769 = vrcp.pop %v2734
        %v2770 = vmul.f32 1.0, %v2769
        %v2771 = vrcp.pop %v2735
        %v2772 = vmul.f32 1.0, %v2771
        %v2773 = vrcp.pop %v2736
        %v2774 = vmul.f32 1.0, %v2773
        %v2775 = vrcp.pop %v2737
        %v2776 = vmul.f32 1.0, %v2775
        %v2777 = vrcp.pop %v2738
        %v2778 = vmul.f32 1.0, %v2777
        %v2779 = vrcp.pop %v2739
        %v2780 = vmul.f32 1.0, %v2779
        %v2781 = vrcp.pop %v2740
        %v2782 = vmul.f32 1.0, %v2781
        %v2783 = vrcp.pop %v2741
        %v2784 = vmul.f32 1.0, %v2783
        %v2785 = vrcp.pop %v2742
        %v2786 = vmul.f32 1.0, %v2785
        %v2787 = vrcp.pop %v2743
        %v2788 = vmul.f32 1.0, %v2787
        %v2789 = vrcp.pop %v2744
        %v2790 = vmul.f32 1.0, %v2789
        %v2791 = vrcp.pop %v2745
        %v2792 = vmul.f32 1.0, %v2791
        %v2793 = vrcp.pop %v2746
        %v2794 = vmul.f32 1.0, %v2793
        %v2795 = vrcp.pop %v2747
        %v2796 = vmul.f32 1.0, %v2795
        %v2797 = vrcp.pop %v2748
        %v2798 = vmul.f32 1.0, %v2797
        %v2799 = vrcp.pop %v2749
        %v2800 = vmul.f32 1.0, %v2799
        %v2801 = vrcp.pop %v2750
        %v2802 = vmul.f32 1.0, %v2801
        %v2803 = vrcp.pop %v2751
        %v2804 = vmul.f32 1.0, %v2803
        %v2805 = vrcp.pop %v2752
        %v2806 = vmul.f32 1.0, %v2805
        %v2807 = vrcp.pop %v2753
        %v2808 = vmul.f32 1.0, %v2807
        %v2809 = vrcp.pop %v2754
        %v2810 = vmul.f32 1.0, %v2809
        %v2811 = vrcp.pop %v2755
        %v2812 = vmul.f32 1.0, %v2811
        %v2813 = vrcp.pop %v2756
        %v2814 = vmul.f32 1.0, %v2813
        %v2815 = vrcp.pop %v2757
        %v2816 = vmul.f32 1.0, %v2815
        %v2817 = vrcp.pop %v2758
        %v2818 = vmul.f32 1.0, %v2817
        %v2819 = vrcp.pop %v2759
        %v2820 = vmul.f32 1.0, %v2819
        %v2821 = vrcp.pop %v2760
        %v2822 = vmul.f32 1.0, %v2821
        %v2823 = vrcp.pop %v2761
        %v2824 = vmul.f32 1.0, %v2823
        %v2825 = vrcp.pop %v2762
        %v2826 = vmul.f32 1.0, %v2825
        %v2827 = vmul.f32 %v2764, %v1711
        %v2828 = vmul.f32 %v2766, %v1715
        %v2829 = vmul.f32 %v2768, %v1722
        %v2830 = vmul.f32 %v2770, %v1726
        %v2831 = vmul.f32 %v2772, %v1733
        %v2832 = vmul.f32 %v2774, %v1737
        %v2833 = vmul.f32 %v2776, %v1744
        %v2834 = vmul.f32 %v2778, %v1748
        %v2835 = vmul.f32 %v2780, %v1755
        %v2836 = vmul.f32 %v2782, %v1759
        %v2837 = vmul.f32 %v2784, %v1766
        %v2838 = vmul.f32 %v2786, %v1770
        %v2839 = vmul.f32 %v2788, %v1777
        %v2840 = vmul.f32 %v2790, %v1781
        %v2841 = vmul.f32 %v2792, %v1788
        %v2842 = vmul.f32 %v2794, %v1792
        %v2843 = vmul.f32 %v2796, %v1799
        %v2844 = vmul.f32 %v2798, %v1803
        %v2845 = vmul.f32 %v2800, %v1810
        %v2846 = vmul.f32 %v2802, %v1814
        %v2847 = vmul.f32 %v2804, %v1821
        %v2848 = vmul.f32 %v2806, %v1825
        %v2849 = vmul.f32 %v2808, %v1832
        %v2850 = vmul.f32 %v2810, %v1836
        %v2851 = vmul.f32 %v2812, %v1843
        %v2852 = vmul.f32 %v2814, %v1847
        %v2853 = vmul.f32 %v2816, %v1854
        %v2854 = vmul.f32 %v2818, %v1858
        %v2855 = vmul.f32 %v2820, %v1865
        %v2856 = vmul.f32 %v2822, %v1869
        %v2857 = vmul.f32 %v2824, %v1876
        %v2858 = vmul.f32 %v2826, %v1880
        %2861 = vrot.lane.b32.xlu0 %v1966, 96
        %v2862 = vpop.permute.xlu0 %2861
        %2863 = vrot.lane.b32.xlu0 %v1971, 96
        %v2864 = vpop.permute.xlu0 %2863
        %v2867 = vmul.f32 %v2827, %v2862
        %v2868 = vmul.f32 %v2828, %v2864
        %v2869 = vmul.f32 %v2829, %v2862
        %v2870 = vmul.f32 %v2830, %v2864
        %v2871 = vmul.f32 %v2831, %v2862
        %v2872 = vmul.f32 %v2832, %v2864
        %v2873 = vmul.f32 %v2833, %v2862
        %v2874 = vmul.f32 %v2834, %v2864
        %v2875 = vmul.f32 %v2835, %v2862
        %v2876 = vmul.f32 %v2836, %v2864
        %v2877 = vmul.f32 %v2837, %v2862
        %v2878 = vmul.f32 %v2838, %v2864
        %v2879 = vmul.f32 %v2839, %v2862
        %v2880 = vmul.f32 %v2840, %v2864
        %v2881 = vmul.f32 %v2841, %v2862
        %v2882 = vmul.f32 %v2842, %v2864
        %v2883 = vmul.f32 %v2843, %v2862
        %v2884 = vmul.f32 %v2844, %v2864
        %v2885 = vmul.f32 %v2845, %v2862
        %v2886 = vmul.f32 %v2846, %v2864
        %v2887 = vmul.f32 %v2847, %v2862
        %v2888 = vmul.f32 %v2848, %v2864
        %v2889 = vmul.f32 %v2849, %v2862
        %v2890 = vmul.f32 %v2850, %v2864
        %v2891 = vmul.f32 %v2851, %v2862
        %v2892 = vmul.f32 %v2852, %v2864
        %v2893 = vmul.f32 %v2853, %v2862
        %v2894 = vmul.f32 %v2854, %v2864
        %v2895 = vmul.f32 %v2855, %v2862
        %v2896 = vmul.f32 %v2856, %v2864
        %v2897 = vmul.f32 %v2857, %v2862
        %v2898 = vmul.f32 %v2858, %v2864
        %v2899 = vsel %vm1892, %v2867, 0.0
        %v2900 = vsel %vm1892, %v2868, 0.0
        %v2901 = vadd.f32 %v2899, %v2900
        %v2902 = vrot.slane %v2901, 4
        %v2903 = vadd.f32 %v2901, %v2902
        %v2904 = vrot.slane %v2903, 2
        %v2905 = vadd.f32 %v2903, %v2904
        %v2906 = vrot.slane %v2905, 1
        %v2907 = vadd.f32 %v2905, %v2906
        %v2908 = vsel %vm1892, %v2869, 0.0
        %v2909 = vsel %vm1892, %v2870, 0.0
        %v2910 = vadd.f32 %v2908, %v2909
        %v2911 = vrot.slane %v2910, 4
        %v2912 = vadd.f32 %v2910, %v2911
        %v2913 = vrot.slane %v2912, 2
        %v2914 = vadd.f32 %v2912, %v2913
        %v2915 = vrot.slane %v2914, 1
        %v2916 = vadd.f32 %v2914, %v2915
        %v2917 = vsel %vm1892, %v2871, 0.0
        %v2918 = vsel %vm1892, %v2872, 0.0
        %v2919 = vadd.f32 %v2917, %v2918
        %v2920 = vrot.slane %v2919, 4
        %v2921 = vadd.f32 %v2919, %v2920
        %v2922 = vrot.slane %v2921, 2
        %v2923 = vadd.f32 %v2921, %v2922
        %v2924 = vrot.slane %v2923, 1
        %v2925 = vadd.f32 %v2923, %v2924
        %v2926 = vsel %vm1892, %v2873, 0.0
        %v2927 = vsel %vm1892, %v2874, 0.0
        %v2928 = vadd.f32 %v2926, %v2927
        %v2929 = vrot.slane %v2928, 4
        %v2930 = vadd.f32 %v2928, %v2929
        %v2931 = vrot.slane %v2930, 2
        %v2932 = vadd.f32 %v2930, %v2931
        %v2933 = vrot.slane %v2932, 1
        %v2934 = vadd.f32 %v2932, %v2933
        %v2935 = vsel %vm1892, %v2875, 0.0
        %v2936 = vsel %vm1892, %v2876, 0.0
        %v2937 = vadd.f32 %v2935, %v2936
        %v2938 = vrot.slane %v2937, 4
        %v2939 = vadd.f32 %v2937, %v2938
        %v2940 = vrot.slane %v2939, 2
        %v2941 = vadd.f32 %v2939, %v2940
        %v2942 = vrot.slane %v2941, 1
        %v2943 = vadd.f32 %v2941, %v2942
        %v2944 = vsel %vm1892, %v2877, 0.0
        %v2945 = vsel %vm1892, %v2878, 0.0
        %v2946 = vadd.f32 %v2944, %v2945
        %v2947 = vrot.slane %v2946, 4
        %v2948 = vadd.f32 %v2946, %v2947
        %v2949 = vrot.slane %v2948, 2
        %v2950 = vadd.f32 %v2948, %v2949
        %v2951 = vrot.slane %v2950, 1
        %v2952 = vadd.f32 %v2950, %v2951
        %v2953 = vsel %vm1892, %v2879, 0.0
        %v2954 = vsel %vm1892, %v2880, 0.0
        %v2955 = vadd.f32 %v2953, %v2954
        %v2956 = vrot.slane %v2955, 4
        %v2957 = vadd.f32 %v2955, %v2956
        %v2958 = vrot.slane %v2957, 2
        %v2959 = vadd.f32 %v2957, %v2958
        %v2960 = vrot.slane %v2959, 1
        %v2961 = vadd.f32 %v2959, %v2960
        %v2962 = vsel %vm1892, %v2881, 0.0
        %v2963 = vsel %vm1892, %v2882, 0.0
        %v2964 = vadd.f32 %v2962, %v2963
        %v2965 = vrot.slane %v2964, 4
        %v2966 = vadd.f32 %v2964, %v2965
        %v2967 = vrot.slane %v2966, 2
        %v2968 = vadd.f32 %v2966, %v2967
        %v2969 = vrot.slane %v2968, 1
        %v2970 = vadd.f32 %v2968, %v2969
        %v2971 = vsel %vm1892, %v2883, 0.0
        %v2972 = vsel %vm1892, %v2884, 0.0
        %v2973 = vadd.f32 %v2971, %v2972
        %v2974 = vrot.slane %v2973, 4
        %v2975 = vadd.f32 %v2973, %v2974
        %v2976 = vrot.slane %v2975, 2
        %v2977 = vadd.f32 %v2975, %v2976
        %v2978 = vrot.slane %v2977, 1
        %v2979 = vadd.f32 %v2977, %v2978
        %v2980 = vsel %vm1892, %v2885, 0.0
        %v2981 = vsel %vm1892, %v2886, 0.0
        %v2982 = vadd.f32 %v2980, %v2981
        %v2983 = vrot.slane %v2982, 4
        %v2984 = vadd.f32 %v2982, %v2983
        %v2985 = vrot.slane %v2984, 2
        %v2986 = vadd.f32 %v2984, %v2985
        %v2987 = vrot.slane %v2986, 1
        %v2988 = vadd.f32 %v2986, %v2987
        %v2989 = vsel %vm1892, %v2887, 0.0
        %v2990 = vsel %vm1892, %v2888, 0.0
        %v2991 = vadd.f32 %v2989, %v2990
        %v2992 = vrot.slane %v2991, 4
        %v2993 = vadd.f32 %v2991, %v2992
        %v2994 = vrot.slane %v2993, 2
        %v2995 = vadd.f32 %v2993, %v2994
        %v2996 = vrot.slane %v2995, 1
        %v2997 = vadd.f32 %v2995, %v2996
        %v2998 = vsel %vm1892, %v2889, 0.0
        %v2999 = vsel %vm1892, %v2890, 0.0
        %v3000 = vadd.f32 %v2998, %v2999
        %v3001 = vrot.slane %v3000, 4
        %v3002 = vadd.f32 %v3000, %v3001
        %v3003 = vrot.slane %v3002, 2
        %v3004 = vadd.f32 %v3002, %v3003
        %v3005 = vrot.slane %v3004, 1
        %v3006 = vadd.f32 %v3004, %v3005
        %v3007 = vsel %vm1892, %v2891, 0.0
        %v3008 = vsel %vm1892, %v2892, 0.0
        %v3009 = vadd.f32 %v3007, %v3008
        %v3010 = vrot.slane %v3009, 4
        %v3011 = vadd.f32 %v3009, %v3010
        %v3012 = vrot.slane %v3011, 2
        %v3013 = vadd.f32 %v3011, %v3012
        %v3014 = vrot.slane %v3013, 1
        %v3015 = vadd.f32 %v3013, %v3014
        %v3016 = vsel %vm1892, %v2893, 0.0
        %v3017 = vsel %vm1892, %v2894, 0.0
        %v3018 = vadd.f32 %v3016, %v3017
        %v3019 = vrot.slane %v3018, 4
        %v3020 = vadd.f32 %v3018, %v3019
        %v3021 = vrot.slane %v3020, 2
        %v3022 = vadd.f32 %v3020, %v3021
        %v3023 = vrot.slane %v3022, 1
        %v3024 = vadd.f32 %v3022, %v3023
        %v3025 = vsel %vm1892, %v2895, 0.0
        %v3026 = vsel %vm1892, %v2896, 0.0
        %v3027 = vadd.f32 %v3025, %v3026
        %v3028 = vrot.slane %v3027, 4
        %v3029 = vadd.f32 %v3027, %v3028
        %v3030 = vrot.slane %v3029, 2
        %v3031 = vadd.f32 %v3029, %v3030
        %v3032 = vrot.slane %v3031, 1
        %v3033 = vadd.f32 %v3031, %v3032
        %v3034 = vsel %vm1892, %v2897, 0.0
        %v3035 = vsel %vm1892, %v2898, 0.0
        %v3036 = vadd.f32 %v3034, %v3035
        %v3037 = vrot.slane %v3036, 4
        %v3038 = vadd.f32 %v3036, %v3037
        %v3039 = vrot.slane %v3038, 2
        %v3040 = vadd.f32 %v3038, %v3039
        %v3041 = vrot.slane %v3040, 1
        %v3042 = vadd.f32 %v3040, %v3041
        %v3043 = vsel %vm1892, %v2827, 0.0
        %v3044 = vsel %vm1892, %v2828, 0.0
        %v3045 = vadd.f32 %v3043, %v3044
        %v3046 = vrot.slane %v3045, 4
        %v3047 = vadd.f32 %v3045, %v3046
        %v3048 = vrot.slane %v3047, 2
        %v3049 = vadd.f32 %v3047, %v3048
        %v3050 = vrot.slane %v3049, 1
        %v3051 = vadd.f32 %v3049, %v3050
        %v3052 = vsel %vm1892, %v2829, 0.0
        %v3053 = vsel %vm1892, %v2830, 0.0
        %v3054 = vadd.f32 %v3052, %v3053
        %v3055 = vrot.slane %v3054, 4
        %v3056 = vadd.f32 %v3054, %v3055
        %v3057 = vrot.slane %v3056, 2
        %v3058 = vadd.f32 %v3056, %v3057
        %v3059 = vrot.slane %v3058, 1
        %v3060 = vadd.f32 %v3058, %v3059
        %v3061 = vsel %vm1892, %v2831, 0.0
        %v3062 = vsel %vm1892, %v2832, 0.0
        %v3063 = vadd.f32 %v3061, %v3062
        %v3064 = vrot.slane %v3063, 4
        %v3065 = vadd.f32 %v3063, %v3064
        %v3066 = vrot.slane %v3065, 2
        %v3067 = vadd.f32 %v3065, %v3066
        %v3068 = vrot.slane %v3067, 1
        %v3069 = vadd.f32 %v3067, %v3068
        %v3070 = vsel %vm1892, %v2833, 0.0
        %v3071 = vsel %vm1892, %v2834, 0.0
        %v3072 = vadd.f32 %v3070, %v3071
        %v3073 = vrot.slane %v3072, 4
        %v3074 = vadd.f32 %v3072, %v3073
        %v3075 = vrot.slane %v3074, 2
        %v3076 = vadd.f32 %v3074, %v3075
        %v3077 = vrot.slane %v3076, 1
        %v3078 = vadd.f32 %v3076, %v3077
        %v3079 = vsel %vm1892, %v2835, 0.0
        %v3080 = vsel %vm1892, %v2836, 0.0
        %v3081 = vadd.f32 %v3079, %v3080
        %v3082 = vrot.slane %v3081, 4
        %v3083 = vadd.f32 %v3081, %v3082
        %v3084 = vrot.slane %v3083, 2
        %v3085 = vadd.f32 %v3083, %v3084
        %v3086 = vrot.slane %v3085, 1
        %v3087 = vadd.f32 %v3085, %v3086
        %v3088 = vsel %vm1892, %v2837, 0.0
        %v3089 = vsel %vm1892, %v2838, 0.0
        %v3090 = vadd.f32 %v3088, %v3089
        %v3091 = vrot.slane %v3090, 4
        %v3092 = vadd.f32 %v3090, %v3091
        %v3093 = vrot.slane %v3092, 2
        %v3094 = vadd.f32 %v3092, %v3093
        %v3095 = vrot.slane %v3094, 1
        %v3096 = vadd.f32 %v3094, %v3095
        %v3097 = vsel %vm1892, %v2839, 0.0
        %v3098 = vsel %vm1892, %v2840, 0.0
        %v3099 = vadd.f32 %v3097, %v3098
        %v3100 = vrot.slane %v3099, 4
        %v3101 = vadd.f32 %v3099, %v3100
        %v3102 = vrot.slane %v3101, 2
        %v3103 = vadd.f32 %v3101, %v3102
        %v3104 = vrot.slane %v3103, 1
        %v3105 = vadd.f32 %v3103, %v3104
        %v3106 = vsel %vm1892, %v2841, 0.0
        %v3107 = vsel %vm1892, %v2842, 0.0
        %v3108 = vadd.f32 %v3106, %v3107
        %v3109 = vrot.slane %v3108, 4
        %v3110 = vadd.f32 %v3108, %v3109
        %v3111 = vrot.slane %v3110, 2
        %v3112 = vadd.f32 %v3110, %v3111
        %v3113 = vrot.slane %v3112, 1
        %v3114 = vadd.f32 %v3112, %v3113
        %v3115 = vsel %vm1892, %v2843, 0.0
        %v3116 = vsel %vm1892, %v2844, 0.0
        %v3117 = vadd.f32 %v3115, %v3116
        %v3118 = vrot.slane %v3117, 4
        %v3119 = vadd.f32 %v3117, %v3118
        %v3120 = vrot.slane %v3119, 2
        %v3121 = vadd.f32 %v3119, %v3120
        %v3122 = vrot.slane %v3121, 1
        %v3123 = vadd.f32 %v3121, %v3122
        %v3124 = vsel %vm1892, %v2845, 0.0
        %v3125 = vsel %vm1892, %v2846, 0.0
        %v3126 = vadd.f32 %v3124, %v3125
        %v3127 = vrot.slane %v3126, 4
        %v3128 = vadd.f32 %v3126, %v3127
        %v3129 = vrot.slane %v3128, 2
        %v3130 = vadd.f32 %v3128, %v3129
        %v3131 = vrot.slane %v3130, 1
        %v3132 = vadd.f32 %v3130, %v3131
        %v3133 = vsel %vm1892, %v2847, 0.0
        %v3134 = vsel %vm1892, %v2848, 0.0
        %v3135 = vadd.f32 %v3133, %v3134
        %v3136 = vrot.slane %v3135, 4
        %v3137 = vadd.f32 %v3135, %v3136
        %v3138 = vrot.slane %v3137, 2
        %v3139 = vadd.f32 %v3137, %v3138
        %v3140 = vrot.slane %v3139, 1
        %v3141 = vadd.f32 %v3139, %v3140
        %v3142 = vsel %vm1892, %v2849, 0.0
        %v3143 = vsel %vm1892, %v2850, 0.0
        %v3144 = vadd.f32 %v3142, %v3143
        %v3145 = vrot.slane %v3144, 4
        %v3146 = vadd.f32 %v3144, %v3145
        %v3147 = vrot.slane %v3146, 2
        %v3148 = vadd.f32 %v3146, %v3147
        %v3149 = vrot.slane %v3148, 1
        %v3150 = vadd.f32 %v3148, %v3149
        %v3151 = vsel %vm1892, %v2851, 0.0
        %v3152 = vsel %vm1892, %v2852, 0.0
        %v3153 = vadd.f32 %v3151, %v3152
        %v3154 = vrot.slane %v3153, 4
        %v3155 = vadd.f32 %v3153, %v3154
        %v3156 = vrot.slane %v3155, 2
        %v3157 = vadd.f32 %v3155, %v3156
        %v3158 = vrot.slane %v3157, 1
        %v3159 = vadd.f32 %v3157, %v3158
        %v3160 = vsel %vm1892, %v2853, 0.0
        %v3161 = vsel %vm1892, %v2854, 0.0
        %v3162 = vadd.f32 %v3160, %v3161
        %v3163 = vrot.slane %v3162, 4
        %v3164 = vadd.f32 %v3162, %v3163
        %v3165 = vrot.slane %v3164, 2
        %v3166 = vadd.f32 %v3164, %v3165
        %v3167 = vrot.slane %v3166, 1
        %v3168 = vadd.f32 %v3166, %v3167
        %v3169 = vsel %vm1892, %v2855, 0.0
        %v3170 = vsel %vm1892, %v2856, 0.0
        %v3171 = vadd.f32 %v3169, %v3170
        %v3172 = vrot.slane %v3171, 4
        %v3173 = vadd.f32 %v3171, %v3172
        %v3174 = vrot.slane %v3173, 2
        %v3175 = vadd.f32 %v3173, %v3174
        %v3176 = vrot.slane %v3175, 1
        %v3177 = vadd.f32 %v3175, %v3176
        %v3178 = vsel %vm1892, %v2857, 0.0
        %v3179 = vsel %vm1892, %v2858, 0.0
        %v3180 = vadd.f32 %v3178, %v3179
        %v3181 = vrot.slane %v3180, 4
        %v3182 = vadd.f32 %v3180, %v3181
        %v3183 = vrot.slane %v3182, 2
        %v3184 = vadd.f32 %v3182, %v3183
        %v3185 = vrot.slane %v3184, 1
        %v3186 = vadd.f32 %v3184, %v3185
        %v3187 = vadd.f32 %v3051, 1e-06
        %v3188 = vadd.f32 %v3060, 1e-06
        %v3189 = vadd.f32 %v3069, 1e-06
        %v3190 = vadd.f32 %v3078, 1e-06
        %v3191 = vadd.f32 %v3087, 1e-06
        %v3192 = vadd.f32 %v3096, 1e-06
        %v3193 = vadd.f32 %v3105, 1e-06
        %v3194 = vadd.f32 %v3114, 1e-06
        %v3195 = vadd.f32 %v3123, 1e-06
        %v3196 = vadd.f32 %v3132, 1e-06
        %v3197 = vadd.f32 %v3141, 1e-06
        %v3198 = vadd.f32 %v3150, 1e-06
        %v3199 = vadd.f32 %v3159, 1e-06
        %v3200 = vadd.f32 %v3168, 1e-06
        %v3201 = vadd.f32 %v3177, 1e-06
        %v3202 = vadd.f32 %v3186, 1e-06
        %v3203 = vrcp.pop %v3187
        %v3204 = vmul.f32 %v2907, %v3203
        %v3205 = vrcp.pop %v3188
        %v3206 = vmul.f32 %v2916, %v3205
        %v3207 = vrcp.pop %v3189
        %v3208 = vmul.f32 %v2925, %v3207
        %v3209 = vrcp.pop %v3190
        %v3210 = vmul.f32 %v2934, %v3209
        %v3211 = vrcp.pop %v3191
        %v3212 = vmul.f32 %v2943, %v3211
        %v3213 = vrcp.pop %v3192
        %v3214 = vmul.f32 %v2952, %v3213
        %v3215 = vrcp.pop %v3193
        %v3216 = vmul.f32 %v2961, %v3215
        %v3217 = vrcp.pop %v3194
        %v3218 = vmul.f32 %v2970, %v3217
        %v3219 = vrcp.pop %v3195
        %v3220 = vmul.f32 %v2979, %v3219
        %v3221 = vrcp.pop %v3196
        %v3222 = vmul.f32 %v2988, %v3221
        %v3223 = vrcp.pop %v3197
        %v3224 = vmul.f32 %v2997, %v3223
        %v3225 = vrcp.pop %v3198
        %v3226 = vmul.f32 %v3006, %v3225
        %v3227 = vrcp.pop %v3199
        %v3228 = vmul.f32 %v3015, %v3227
        %v3229 = vrcp.pop %v3200
        %v3230 = vmul.f32 %v3024, %v3229
        %v3231 = vrcp.pop %v3201
        %v3232 = vmul.f32 %v3033, %v3231
        %v3233 = vrcp.pop %v3202
        %v3234 = vmul.f32 %v3042, %v3233
        %vm3251 = vcmask 1041409
        %v3252 = vsel %vm3251, %v3206, %v3204
        %vm3253 = vcmask 1042434
        %v3254 = vsel %vm3253, %v3208, %v3252
        %vm3255 = vcmask 1043459
        %v3256 = vsel %vm3255, %v3210, %v3254
        %vm3257 = vcmask 1044484
        %v3258 = vsel %vm3257, %v3212, %v3256
        %vm3259 = vcmask 1045509
        %v3260 = vsel %vm3259, %v3214, %v3258
        %vm3261 = vcmask 1046534
        %v3262 = vsel %vm3261, %v3216, %v3260
        %vm3263 = vcmask 1047559
        %v3264 = vsel %vm3263, %v3218, %v3262
        %v3265 = vsel %vm3251, %v3222, %v3220
        %v3266 = vsel %vm3253, %v3224, %v3265
        %v3267 = vsel %vm3255, %v3226, %v3266
        %v3268 = vsel %vm3257, %v3228, %v3267
        %v3269 = vsel %vm3259, %v3230, %v3268
        %v3270 = vsel %vm3261, %v3232, %v3269
        %v3271 = vsel %vm3263, %v3234, %v3270
        %v3274 = vadd.f32 %v1966, %v3264
        %v3275 = vadd.f32 %v1971, %v3271
        %v3276 = vmax.f32 %v3274, 0.0
        %v3277 = vmax.f32 %v3275, 0.0
        %v3278 = vadd.f32 %v864, %v3276
        %v3279 = vadd.f32 %v869, %v3277
        %v3280 = vmax.f32 %v2603, 0.0
        %v3281 = vmax.f32 %v2604, 0.0
        %v3282 = vmax.f32 %v2605, 0.0
        %v3283 = vmax.f32 %v2606, 0.0
        %v3284 = vmax.f32 %v2607, 0.0
        %v3285 = vmax.f32 %v2608, 0.0
        %v3286 = vmax.f32 %v2609, 0.0
        %v3287 = vmax.f32 %v2610, 0.0
        %v3288 = vmax.f32 %v2611, 0.0
        %v3289 = vmax.f32 %v2612, 0.0
        %v3290 = vmax.f32 %v2613, 0.0
        %v3291 = vmax.f32 %v2614, 0.0
        %v3292 = vmax.f32 %v2615, 0.0
        %v3293 = vmax.f32 %v2616, 0.0
        %v3294 = vmax.f32 %v2617, 0.0
        %v3295 = vmax.f32 %v2618, 0.0
        %v3296 = vmax.f32 %v2619, 0.0
        %v3297 = vmax.f32 %v2620, 0.0
        %v3298 = vmax.f32 %v2621, 0.0
        %v3299 = vmax.f32 %v2622, 0.0
        %v3300 = vmax.f32 %v2623, 0.0
        %v3301 = vmax.f32 %v2624, 0.0
        %v3302 = vmax.f32 %v2625, 0.0
        %v3303 = vmax.f32 %v2626, 0.0
        %v3304 = vmax.f32 %v2627, 0.0
        %v3305 = vmax.f32 %v2628, 0.0
        %v3306 = vmax.f32 %v2629, 0.0
        %v3307 = vmax.f32 %v2630, 0.0
        %v3308 = vmax.f32 %v2631, 0.0
        %v3309 = vmax.f32 %v2632, 0.0
        %v3310 = vmax.f32 %v2633, 0.0
        %v3311 = vmax.f32 %v2634, 0.0
        %v3312 = vadd.f32 %v1671, %v3280
        %v3313 = vadd.f32 %v1672, %v3281
        %v3314 = vadd.f32 %v1673, %v3282
        %v3315 = vadd.f32 %v1674, %v3283
        %v3316 = vadd.f32 %v1675, %v3284
        %v3317 = vadd.f32 %v1676, %v3285
        %v3318 = vadd.f32 %v1677, %v3286
        %v3319 = vadd.f32 %v1678, %v3287
        %v3320 = vadd.f32 %v1679, %v3288
        %v3321 = vadd.f32 %v1680, %v3289
        %v3322 = vadd.f32 %v1681, %v3290
        %v3323 = vadd.f32 %v1682, %v3291
        %v3324 = vadd.f32 %v1683, %v3292
        %v3325 = vadd.f32 %v1684, %v3293
        %v3326 = vadd.f32 %v1685, %v3294
        %v3327 = vadd.f32 %v1686, %v3295
        %v3328 = vadd.f32 %v1687, %v3296
        %v3329 = vadd.f32 %v1688, %v3297
        %v3330 = vadd.f32 %v1689, %v3298
        %v3331 = vadd.f32 %v1690, %v3299
        %v3332 = vadd.f32 %v1691, %v3300
        %v3333 = vadd.f32 %v1692, %v3301
        %v3334 = vadd.f32 %v1693, %v3302
        %v3335 = vadd.f32 %v1694, %v3303
        %v3336 = vadd.f32 %v1695, %v3304
        %v3337 = vadd.f32 %v1696, %v3305
        %v3338 = vadd.f32 %v1697, %v3306
        %v3339 = vadd.f32 %v1698, %v3307
        %v3340 = vadd.f32 %v1699, %v3308
        %v3341 = vadd.f32 %v1700, %v3309
        %v3342 = vadd.f32 %v1701, %v3310
        %v3343 = vadd.f32 %v1702, %v3311
        %s3344 = scalar_lea.vmem %s11, 32
        %v3345 = vld [vmem:[%s3344] sm:$0xff]
        %v3346 = vld [vmem:[%s3344 + $0x8] sm:$0xff]
        %v3347 = vld [vmem:[%s3344 + $0x10] sm:$0xff]
        %v3348 = vld [vmem:[%s3344 + $0x18] sm:$0xff]
        %s3349 = scalar_lea.vmem %s12, 1
        %v3350 = vld [vmem:[%s3349] sm:$0x1]
        %v3352 = vlaneseq
        %v3353 = vshrl.u32 %v3352, 7
        %v3354 = vsub.s32 0, %v3353
        %v3355 = vrot.slane %v3350, %v3354
        %v3358 = vsel %vm1892, %v3278, 0
        %v3361 = vsel %vm1892, %v3279, 0
        %3363 = vmatprep.subr.mxu0 0.0
        %3364 = vmatpush1.msra.mxu0 %v3345
        %3365 = vmatprep.subr.mxu0 0.0
        %3366 = vmatpush1.msra.mxu0 %v3346
        %3367 = vmatprep.subr.mxu0 0.0
        %3368 = vmatpush1.msra.mxu0 %v3347
        %3369 = vmatprep.subr.mxu0 0.0
        %3370 = vmatpush1.msra.mxu0 %v3348
        %3371 = vmatprep.subr.mxu0 0.0
        %3372 = vmatpush1.msra.mxu0 0.0
        %3373 = vmatprep.subr.mxu0 0.0
        %3374 = vmatpush1.msra.mxu0 0.0
        %3375 = vmatprep.subr.mxu0 0.0
        %3376 = vmatpush1.msra.mxu0 0.0
        %3377 = vmatprep.subr.mxu0 0.0
        %3378 = vmatpush1.msra.mxu0 0.0
        %3379 = vmatprep.subr.mxu0 0.0
        %3380 = vmatpush1.msra.mxu0 0.0
        %3381 = vmatprep.subr.mxu0 0.0
        %3382 = vmatpush1.msra.mxu0 0.0
        %3383 = vmatprep.subr.mxu0 0.0
        %3384 = vmatpush1.msra.mxu0 0.0
        %3385 = vmatprep.subr.mxu0 0.0
        %3386 = vmatpush1.msra.mxu0 0.0
        %3387 = vmatprep.subr.mxu0 0.0
        %3388 = vmatpush1.msra.mxu0 0.0
        %3389 = vmatprep.subr.mxu0 0.0
        %3390 = vmatpush1.msra.mxu0 0.0
        %3391 = vmatprep.subr.mxu0 0.0
        %3392 = vmatpush1.msra.mxu0 0.0
        %3393 = vmatprep.subr.mxu0 0.0
        %3394 = vmatpush1.msra.mxu0 0.0
        %3395 = vmatprep.subr.mxu0 0.0
        %3396 = vmatpush1.msra.mxu0 0.0
        %3397 = vmatprep.subr.mxu0 0.0
        %3398 = vmatpush1.msra.mxu0 0.0
        %3399 = vmatprep.subr.mxu0 0.0
        %3400 = vmatpush1.msra.mxu0 0.0
        %3401 = vmatprep.subr.mxu0 0.0
        %3402 = vmatpush1.msra.mxu0 0.0
        %3403 = vmatprep.subr.mxu0 0.0
        %3404 = vmatpush1.msra.mxu0 0.0
        %3405 = vmatprep.subr.mxu0 0.0
        %3406 = vmatpush1.msra.mxu0 0.0
        %3407 = vmatprep.subr.mxu0 0.0
        %3408 = vmatpush1.msra.mxu0 0.0
        %3409 = vmatprep.subr.mxu0 0.0
        %3410 = vmatpush1.msra.mxu0 0.0
        %3411 = vmatprep.subr.mxu0 0.0
        %3412 = vmatpush1.msra.mxu0 0.0
        %3413 = vmatprep.subr.mxu0 0.0
        %3414 = vmatpush1.msra.mxu0 0.0
        %3415 = vmatprep.subr.mxu0 0.0
        %3416 = vmatpush1.msra.mxu0 0.0
        %3417 = vmatprep.subr.mxu0 0.0
        %3418 = vmatpush1.msra.mxu0 0.0
        %3419 = vmatprep.subr.mxu0 0.0
        %3420 = vmatpush1.msra.mxu0 0.0
        %3421 = vmatprep.subr.mxu0 0.0
        %3422 = vmatpush1.msra.mxu0 0.0
        %3423 = vmatprep.subr.mxu0 0.0
        %3424 = vmatpush1.msra.mxu0 0.0
        %3425 = vmatprep.subr.mxu0 0.0
        %3426 = vmatpush1.msra.mxu0 0.0
        %3427 = vmatprep.mubr.f32.mxu0 0.0
        %3428 = vmatmul.mubr.f32.gmra.mrb[0].mxu0 %v3358
        %v3429 = vpop.f32.mrb[0].mxu0
        %v3430 = vadd.f32 %v3355, %v3429
        %v3431 = vpop.f32.mrb[0].mxu0
        %3432 = vmatprep.mubr.f32.mxu0 0.0
        %3433 = vmatmul.mubr.f32.gmra.mrb[0].mxu0 %v3361
        %v3434 = vpop.f32.mrb[0].mxu0
        %v3435 = vadd.f32 %v3355, %v3434
        %v3436 = vpop.f32.mrb[0].mxu0
        %3437 = vdwg.mxu0
        %s3438 = scalar_lea.vmem %s13, 32
        %v3439 = vld [vmem:[%s3438] sm:$0xff]
        %v3440 = vld [vmem:[%s3438 + $0x8] sm:$0xff]
        %v3441 = vld [vmem:[%s3438 + $0x10] sm:$0xff]
        %v3442 = vld [vmem:[%s3438 + $0x18] sm:$0xff]
        %3443 = vmatprep.subr.mxu0 0.0
        %3444 = vmatpush1.msra.mxu0 %v3439
        %3445 = vmatprep.subr.mxu0 0.0
        %3446 = vmatpush1.msra.mxu0 %v3440
        %3447 = vmatprep.subr.mxu0 0.0
        %3448 = vmatpush1.msra.mxu0 %v3441
        %3449 = vmatprep.subr.mxu0 0.0
        %3450 = vmatpush1.msra.mxu0 %v3442
        %3451 = vmatprep.subr.mxu0 0.0
        %3452 = vmatpush1.msra.mxu0 0.0
        %3453 = vmatprep.subr.mxu0 0.0
        %3454 = vmatpush1.msra.mxu0 0.0
        %3455 = vmatprep.subr.mxu0 0.0
        %3456 = vmatpush1.msra.mxu0 0.0
        %3457 = vmatprep.subr.mxu0 0.0
        %3458 = vmatpush1.msra.mxu0 0.0
        %3459 = vmatprep.subr.mxu0 0.0
        %3460 = vmatpush1.msra.mxu0 0.0
        %3461 = vmatprep.subr.mxu0 0.0
        %3462 = vmatpush1.msra.mxu0 0.0
        %3463 = vmatprep.subr.mxu0 0.0
        %3464 = vmatpush1.msra.mxu0 0.0
        %3465 = vmatprep.subr.mxu0 0.0
        %3466 = vmatpush1.msra.mxu0 0.0
        %3467 = vmatprep.subr.mxu0 0.0
        %3468 = vmatpush1.msra.mxu0 0.0
        %3469 = vmatprep.subr.mxu0 0.0
        %3470 = vmatpush1.msra.mxu0 0.0
        %3471 = vmatprep.subr.mxu0 0.0
        %3472 = vmatpush1.msra.mxu0 0.0
        %3473 = vmatprep.subr.mxu0 0.0
        %3474 = vmatpush1.msra.mxu0 0.0
        %3475 = vmatprep.subr.mxu0 0.0
        %3476 = vmatpush1.msra.mxu0 0.0
        %3477 = vmatprep.subr.mxu0 0.0
        %3478 = vmatpush1.msra.mxu0 0.0
        %3479 = vmatprep.subr.mxu0 0.0
        %3480 = vmatpush1.msra.mxu0 0.0
        %3481 = vmatprep.subr.mxu0 0.0
        %3482 = vmatpush1.msra.mxu0 0.0
        %3483 = vmatprep.subr.mxu0 0.0
        %3484 = vmatpush1.msra.mxu0 0.0
        %3485 = vmatprep.subr.mxu0 0.0
        %3486 = vmatpush1.msra.mxu0 0.0
        %3487 = vmatprep.subr.mxu0 0.0
        %3488 = vmatpush1.msra.mxu0 0.0
        %3489 = vmatprep.subr.mxu0 0.0
        %3490 = vmatpush1.msra.mxu0 0.0
        %3491 = vmatprep.subr.mxu0 0.0
        %3492 = vmatpush1.msra.mxu0 0.0
        %3493 = vmatprep.subr.mxu0 0.0
        %3494 = vmatpush1.msra.mxu0 0.0
        %3495 = vmatprep.subr.mxu0 0.0
        %3496 = vmatpush1.msra.mxu0 0.0
        %3497 = vmatprep.subr.mxu0 0.0
        %3498 = vmatpush1.msra.mxu0 0.0
        %3499 = vmatprep.subr.mxu0 0.0
        %3500 = vmatpush1.msra.mxu0 0.0
        %3501 = vmatprep.subr.mxu0 0.0
        %3502 = vmatpush1.msra.mxu0 0.0
        %3503 = vmatprep.subr.mxu0 0.0
        %3504 = vmatpush1.msra.mxu0 0.0
        %3505 = vmatprep.subr.mxu0 0.0
        %3506 = vmatpush1.msra.mxu0 0.0
        %3507 = vmatprep.mubr.f32.mxu0 0.0
        %3508 = vmatmul.mubr.f32.gmra.mrb[0].mxu0 %v3358
        %v3509 = vpop.f32.mrb[0].mxu0
        %v3510 = vadd.f32 0.0, %v3509
        %v3511 = vpop.f32.mrb[0].mxu0
        %3512 = vmatprep.mubr.f32.mxu0 0.0
        %3513 = vmatmul.mubr.f32.gmra.mrb[0].mxu0 %v3361
        %v3514 = vpop.f32.mrb[0].mxu0
        %v3515 = vadd.f32 0.0, %v3514
        %v3516 = vpop.f32.mrb[0].mxu0
        %3517 = vdwg.mxu0
        %s3518 = scalar_lea.vmem %s14, 32
        %v3519 = vld [vmem:[%s3518] sm:$0xff]
        %v3520 = vld [vmem:[%s3518 + $0x8] sm:$0xff]
        %v3521 = vld [vmem:[%s3518 + $0x10] sm:$0xff]
        %v3522 = vld [vmem:[%s3518 + $0x18] sm:$0xff]
        %s3523 = scalar_lea.vmem %s15, 1
        %v3524 = vld [vmem:[%s3523] sm:$0x1]
        %v3526 = vlaneseq
        %v3527 = vshrl.u32 %v3526, 7
        %v3528 = vsub.s32 0, %v3527
        %v3529 = vrot.slane %v3524, %v3528
        %v3532 = vsel %vm1892, %v3312, 0
        %v3535 = vsel %vm1892, %v3313, 0
        %v3538 = vsel %vm1892, %v3314, 0
        %v3541 = vsel %vm1892, %v3315, 0
        %v3544 = vsel %vm1892, %v3316, 0
        %v3547 = vsel %vm1892, %v3317, 0
        %v3550 = vsel %vm1892, %v3318, 0
        %v3553 = vsel %vm1892, %v3319, 0
        %v3556 = vsel %vm1892, %v3320, 0
        %v3559 = vsel %vm1892, %v3321, 0
        %v3562 = vsel %vm1892, %v3322, 0
        %v3565 = vsel %vm1892, %v3323, 0
        %v3568 = vsel %vm1892, %v3324, 0
        %v3571 = vsel %vm1892, %v3325, 0
        %v3574 = vsel %vm1892, %v3326, 0
        %v3577 = vsel %vm1892, %v3327, 0
        %v3580 = vsel %vm1892, %v3328, 0
        %v3583 = vsel %vm1892, %v3329, 0
        %v3586 = vsel %vm1892, %v3330, 0
        %v3589 = vsel %vm1892, %v3331, 0
        %v3592 = vsel %vm1892, %v3332, 0
        %v3595 = vsel %vm1892, %v3333, 0
        %v3598 = vsel %vm1892, %v3334, 0
        %v3601 = vsel %vm1892, %v3335, 0
        %v3604 = vsel %vm1892, %v3336, 0
        %v3607 = vsel %vm1892, %v3337, 0
        %v3610 = vsel %vm1892, %v3338, 0
        %v3613 = vsel %vm1892, %v3339, 0
        %v3616 = vsel %vm1892, %v3340, 0
        %v3619 = vsel %vm1892, %v3341, 0
        %v3622 = vsel %vm1892, %v3342, 0
        %v3625 = vsel %vm1892, %v3343, 0
        %3627 = vmatprep.subr.mxu0 0.0
        %3628 = vmatpush1.msra.mxu0 %v3519
        %3629 = vmatprep.subr.mxu0 0.0
        %3630 = vmatpush1.msra.mxu0 %v3520
        %3631 = vmatprep.subr.mxu0 0.0
        %3632 = vmatpush1.msra.mxu0 %v3521
        %3633 = vmatprep.subr.mxu0 0.0
        %3634 = vmatpush1.msra.mxu0 %v3522
        %3635 = vmatprep.subr.mxu0 0.0
        %3636 = vmatpush1.msra.mxu0 0.0
        %3637 = vmatprep.subr.mxu0 0.0
        %3638 = vmatpush1.msra.mxu0 0.0
        %3639 = vmatprep.subr.mxu0 0.0
        %3640 = vmatpush1.msra.mxu0 0.0
        %3641 = vmatprep.subr.mxu0 0.0
        %3642 = vmatpush1.msra.mxu0 0.0
        %3643 = vmatprep.subr.mxu0 0.0
        %3644 = vmatpush1.msra.mxu0 0.0
        %3645 = vmatprep.subr.mxu0 0.0
        %3646 = vmatpush1.msra.mxu0 0.0
        %3647 = vmatprep.subr.mxu0 0.0
        %3648 = vmatpush1.msra.mxu0 0.0
        %3649 = vmatprep.subr.mxu0 0.0
        %3650 = vmatpush1.msra.mxu0 0.0
        %3651 = vmatprep.subr.mxu0 0.0
        %3652 = vmatpush1.msra.mxu0 0.0
        %3653 = vmatprep.subr.mxu0 0.0
        %3654 = vmatpush1.msra.mxu0 0.0
        %3655 = vmatprep.subr.mxu0 0.0
        %3656 = vmatpush1.msra.mxu0 0.0
        %3657 = vmatprep.subr.mxu0 0.0
        %3658 = vmatpush1.msra.mxu0 0.0
        %3659 = vmatprep.subr.mxu0 0.0
        %3660 = vmatpush1.msra.mxu0 0.0
        %3661 = vmatprep.subr.mxu0 0.0
        %3662 = vmatpush1.msra.mxu0 0.0
        %3663 = vmatprep.subr.mxu0 0.0
        %3664 = vmatpush1.msra.mxu0 0.0
        %3665 = vmatprep.subr.mxu0 0.0
        %3666 = vmatpush1.msra.mxu0 0.0
        %3667 = vmatprep.subr.mxu0 0.0
        %3668 = vmatpush1.msra.mxu0 0.0
        %3669 = vmatprep.subr.mxu0 0.0
        %3670 = vmatpush1.msra.mxu0 0.0
        %3671 = vmatprep.subr.mxu0 0.0
        %3672 = vmatpush1.msra.mxu0 0.0
        %3673 = vmatprep.subr.mxu0 0.0
        %3674 = vmatpush1.msra.mxu0 0.0
        %3675 = vmatprep.subr.mxu0 0.0
        %3676 = vmatpush1.msra.mxu0 0.0
        %3677 = vmatprep.subr.mxu0 0.0
        %3678 = vmatpush1.msra.mxu0 0.0
        %3679 = vmatprep.subr.mxu0 0.0
        %3680 = vmatpush1.msra.mxu0 0.0
        %3681 = vmatprep.subr.mxu0 0.0
        %3682 = vmatpush1.msra.mxu0 0.0
        %3683 = vmatprep.subr.mxu0 0.0
        %3684 = vmatpush1.msra.mxu0 0.0
        %3685 = vmatprep.subr.mxu0 0.0
        %3686 = vmatpush1.msra.mxu0 0.0
        %3687 = vmatprep.subr.mxu0 0.0
        %3688 = vmatpush1.msra.mxu0 0.0
        %3689 = vmatprep.subr.mxu0 0.0
        %3690 = vmatpush1.msra.mxu0 0.0
        %3691 = vmatprep.mubr.f32.mxu0 0.0
        %3692 = vmatmul.mubr.f32.gmra.mrb[0].mxu0 %v3532
        %v3693 = vpop.f32.mrb[0].mxu0
        %v3694 = vadd.f32 %v3529, %v3693
        %v3695 = vpop.f32.mrb[0].mxu0
        %3696 = vmatprep.mubr.f32.mxu0 0.0
        %3697 = vmatmul.mubr.f32.gmra.mrb[0].mxu0 %v3535
        %v3698 = vpop.f32.mrb[0].mxu0
        %v3699 = vadd.f32 %v3529, %v3698
        %v3700 = vpop.f32.mrb[0].mxu0
        %3701 = vmatprep.mubr.f32.mxu0 0.0
        %3702 = vmatmul.mubr.f32.gmra.mrb[0].mxu0 %v3538
        %v3703 = vpop.f32.mrb[0].mxu0
        %v3704 = vadd.f32 %v3529, %v3703
        %v3705 = vpop.f32.mrb[0].mxu0
        %3706 = vmatprep.mubr.f32.mxu0 0.0
        %3707 = vmatmul.mubr.f32.gmra.mrb[0].mxu0 %v3541
        %v3708 = vpop.f32.mrb[0].mxu0
        %v3709 = vadd.f32 %v3529, %v3708
        %v3710 = vpop.f32.mrb[0].mxu0
        %3711 = vmatprep.mubr.f32.mxu0 0.0
        %3712 = vmatmul.mubr.f32.gmra.mrb[0].mxu0 %v3544
        %v3713 = vpop.f32.mrb[0].mxu0
        %v3714 = vadd.f32 %v3529, %v3713
        %v3715 = vpop.f32.mrb[0].mxu0
        %3716 = vmatprep.mubr.f32.mxu0 0.0
        %3717 = vmatmul.mubr.f32.gmra.mrb[0].mxu0 %v3547
        %v3718 = vpop.f32.mrb[0].mxu0
        %v3719 = vadd.f32 %v3529, %v3718
        %v3720 = vpop.f32.mrb[0].mxu0
        %3721 = vmatprep.mubr.f32.mxu0 0.0
        %3722 = vmatmul.mubr.f32.gmra.mrb[0].mxu0 %v3550
        %v3723 = vpop.f32.mrb[0].mxu0
        %v3724 = vadd.f32 %v3529, %v3723
        %v3725 = vpop.f32.mrb[0].mxu0
        %3726 = vmatprep.mubr.f32.mxu0 0.0
        %3727 = vmatmul.mubr.f32.gmra.mrb[0].mxu0 %v3553
        %v3728 = vpop.f32.mrb[0].mxu0
        %v3729 = vadd.f32 %v3529, %v3728
        %v3730 = vpop.f32.mrb[0].mxu0
        %3731 = vmatprep.mubr.f32.mxu0 0.0
        %3732 = vmatmul.mubr.f32.gmra.mrb[0].mxu0 %v3556
        %v3733 = vpop.f32.mrb[0].mxu0
        %v3734 = vadd.f32 %v3529, %v3733
        %v3735 = vpop.f32.mrb[0].mxu0
        %3736 = vmatprep.mubr.f32.mxu0 0.0
        %3737 = vmatmul.mubr.f32.gmra.mrb[0].mxu0 %v3559
        %v3738 = vpop.f32.mrb[0].mxu0
        %v3739 = vadd.f32 %v3529, %v3738
        %v3740 = vpop.f32.mrb[0].mxu0
        %3741 = vmatprep.mubr.f32.mxu0 0.0
        %3742 = vmatmul.mubr.f32.gmra.mrb[0].mxu0 %v3562
        %v3743 = vpop.f32.mrb[0].mxu0
        %v3744 = vadd.f32 %v3529, %v3743
        %v3745 = vpop.f32.mrb[0].mxu0
        %3746 = vmatprep.mubr.f32.mxu0 0.0
        %3747 = vmatmul.mubr.f32.gmra.mrb[0].mxu0 %v3565
        %v3748 = vpop.f32.mrb[0].mxu0
        %v3749 = vadd.f32 %v3529, %v3748
        %v3750 = vpop.f32.mrb[0].mxu0
        %3751 = vmatprep.mubr.f32.mxu0 0.0
        %3752 = vmatmul.mubr.f32.gmra.mrb[0].mxu0 %v3568
        %v3753 = vpop.f32.mrb[0].mxu0
        %v3754 = vadd.f32 %v3529, %v3753
        %v3755 = vpop.f32.mrb[0].mxu0
        %3756 = vmatprep.mubr.f32.mxu0 0.0
        %3757 = vmatmul.mubr.f32.gmra.mrb[0].mxu0 %v3571
        %v3758 = vpop.f32.mrb[0].mxu0
        %v3759 = vadd.f32 %v3529, %v3758
        %v3760 = vpop.f32.mrb[0].mxu0
        %3761 = vmatprep.mubr.f32.mxu0 0.0
        %3762 = vmatmul.mubr.f32.gmra.mrb[0].mxu0 %v3574
        %v3763 = vpop.f32.mrb[0].mxu0
        %v3764 = vadd.f32 %v3529, %v3763
        %v3765 = vpop.f32.mrb[0].mxu0
        %3766 = vmatprep.mubr.f32.mxu0 0.0
        %3767 = vmatmul.mubr.f32.gmra.mrb[0].mxu0 %v3577
        %v3768 = vpop.f32.mrb[0].mxu0
        %v3769 = vadd.f32 %v3529, %v3768
        %v3770 = vpop.f32.mrb[0].mxu0
        %3771 = vmatprep.mubr.f32.mxu0 0.0
        %3772 = vmatmul.mubr.f32.gmra.mrb[0].mxu0 %v3580
        %v3773 = vpop.f32.mrb[0].mxu0
        %v3774 = vadd.f32 %v3529, %v3773
        %v3775 = vpop.f32.mrb[0].mxu0
        %3776 = vmatprep.mubr.f32.mxu0 0.0
        %3777 = vmatmul.mubr.f32.gmra.mrb[0].mxu0 %v3583
        %v3778 = vpop.f32.mrb[0].mxu0
        %v3779 = vadd.f32 %v3529, %v3778
        %v3780 = vpop.f32.mrb[0].mxu0
        %3781 = vmatprep.mubr.f32.mxu0 0.0
        %3782 = vmatmul.mubr.f32.gmra.mrb[0].mxu0 %v3586
        %v3783 = vpop.f32.mrb[0].mxu0
        %v3784 = vadd.f32 %v3529, %v3783
        %v3785 = vpop.f32.mrb[0].mxu0
        %3786 = vmatprep.mubr.f32.mxu0 0.0
        %3787 = vmatmul.mubr.f32.gmra.mrb[0].mxu0 %v3589
        %v3788 = vpop.f32.mrb[0].mxu0
        %v3789 = vadd.f32 %v3529, %v3788
        %v3790 = vpop.f32.mrb[0].mxu0
        %3791 = vmatprep.mubr.f32.mxu0 0.0
        %3792 = vmatmul.mubr.f32.gmra.mrb[0].mxu0 %v3592
        %v3793 = vpop.f32.mrb[0].mxu0
        %v3794 = vadd.f32 %v3529, %v3793
        %v3795 = vpop.f32.mrb[0].mxu0
        %3796 = vmatprep.mubr.f32.mxu0 0.0
        %3797 = vmatmul.mubr.f32.gmra.mrb[0].mxu0 %v3595
        %v3798 = vpop.f32.mrb[0].mxu0
        %v3799 = vadd.f32 %v3529, %v3798
        %v3800 = vpop.f32.mrb[0].mxu0
        %3801 = vmatprep.mubr.f32.mxu0 0.0
        %3802 = vmatmul.mubr.f32.gmra.mrb[0].mxu0 %v3598
        %v3803 = vpop.f32.mrb[0].mxu0
        %v3804 = vadd.f32 %v3529, %v3803
        %v3805 = vpop.f32.mrb[0].mxu0
        %3806 = vmatprep.mubr.f32.mxu0 0.0
        %3807 = vmatmul.mubr.f32.gmra.mrb[0].mxu0 %v3601
        %v3808 = vpop.f32.mrb[0].mxu0
        %v3809 = vadd.f32 %v3529, %v3808
        %v3810 = vpop.f32.mrb[0].mxu0
        %3811 = vmatprep.mubr.f32.mxu0 0.0
        %3812 = vmatmul.mubr.f32.gmra.mrb[0].mxu0 %v3604
        %v3813 = vpop.f32.mrb[0].mxu0
        %v3814 = vadd.f32 %v3529, %v3813
        %v3815 = vpop.f32.mrb[0].mxu0
        %3816 = vmatprep.mubr.f32.mxu0 0.0
        %3817 = vmatmul.mubr.f32.gmra.mrb[0].mxu0 %v3607
        %v3818 = vpop.f32.mrb[0].mxu0
        %v3819 = vadd.f32 %v3529, %v3818
        %v3820 = vpop.f32.mrb[0].mxu0
        %3821 = vmatprep.mubr.f32.mxu0 0.0
        %3822 = vmatmul.mubr.f32.gmra.mrb[0].mxu0 %v3610
        %v3823 = vpop.f32.mrb[0].mxu0
        %v3824 = vadd.f32 %v3529, %v3823
        %v3825 = vpop.f32.mrb[0].mxu0
        %3826 = vmatprep.mubr.f32.mxu0 0.0
        %3827 = vmatmul.mubr.f32.gmra.mrb[0].mxu0 %v3613
        %v3828 = vpop.f32.mrb[0].mxu0
        %v3829 = vadd.f32 %v3529, %v3828
        %v3830 = vpop.f32.mrb[0].mxu0
        %3831 = vmatprep.mubr.f32.mxu0 0.0
        %3832 = vmatmul.mubr.f32.gmra.mrb[0].mxu0 %v3616
        %v3833 = vpop.f32.mrb[0].mxu0
        %v3834 = vadd.f32 %v3529, %v3833
        %v3835 = vpop.f32.mrb[0].mxu0
        %3836 = vmatprep.mubr.f32.mxu0 0.0
        %3837 = vmatmul.mubr.f32.gmra.mrb[0].mxu0 %v3619
        %v3838 = vpop.f32.mrb[0].mxu0
        %v3839 = vadd.f32 %v3529, %v3838
        %v3840 = vpop.f32.mrb[0].mxu0
        %3841 = vmatprep.mubr.f32.mxu0 0.0
        %3842 = vmatmul.mubr.f32.gmra.mrb[0].mxu0 %v3622
        %v3843 = vpop.f32.mrb[0].mxu0
        %v3844 = vadd.f32 %v3529, %v3843
        %v3845 = vpop.f32.mrb[0].mxu0
        %3846 = vmatprep.mubr.f32.mxu0 0.0
        %3847 = vmatmul.mubr.f32.gmra.mrb[0].mxu0 %v3625
        %v3848 = vpop.f32.mrb[0].mxu0
        %v3849 = vadd.f32 %v3529, %v3848
        %v3850 = vpop.f32.mrb[0].mxu0
        %3851 = vdwg.mxu0
        %v3854 = vcombine.high %v3510, %v3510
        %v3856 = vunpack.c.l.s4 1966171168
        %v3857 = vunpack.c.0.s8 %v3856
        %v3858 = vlaneseq
        %v3859 = vshrl.u32 %v3858, 7
        %v3860 = vsub.s32 %v3857, %v3859
        %v3861 = vrot.slane %v3510, %v3860
        %v3863 = vunpack.c.l.s4 1966171168
        %v3864 = vunpack.c.0.s8 %v3863
        %v3865 = vlaneseq
        %v3866 = vshrl.u32 %v3865, 7
        %v3867 = vsub.s32 %v3864, %v3866
        %v3868 = vrot.slane %v3854, %v3867
        %v3869 = vcombine.high %v3861, %v3861
        %v3870 = vcombine.high %v3868, %v3868
        %v3872 = vunpack.c.l.s4 1966171168
        %v3873 = vunpack.c.0.s8 %v3872
        %v3874 = vlaneseq
        %v3875 = vshrl.u32 %v3874, 7
        %v3876 = vsub.s32 %v3873, %v3875
        %v3877 = vrot.slane %v3861, %v3876
        %v3879 = vunpack.c.l.s4 1966171168
        %v3880 = vunpack.c.0.s8 %v3879
        %v3881 = vlaneseq
        %v3882 = vshrl.u32 %v3881, 7
        %v3883 = vsub.s32 %v3880, %v3882
        %v3884 = vrot.slane %v3868, %v3883
        %v3886 = vunpack.c.l.s4 1966171168
        %v3887 = vunpack.c.0.s8 %v3886
        %v3888 = vlaneseq
        %v3889 = vshrl.u32 %v3888, 7
        %v3890 = vsub.s32 %v3887, %v3889
        %v3891 = vrot.slane %v3869, %v3890
        %v3893 = vunpack.c.l.s4 1966171168
        %v3894 = vunpack.c.0.s8 %v3893
        %v3895 = vlaneseq
        %v3896 = vshrl.u32 %v3895, 7
        %v3897 = vsub.s32 %v3894, %v3896
        %v3898 = vrot.slane %v3870, %v3897
        %v3899 = vcombine.high %v3877, %v3877
        %v3900 = vcombine.high %v3884, %v3884
        %v3901 = vcombine.high %v3891, %v3891
        %v3902 = vcombine.high %v3898, %v3898
        %v3903 = vcombine.high %v3515, %v3515
        %v3905 = vunpack.c.l.s4 1966171168
        %v3906 = vunpack.c.0.s8 %v3905
        %v3907 = vlaneseq
        %v3908 = vshrl.u32 %v3907, 7
        %v3909 = vsub.s32 %v3906, %v3908
        %v3910 = vrot.slane %v3515, %v3909
        %v3912 = vunpack.c.l.s4 1966171168
        %v3913 = vunpack.c.0.s8 %v3912
        %v3914 = vlaneseq
        %v3915 = vshrl.u32 %v3914, 7
        %v3916 = vsub.s32 %v3913, %v3915
        %v3917 = vrot.slane %v3903, %v3916
        %v3918 = vcombine.high %v3910, %v3910
        %v3919 = vcombine.high %v3917, %v3917
        %v3921 = vunpack.c.l.s4 1966171168
        %v3922 = vunpack.c.0.s8 %v3921
        %v3923 = vlaneseq
        %v3924 = vshrl.u32 %v3923, 7
        %v3925 = vsub.s32 %v3922, %v3924
        %v3926 = vrot.slane %v3910, %v3925
        %v3928 = vunpack.c.l.s4 1966171168
        %v3929 = vunpack.c.0.s8 %v3928
        %v3930 = vlaneseq
        %v3931 = vshrl.u32 %v3930, 7
        %v3932 = vsub.s32 %v3929, %v3931
        %v3933 = vrot.slane %v3917, %v3932
        %v3935 = vunpack.c.l.s4 1966171168
        %v3936 = vunpack.c.0.s8 %v3935
        %v3937 = vlaneseq
        %v3938 = vshrl.u32 %v3937, 7
        %v3939 = vsub.s32 %v3936, %v3938
        %v3940 = vrot.slane %v3918, %v3939
        %v3942 = vunpack.c.l.s4 1966171168
        %v3943 = vunpack.c.0.s8 %v3942
        %v3944 = vlaneseq
        %v3945 = vshrl.u32 %v3944, 7
        %v3946 = vsub.s32 %v3943, %v3945
        %v3947 = vrot.slane %v3919, %v3946
        %v3948 = vcombine.high %v3926, %v3926
        %v3949 = vcombine.high %v3933, %v3933
        %v3950 = vcombine.high %v3940, %v3940
        %v3951 = vcombine.high %v3947, %v3947
        %v3952 = vlaneseq
        %v3953 = vshrl.u32 %v3952, 7
        %v3954 = vsub.s32 0, %v3953
        %v3955 = vrot.slane %v3877, %v3954
        %v3956 = vlaneseq
        %v3957 = vshrl.u32 %v3956, 7
        %v3958 = vsub.s32 0, %v3957
        %v3959 = vrot.slane %v3891, %v3958
        %v3960 = vlaneseq
        %v3961 = vshrl.u32 %v3960, 7
        %v3962 = vsub.s32 0, %v3961
        %v3963 = vrot.slane %v3899, %v3962
        %v3964 = vlaneseq
        %v3965 = vshrl.u32 %v3964, 7
        %v3966 = vsub.s32 0, %v3965
        %v3967 = vrot.slane %v3901, %v3966
        %v3968 = vlaneseq
        %v3969 = vshrl.u32 %v3968, 7
        %v3970 = vsub.s32 0, %v3969
        %v3971 = vrot.slane %v3884, %v3970
        %v3972 = vlaneseq
        %v3973 = vshrl.u32 %v3972, 7
        %v3974 = vsub.s32 0, %v3973
        %v3975 = vrot.slane %v3898, %v3974
        %v3976 = vlaneseq
        %v3977 = vshrl.u32 %v3976, 7
        %v3978 = vsub.s32 0, %v3977
        %v3979 = vrot.slane %v3900, %v3978
        %v3980 = vlaneseq
        %v3981 = vshrl.u32 %v3980, 7
        %v3982 = vsub.s32 0, %v3981
        %v3983 = vrot.slane %v3902, %v3982
        %v3984 = vlaneseq
        %v3985 = vshrl.u32 %v3984, 7
        %v3986 = vsub.s32 0, %v3985
        %v3987 = vrot.slane %v3926, %v3986
        %v3988 = vlaneseq
        %v3989 = vshrl.u32 %v3988, 7
        %v3990 = vsub.s32 0, %v3989
        %v3991 = vrot.slane %v3940, %v3990
        %v3992 = vlaneseq
        %v3993 = vshrl.u32 %v3992, 7
        %v3994 = vsub.s32 0, %v3993
        %v3995 = vrot.slane %v3948, %v3994
        %v3996 = vlaneseq
        %v3997 = vshrl.u32 %v3996, 7
        %v3998 = vsub.s32 0, %v3997
        %v3999 = vrot.slane %v3950, %v3998
        %v4000 = vlaneseq
        %v4001 = vshrl.u32 %v4000, 7
        %v4002 = vsub.s32 0, %v4001
        %v4003 = vrot.slane %v3933, %v4002
        %v4004 = vlaneseq
        %v4005 = vshrl.u32 %v4004, 7
        %v4006 = vsub.s32 0, %v4005
        %v4007 = vrot.slane %v3947, %v4006
        %v4008 = vlaneseq
        %v4009 = vshrl.u32 %v4008, 7
        %v4010 = vsub.s32 0, %v4009
        %v4011 = vrot.slane %v3949, %v4010
        %v4012 = vlaneseq
        %v4013 = vshrl.u32 %v4012, 7
        %v4014 = vsub.s32 0, %v4013
        %v4015 = vrot.slane %v3951, %v4014
        %4032 = vrot.lane.b32.xlu0 %v3510, 96
        %v4033 = vpop.permute.xlu0 %4032
        %4034 = vrot.lane.b32.xlu0 %v3515, 96
        %v4035 = vpop.permute.xlu0 %4034
        %v4038 = vadd.f32 %v3955, %v4033
        %v4039 = vadd.f32 %v3955, %v4035
        %v4040 = vadd.f32 %v3959, %v4033
        %v4041 = vadd.f32 %v3959, %v4035
        %v4042 = vadd.f32 %v3963, %v4033
        %v4043 = vadd.f32 %v3963, %v4035
        %v4044 = vadd.f32 %v3967, %v4033
        %v4045 = vadd.f32 %v3967, %v4035
        %v4046 = vadd.f32 %v3971, %v4033
        %v4047 = vadd.f32 %v3971, %v4035
        %v4048 = vadd.f32 %v3975, %v4033
        %v4049 = vadd.f32 %v3975, %v4035
        %v4050 = vadd.f32 %v3979, %v4033
        %v4051 = vadd.f32 %v3979, %v4035
        %v4052 = vadd.f32 %v3983, %v4033
        %v4053 = vadd.f32 %v3983, %v4035
        %v4054 = vadd.f32 %v3987, %v4033
        %v4055 = vadd.f32 %v3987, %v4035
        %v4056 = vadd.f32 %v3991, %v4033
        %v4057 = vadd.f32 %v3991, %v4035
        %v4058 = vadd.f32 %v3995, %v4033
        %v4059 = vadd.f32 %v3995, %v4035
        %v4060 = vadd.f32 %v3999, %v4033
        %v4061 = vadd.f32 %v3999, %v4035
        %v4062 = vadd.f32 %v4003, %v4033
        %v4063 = vadd.f32 %v4003, %v4035
        %v4064 = vadd.f32 %v4007, %v4033
        %v4065 = vadd.f32 %v4007, %v4035
        %v4066 = vadd.f32 %v4011, %v4033
        %v4067 = vadd.f32 %v4011, %v4035
        %v4068 = vadd.f32 %v4015, %v4033
        %v4069 = vadd.f32 %v4015, %v4035
        %v4070 = vadd.f32 %v4038, %v3694
        %v4071 = vadd.f32 %v4039, %v3699
        %v4072 = vadd.f32 %v4040, %v3704
        %v4073 = vadd.f32 %v4041, %v3709
        %v4074 = vadd.f32 %v4042, %v3714
        %v4075 = vadd.f32 %v4043, %v3719
        %v4076 = vadd.f32 %v4044, %v3724
        %v4077 = vadd.f32 %v4045, %v3729
        %v4078 = vadd.f32 %v4046, %v3734
        %v4079 = vadd.f32 %v4047, %v3739
        %v4080 = vadd.f32 %v4048, %v3744
        %v4081 = vadd.f32 %v4049, %v3749
        %v4082 = vadd.f32 %v4050, %v3754
        %v4083 = vadd.f32 %v4051, %v3759
        %v4084 = vadd.f32 %v4052, %v3764
        %v4085 = vadd.f32 %v4053, %v3769
        %v4086 = vadd.f32 %v4054, %v3774
        %v4087 = vadd.f32 %v4055, %v3779
        %v4088 = vadd.f32 %v4056, %v3784
        %v4089 = vadd.f32 %v4057, %v3789
        %v4090 = vadd.f32 %v4058, %v3794
        %v4091 = vadd.f32 %v4059, %v3799
        %v4092 = vadd.f32 %v4060, %v3804
        %v4093 = vadd.f32 %v4061, %v3809
        %v4094 = vadd.f32 %v4062, %v3814
        %v4095 = vadd.f32 %v4063, %v3819
        %v4096 = vadd.f32 %v4064, %v3824
        %v4097 = vadd.f32 %v4065, %v3829
        %v4098 = vadd.f32 %v4066, %v3834
        %v4099 = vadd.f32 %v4067, %v3839
        %v4100 = vadd.f32 %v4068, %v3844
        %v4101 = vadd.f32 %v4069, %v3849
        %v4102 = vxor.u32 %v4070, 2147483648
        %v4103 = vxor.u32 %v4071, 2147483648
        %v4104 = vxor.u32 %v4072, 2147483648
        %v4105 = vxor.u32 %v4073, 2147483648
        %v4106 = vxor.u32 %v4074, 2147483648
        %v4107 = vxor.u32 %v4075, 2147483648
        %v4108 = vxor.u32 %v4076, 2147483648
        %v4109 = vxor.u32 %v4077, 2147483648
        %v4110 = vxor.u32 %v4078, 2147483648
        %v4111 = vxor.u32 %v4079, 2147483648
        %v4112 = vxor.u32 %v4080, 2147483648
        %v4113 = vxor.u32 %v4081, 2147483648
        %v4114 = vxor.u32 %v4082, 2147483648
        %v4115 = vxor.u32 %v4083, 2147483648
        %v4116 = vxor.u32 %v4084, 2147483648
        %v4117 = vxor.u32 %v4085, 2147483648
        %v4118 = vxor.u32 %v4086, 2147483648
        %v4119 = vxor.u32 %v4087, 2147483648
        %v4120 = vxor.u32 %v4088, 2147483648
        %v4121 = vxor.u32 %v4089, 2147483648
        %v4122 = vxor.u32 %v4090, 2147483648
        %v4123 = vxor.u32 %v4091, 2147483648
        %v4124 = vxor.u32 %v4092, 2147483648
        %v4125 = vxor.u32 %v4093, 2147483648
        %v4126 = vxor.u32 %v4094, 2147483648
        %v4127 = vxor.u32 %v4095, 2147483648
        %v4128 = vxor.u32 %v4096, 2147483648
        %v4129 = vxor.u32 %v4097, 2147483648
        %v4130 = vxor.u32 %v4098, 2147483648
        %v4131 = vxor.u32 %v4099, 2147483648
        %v4132 = vxor.u32 %v4100, 2147483648
        %v4133 = vxor.u32 %v4101, 2147483648
        %v4134 = vmul.f32 %v4102, 1.442695
        %v4135 = vpow.pop %v4134
        %v4136 = vmul.f32 %v4103, 1.442695
        %v4137 = vpow.pop %v4136
        %v4138 = vmul.f32 %v4104, 1.442695
        %v4139 = vpow.pop %v4138
        %v4140 = vmul.f32 %v4105, 1.442695
        %v4141 = vpow.pop %v4140
        %v4142 = vmul.f32 %v4106, 1.442695
        %v4143 = vpow.pop %v4142
        %v4144 = vmul.f32 %v4107, 1.442695
        %v4145 = vpow.pop %v4144
        %v4146 = vmul.f32 %v4108, 1.442695
        %v4147 = vpow.pop %v4146
        %v4148 = vmul.f32 %v4109, 1.442695
        %v4149 = vpow.pop %v4148
        %v4150 = vmul.f32 %v4110, 1.442695
        %v4151 = vpow.pop %v4150
        %v4152 = vmul.f32 %v4111, 1.442695
        %v4153 = vpow.pop %v4152
        %v4154 = vmul.f32 %v4112, 1.442695
        %v4155 = vpow.pop %v4154
        %v4156 = vmul.f32 %v4113, 1.442695
        %v4157 = vpow.pop %v4156
        %v4158 = vmul.f32 %v4114, 1.442695
        %v4159 = vpow.pop %v4158
        %v4160 = vmul.f32 %v4115, 1.442695
        %v4161 = vpow.pop %v4160
        %v4162 = vmul.f32 %v4116, 1.442695
        %v4163 = vpow.pop %v4162
        %v4164 = vmul.f32 %v4117, 1.442695
        %v4165 = vpow.pop %v4164
        %v4166 = vmul.f32 %v4118, 1.442695
        %v4167 = vpow.pop %v4166
        %v4168 = vmul.f32 %v4119, 1.442695
        %v4169 = vpow.pop %v4168
        %v4170 = vmul.f32 %v4120, 1.442695
        %v4171 = vpow.pop %v4170
        %v4172 = vmul.f32 %v4121, 1.442695
        %v4173 = vpow.pop %v4172
        %v4174 = vmul.f32 %v4122, 1.442695
        %v4175 = vpow.pop %v4174
        %v4176 = vmul.f32 %v4123, 1.442695
        %v4177 = vpow.pop %v4176
        %v4178 = vmul.f32 %v4124, 1.442695
        %v4179 = vpow.pop %v4178
        %v4180 = vmul.f32 %v4125, 1.442695
        %v4181 = vpow.pop %v4180
        %v4182 = vmul.f32 %v4126, 1.442695
        %v4183 = vpow.pop %v4182
        %v4184 = vmul.f32 %v4127, 1.442695
        %v4185 = vpow.pop %v4184
        %v4186 = vmul.f32 %v4128, 1.442695
        %v4187 = vpow.pop %v4186
        %v4188 = vmul.f32 %v4129, 1.442695
        %v4189 = vpow.pop %v4188
        %v4190 = vmul.f32 %v4130, 1.442695
        %v4191 = vpow.pop %v4190
        %v4192 = vmul.f32 %v4131, 1.442695
        %v4193 = vpow.pop %v4192
        %v4194 = vmul.f32 %v4132, 1.442695
        %v4195 = vpow.pop %v4194
        %v4196 = vmul.f32 %v4133, 1.442695
        %v4197 = vpow.pop %v4196
        %v4198 = vadd.f32 %v4135, 1.0
        %v4199 = vadd.f32 %v4137, 1.0
        %v4200 = vadd.f32 %v4139, 1.0
        %v4201 = vadd.f32 %v4141, 1.0
        %v4202 = vadd.f32 %v4143, 1.0
        %v4203 = vadd.f32 %v4145, 1.0
        %v4204 = vadd.f32 %v4147, 1.0
        %v4205 = vadd.f32 %v4149, 1.0
        %v4206 = vadd.f32 %v4151, 1.0
        %v4207 = vadd.f32 %v4153, 1.0
        %v4208 = vadd.f32 %v4155, 1.0
        %v4209 = vadd.f32 %v4157, 1.0
        %v4210 = vadd.f32 %v4159, 1.0
        %v4211 = vadd.f32 %v4161, 1.0
        %v4212 = vadd.f32 %v4163, 1.0
        %v4213 = vadd.f32 %v4165, 1.0
        %v4214 = vadd.f32 %v4167, 1.0
        %v4215 = vadd.f32 %v4169, 1.0
        %v4216 = vadd.f32 %v4171, 1.0
        %v4217 = vadd.f32 %v4173, 1.0
        %v4218 = vadd.f32 %v4175, 1.0
        %v4219 = vadd.f32 %v4177, 1.0
        %v4220 = vadd.f32 %v4179, 1.0
        %v4221 = vadd.f32 %v4181, 1.0
        %v4222 = vadd.f32 %v4183, 1.0
        %v4223 = vadd.f32 %v4185, 1.0
        %v4224 = vadd.f32 %v4187, 1.0
        %v4225 = vadd.f32 %v4189, 1.0
        %v4226 = vadd.f32 %v4191, 1.0
        %v4227 = vadd.f32 %v4193, 1.0
        %v4228 = vadd.f32 %v4195, 1.0
        %v4229 = vadd.f32 %v4197, 1.0
        %v4230 = vrcp.pop %v4198
        %v4231 = vmul.f32 1.0, %v4230
        %v4232 = vrcp.pop %v4199
        %v4233 = vmul.f32 1.0, %v4232
        %v4234 = vrcp.pop %v4200
        %v4235 = vmul.f32 1.0, %v4234
        %v4236 = vrcp.pop %v4201
        %v4237 = vmul.f32 1.0, %v4236
        %v4238 = vrcp.pop %v4202
        %v4239 = vmul.f32 1.0, %v4238
        %v4240 = vrcp.pop %v4203
        %v4241 = vmul.f32 1.0, %v4240
        %v4242 = vrcp.pop %v4204
        %v4243 = vmul.f32 1.0, %v4242
        %v4244 = vrcp.pop %v4205
        %v4245 = vmul.f32 1.0, %v4244
        %v4246 = vrcp.pop %v4206
        %v4247 = vmul.f32 1.0, %v4246
        %v4248 = vrcp.pop %v4207
        %v4249 = vmul.f32 1.0, %v4248
        %v4250 = vrcp.pop %v4208
        %v4251 = vmul.f32 1.0, %v4250
        %v4252 = vrcp.pop %v4209
        %v4253 = vmul.f32 1.0, %v4252
        %v4254 = vrcp.pop %v4210
        %v4255 = vmul.f32 1.0, %v4254
        %v4256 = vrcp.pop %v4211
        %v4257 = vmul.f32 1.0, %v4256
        %v4258 = vrcp.pop %v4212
        %v4259 = vmul.f32 1.0, %v4258
        %v4260 = vrcp.pop %v4213
        %v4261 = vmul.f32 1.0, %v4260
        %v4262 = vrcp.pop %v4214
        %v4263 = vmul.f32 1.0, %v4262
        %v4264 = vrcp.pop %v4215
        %v4265 = vmul.f32 1.0, %v4264
        %v4266 = vrcp.pop %v4216
        %v4267 = vmul.f32 1.0, %v4266
        %v4268 = vrcp.pop %v4217
        %v4269 = vmul.f32 1.0, %v4268
        %v4270 = vrcp.pop %v4218
        %v4271 = vmul.f32 1.0, %v4270
        %v4272 = vrcp.pop %v4219
        %v4273 = vmul.f32 1.0, %v4272
        %v4274 = vrcp.pop %v4220
        %v4275 = vmul.f32 1.0, %v4274
        %v4276 = vrcp.pop %v4221
        %v4277 = vmul.f32 1.0, %v4276
        %v4278 = vrcp.pop %v4222
        %v4279 = vmul.f32 1.0, %v4278
        %v4280 = vrcp.pop %v4223
        %v4281 = vmul.f32 1.0, %v4280
        %v4282 = vrcp.pop %v4224
        %v4283 = vmul.f32 1.0, %v4282
        %v4284 = vrcp.pop %v4225
        %v4285 = vmul.f32 1.0, %v4284
        %v4286 = vrcp.pop %v4226
        %v4287 = vmul.f32 1.0, %v4286
        %v4288 = vrcp.pop %v4227
        %v4289 = vmul.f32 1.0, %v4288
        %v4290 = vrcp.pop %v4228
        %v4291 = vmul.f32 1.0, %v4290
        %v4292 = vrcp.pop %v4229
        %v4293 = vmul.f32 1.0, %v4292
        %v4294 = vmul.f32 %v4231, %v1711
        %v4295 = vmul.f32 %v4233, %v1715
        %v4296 = vmul.f32 %v4235, %v1722
        %v4297 = vmul.f32 %v4237, %v1726
        %v4298 = vmul.f32 %v4239, %v1733
        %v4299 = vmul.f32 %v4241, %v1737
        %v4300 = vmul.f32 %v4243, %v1744
        %v4301 = vmul.f32 %v4245, %v1748
        %v4302 = vmul.f32 %v4247, %v1755
        %v4303 = vmul.f32 %v4249, %v1759
        %v4304 = vmul.f32 %v4251, %v1766
        %v4305 = vmul.f32 %v4253, %v1770
        %v4306 = vmul.f32 %v4255, %v1777
        %v4307 = vmul.f32 %v4257, %v1781
        %v4308 = vmul.f32 %v4259, %v1788
        %v4309 = vmul.f32 %v4261, %v1792
        %v4310 = vmul.f32 %v4263, %v1799
        %v4311 = vmul.f32 %v4265, %v1803
        %v4312 = vmul.f32 %v4267, %v1810
        %v4313 = vmul.f32 %v4269, %v1814
        %v4314 = vmul.f32 %v4271, %v1821
        %v4315 = vmul.f32 %v4273, %v1825
        %v4316 = vmul.f32 %v4275, %v1832
        %v4317 = vmul.f32 %v4277, %v1836
        %v4318 = vmul.f32 %v4279, %v1843
        %v4319 = vmul.f32 %v4281, %v1847
        %v4320 = vmul.f32 %v4283, %v1854
        %v4321 = vmul.f32 %v4285, %v1858
        %v4322 = vmul.f32 %v4287, %v1865
        %v4323 = vmul.f32 %v4289, %v1869
        %v4324 = vmul.f32 %v4291, %v1876
        %v4325 = vmul.f32 %v4293, %v1880
        %4328 = vrot.lane.b32.xlu0 %v3430, 96
        %v4329 = vpop.permute.xlu0 %4328
        %4330 = vrot.lane.b32.xlu0 %v3435, 96
        %v4331 = vpop.permute.xlu0 %4330
        %v4334 = vmul.f32 %v4294, %v4329
        %v4335 = vmul.f32 %v4295, %v4331
        %v4336 = vmul.f32 %v4296, %v4329
        %v4337 = vmul.f32 %v4297, %v4331
        %v4338 = vmul.f32 %v4298, %v4329
        %v4339 = vmul.f32 %v4299, %v4331
        %v4340 = vmul.f32 %v4300, %v4329
        %v4341 = vmul.f32 %v4301, %v4331
        %v4342 = vmul.f32 %v4302, %v4329
        %v4343 = vmul.f32 %v4303, %v4331
        %v4344 = vmul.f32 %v4304, %v4329
        %v4345 = vmul.f32 %v4305, %v4331
        %v4346 = vmul.f32 %v4306, %v4329
        %v4347 = vmul.f32 %v4307, %v4331
        %v4348 = vmul.f32 %v4308, %v4329
        %v4349 = vmul.f32 %v4309, %v4331
        %v4350 = vmul.f32 %v4310, %v4329
        %v4351 = vmul.f32 %v4311, %v4331
        %v4352 = vmul.f32 %v4312, %v4329
        %v4353 = vmul.f32 %v4313, %v4331
        %v4354 = vmul.f32 %v4314, %v4329
        %v4355 = vmul.f32 %v4315, %v4331
        %v4356 = vmul.f32 %v4316, %v4329
        %v4357 = vmul.f32 %v4317, %v4331
        %v4358 = vmul.f32 %v4318, %v4329
        %v4359 = vmul.f32 %v4319, %v4331
        %v4360 = vmul.f32 %v4320, %v4329
        %v4361 = vmul.f32 %v4321, %v4331
        %v4362 = vmul.f32 %v4322, %v4329
        %v4363 = vmul.f32 %v4323, %v4331
        %v4364 = vmul.f32 %v4324, %v4329
        %v4365 = vmul.f32 %v4325, %v4331
        %v4366 = vsel %vm1892, %v4334, 0.0
        %v4367 = vsel %vm1892, %v4335, 0.0
        %v4368 = vadd.f32 %v4366, %v4367
        %v4369 = vrot.slane %v4368, 4
        %v4370 = vadd.f32 %v4368, %v4369
        %v4371 = vrot.slane %v4370, 2
        %v4372 = vadd.f32 %v4370, %v4371
        %v4373 = vrot.slane %v4372, 1
        %v4374 = vadd.f32 %v4372, %v4373
        %v4375 = vsel %vm1892, %v4336, 0.0
        %v4376 = vsel %vm1892, %v4337, 0.0
        %v4377 = vadd.f32 %v4375, %v4376
        %v4378 = vrot.slane %v4377, 4
        %v4379 = vadd.f32 %v4377, %v4378
        %v4380 = vrot.slane %v4379, 2
        %v4381 = vadd.f32 %v4379, %v4380
        %v4382 = vrot.slane %v4381, 1
        %v4383 = vadd.f32 %v4381, %v4382
        %v4384 = vsel %vm1892, %v4338, 0.0
        %v4385 = vsel %vm1892, %v4339, 0.0
        %v4386 = vadd.f32 %v4384, %v4385
        %v4387 = vrot.slane %v4386, 4
        %v4388 = vadd.f32 %v4386, %v4387
        %v4389 = vrot.slane %v4388, 2
        %v4390 = vadd.f32 %v4388, %v4389
        %v4391 = vrot.slane %v4390, 1
        %v4392 = vadd.f32 %v4390, %v4391
        %v4393 = vsel %vm1892, %v4340, 0.0
        %v4394 = vsel %vm1892, %v4341, 0.0
        %v4395 = vadd.f32 %v4393, %v4394
        %v4396 = vrot.slane %v4395, 4
        %v4397 = vadd.f32 %v4395, %v4396
        %v4398 = vrot.slane %v4397, 2
        %v4399 = vadd.f32 %v4397, %v4398
        %v4400 = vrot.slane %v4399, 1
        %v4401 = vadd.f32 %v4399, %v4400
        %v4402 = vsel %vm1892, %v4342, 0.0
        %v4403 = vsel %vm1892, %v4343, 0.0
        %v4404 = vadd.f32 %v4402, %v4403
        %v4405 = vrot.slane %v4404, 4
        %v4406 = vadd.f32 %v4404, %v4405
        %v4407 = vrot.slane %v4406, 2
        %v4408 = vadd.f32 %v4406, %v4407
        %v4409 = vrot.slane %v4408, 1
        %v4410 = vadd.f32 %v4408, %v4409
        %v4411 = vsel %vm1892, %v4344, 0.0
        %v4412 = vsel %vm1892, %v4345, 0.0
        %v4413 = vadd.f32 %v4411, %v4412
        %v4414 = vrot.slane %v4413, 4
        %v4415 = vadd.f32 %v4413, %v4414
        %v4416 = vrot.slane %v4415, 2
        %v4417 = vadd.f32 %v4415, %v4416
        %v4418 = vrot.slane %v4417, 1
        %v4419 = vadd.f32 %v4417, %v4418
        %v4420 = vsel %vm1892, %v4346, 0.0
        %v4421 = vsel %vm1892, %v4347, 0.0
        %v4422 = vadd.f32 %v4420, %v4421
        %v4423 = vrot.slane %v4422, 4
        %v4424 = vadd.f32 %v4422, %v4423
        %v4425 = vrot.slane %v4424, 2
        %v4426 = vadd.f32 %v4424, %v4425
        %v4427 = vrot.slane %v4426, 1
        %v4428 = vadd.f32 %v4426, %v4427
        %v4429 = vsel %vm1892, %v4348, 0.0
        %v4430 = vsel %vm1892, %v4349, 0.0
        %v4431 = vadd.f32 %v4429, %v4430
        %v4432 = vrot.slane %v4431, 4
        %v4433 = vadd.f32 %v4431, %v4432
        %v4434 = vrot.slane %v4433, 2
        %v4435 = vadd.f32 %v4433, %v4434
        %v4436 = vrot.slane %v4435, 1
        %v4437 = vadd.f32 %v4435, %v4436
        %v4438 = vsel %vm1892, %v4350, 0.0
        %v4439 = vsel %vm1892, %v4351, 0.0
        %v4440 = vadd.f32 %v4438, %v4439
        %v4441 = vrot.slane %v4440, 4
        %v4442 = vadd.f32 %v4440, %v4441
        %v4443 = vrot.slane %v4442, 2
        %v4444 = vadd.f32 %v4442, %v4443
        %v4445 = vrot.slane %v4444, 1
        %v4446 = vadd.f32 %v4444, %v4445
        %v4447 = vsel %vm1892, %v4352, 0.0
        %v4448 = vsel %vm1892, %v4353, 0.0
        %v4449 = vadd.f32 %v4447, %v4448
        %v4450 = vrot.slane %v4449, 4
        %v4451 = vadd.f32 %v4449, %v4450
        %v4452 = vrot.slane %v4451, 2
        %v4453 = vadd.f32 %v4451, %v4452
        %v4454 = vrot.slane %v4453, 1
        %v4455 = vadd.f32 %v4453, %v4454
        %v4456 = vsel %vm1892, %v4354, 0.0
        %v4457 = vsel %vm1892, %v4355, 0.0
        %v4458 = vadd.f32 %v4456, %v4457
        %v4459 = vrot.slane %v4458, 4
        %v4460 = vadd.f32 %v4458, %v4459
        %v4461 = vrot.slane %v4460, 2
        %v4462 = vadd.f32 %v4460, %v4461
        %v4463 = vrot.slane %v4462, 1
        %v4464 = vadd.f32 %v4462, %v4463
        %v4465 = vsel %vm1892, %v4356, 0.0
        %v4466 = vsel %vm1892, %v4357, 0.0
        %v4467 = vadd.f32 %v4465, %v4466
        %v4468 = vrot.slane %v4467, 4
        %v4469 = vadd.f32 %v4467, %v4468
        %v4470 = vrot.slane %v4469, 2
        %v4471 = vadd.f32 %v4469, %v4470
        %v4472 = vrot.slane %v4471, 1
        %v4473 = vadd.f32 %v4471, %v4472
        %v4474 = vsel %vm1892, %v4358, 0.0
        %v4475 = vsel %vm1892, %v4359, 0.0
        %v4476 = vadd.f32 %v4474, %v4475
        %v4477 = vrot.slane %v4476, 4
        %v4478 = vadd.f32 %v4476, %v4477
        %v4479 = vrot.slane %v4478, 2
        %v4480 = vadd.f32 %v4478, %v4479
        %v4481 = vrot.slane %v4480, 1
        %v4482 = vadd.f32 %v4480, %v4481
        %v4483 = vsel %vm1892, %v4360, 0.0
        %v4484 = vsel %vm1892, %v4361, 0.0
        %v4485 = vadd.f32 %v4483, %v4484
        %v4486 = vrot.slane %v4485, 4
        %v4487 = vadd.f32 %v4485, %v4486
        %v4488 = vrot.slane %v4487, 2
        %v4489 = vadd.f32 %v4487, %v4488
        %v4490 = vrot.slane %v4489, 1
        %v4491 = vadd.f32 %v4489, %v4490
        %v4492 = vsel %vm1892, %v4362, 0.0
        %v4493 = vsel %vm1892, %v4363, 0.0
        %v4494 = vadd.f32 %v4492, %v4493
        %v4495 = vrot.slane %v4494, 4
        %v4496 = vadd.f32 %v4494, %v4495
        %v4497 = vrot.slane %v4496, 2
        %v4498 = vadd.f32 %v4496, %v4497
        %v4499 = vrot.slane %v4498, 1
        %v4500 = vadd.f32 %v4498, %v4499
        %v4501 = vsel %vm1892, %v4364, 0.0
        %v4502 = vsel %vm1892, %v4365, 0.0
        %v4503 = vadd.f32 %v4501, %v4502
        %v4504 = vrot.slane %v4503, 4
        %v4505 = vadd.f32 %v4503, %v4504
        %v4506 = vrot.slane %v4505, 2
        %v4507 = vadd.f32 %v4505, %v4506
        %v4508 = vrot.slane %v4507, 1
        %v4509 = vadd.f32 %v4507, %v4508
        %v4510 = vsel %vm1892, %v4294, 0.0
        %v4511 = vsel %vm1892, %v4295, 0.0
        %v4512 = vadd.f32 %v4510, %v4511
        %v4513 = vrot.slane %v4512, 4
        %v4514 = vadd.f32 %v4512, %v4513
        %v4515 = vrot.slane %v4514, 2
        %v4516 = vadd.f32 %v4514, %v4515
        %v4517 = vrot.slane %v4516, 1
        %v4518 = vadd.f32 %v4516, %v4517
        %v4519 = vsel %vm1892, %v4296, 0.0
        %v4520 = vsel %vm1892, %v4297, 0.0
        %v4521 = vadd.f32 %v4519, %v4520
        %v4522 = vrot.slane %v4521, 4
        %v4523 = vadd.f32 %v4521, %v4522
        %v4524 = vrot.slane %v4523, 2
        %v4525 = vadd.f32 %v4523, %v4524
        %v4526 = vrot.slane %v4525, 1
        %v4527 = vadd.f32 %v4525, %v4526
        %v4528 = vsel %vm1892, %v4298, 0.0
        %v4529 = vsel %vm1892, %v4299, 0.0
        %v4530 = vadd.f32 %v4528, %v4529
        %v4531 = vrot.slane %v4530, 4
        %v4532 = vadd.f32 %v4530, %v4531
        %v4533 = vrot.slane %v4532, 2
        %v4534 = vadd.f32 %v4532, %v4533
        %v4535 = vrot.slane %v4534, 1
        %v4536 = vadd.f32 %v4534, %v4535
        %v4537 = vsel %vm1892, %v4300, 0.0
        %v4538 = vsel %vm1892, %v4301, 0.0
        %v4539 = vadd.f32 %v4537, %v4538
        %v4540 = vrot.slane %v4539, 4
        %v4541 = vadd.f32 %v4539, %v4540
        %v4542 = vrot.slane %v4541, 2
        %v4543 = vadd.f32 %v4541, %v4542
        %v4544 = vrot.slane %v4543, 1
        %v4545 = vadd.f32 %v4543, %v4544
        %v4546 = vsel %vm1892, %v4302, 0.0
        %v4547 = vsel %vm1892, %v4303, 0.0
        %v4548 = vadd.f32 %v4546, %v4547
        %v4549 = vrot.slane %v4548, 4
        %v4550 = vadd.f32 %v4548, %v4549
        %v4551 = vrot.slane %v4550, 2
        %v4552 = vadd.f32 %v4550, %v4551
        %v4553 = vrot.slane %v4552, 1
        %v4554 = vadd.f32 %v4552, %v4553
        %v4555 = vsel %vm1892, %v4304, 0.0
        %v4556 = vsel %vm1892, %v4305, 0.0
        %v4557 = vadd.f32 %v4555, %v4556
        %v4558 = vrot.slane %v4557, 4
        %v4559 = vadd.f32 %v4557, %v4558
        %v4560 = vrot.slane %v4559, 2
        %v4561 = vadd.f32 %v4559, %v4560
        %v4562 = vrot.slane %v4561, 1
        %v4563 = vadd.f32 %v4561, %v4562
        %v4564 = vsel %vm1892, %v4306, 0.0
        %v4565 = vsel %vm1892, %v4307, 0.0
        %v4566 = vadd.f32 %v4564, %v4565
        %v4567 = vrot.slane %v4566, 4
        %v4568 = vadd.f32 %v4566, %v4567
        %v4569 = vrot.slane %v4568, 2
        %v4570 = vadd.f32 %v4568, %v4569
        %v4571 = vrot.slane %v4570, 1
        %v4572 = vadd.f32 %v4570, %v4571
        %v4573 = vsel %vm1892, %v4308, 0.0
        %v4574 = vsel %vm1892, %v4309, 0.0
        %v4575 = vadd.f32 %v4573, %v4574
        %v4576 = vrot.slane %v4575, 4
        %v4577 = vadd.f32 %v4575, %v4576
        %v4578 = vrot.slane %v4577, 2
        %v4579 = vadd.f32 %v4577, %v4578
        %v4580 = vrot.slane %v4579, 1
        %v4581 = vadd.f32 %v4579, %v4580
        %v4582 = vsel %vm1892, %v4310, 0.0
        %v4583 = vsel %vm1892, %v4311, 0.0
        %v4584 = vadd.f32 %v4582, %v4583
        %v4585 = vrot.slane %v4584, 4
        %v4586 = vadd.f32 %v4584, %v4585
        %v4587 = vrot.slane %v4586, 2
        %v4588 = vadd.f32 %v4586, %v4587
        %v4589 = vrot.slane %v4588, 1
        %v4590 = vadd.f32 %v4588, %v4589
        %v4591 = vsel %vm1892, %v4312, 0.0
        %v4592 = vsel %vm1892, %v4313, 0.0
        %v4593 = vadd.f32 %v4591, %v4592
        %v4594 = vrot.slane %v4593, 4
        %v4595 = vadd.f32 %v4593, %v4594
        %v4596 = vrot.slane %v4595, 2
        %v4597 = vadd.f32 %v4595, %v4596
        %v4598 = vrot.slane %v4597, 1
        %v4599 = vadd.f32 %v4597, %v4598
        %v4600 = vsel %vm1892, %v4314, 0.0
        %v4601 = vsel %vm1892, %v4315, 0.0
        %v4602 = vadd.f32 %v4600, %v4601
        %v4603 = vrot.slane %v4602, 4
        %v4604 = vadd.f32 %v4602, %v4603
        %v4605 = vrot.slane %v4604, 2
        %v4606 = vadd.f32 %v4604, %v4605
        %v4607 = vrot.slane %v4606, 1
        %v4608 = vadd.f32 %v4606, %v4607
        %v4609 = vsel %vm1892, %v4316, 0.0
        %v4610 = vsel %vm1892, %v4317, 0.0
        %v4611 = vadd.f32 %v4609, %v4610
        %v4612 = vrot.slane %v4611, 4
        %v4613 = vadd.f32 %v4611, %v4612
        %v4614 = vrot.slane %v4613, 2
        %v4615 = vadd.f32 %v4613, %v4614
        %v4616 = vrot.slane %v4615, 1
        %v4617 = vadd.f32 %v4615, %v4616
        %v4618 = vsel %vm1892, %v4318, 0.0
        %v4619 = vsel %vm1892, %v4319, 0.0
        %v4620 = vadd.f32 %v4618, %v4619
        %v4621 = vrot.slane %v4620, 4
        %v4622 = vadd.f32 %v4620, %v4621
        %v4623 = vrot.slane %v4622, 2
        %v4624 = vadd.f32 %v4622, %v4623
        %v4625 = vrot.slane %v4624, 1
        %v4626 = vadd.f32 %v4624, %v4625
        %v4627 = vsel %vm1892, %v4320, 0.0
        %v4628 = vsel %vm1892, %v4321, 0.0
        %v4629 = vadd.f32 %v4627, %v4628
        %v4630 = vrot.slane %v4629, 4
        %v4631 = vadd.f32 %v4629, %v4630
        %v4632 = vrot.slane %v4631, 2
        %v4633 = vadd.f32 %v4631, %v4632
        %v4634 = vrot.slane %v4633, 1
        %v4635 = vadd.f32 %v4633, %v4634
        %v4636 = vsel %vm1892, %v4322, 0.0
        %v4637 = vsel %vm1892, %v4323, 0.0
        %v4638 = vadd.f32 %v4636, %v4637
        %v4639 = vrot.slane %v4638, 4
        %v4640 = vadd.f32 %v4638, %v4639
        %v4641 = vrot.slane %v4640, 2
        %v4642 = vadd.f32 %v4640, %v4641
        %v4643 = vrot.slane %v4642, 1
        %v4644 = vadd.f32 %v4642, %v4643
        %v4645 = vsel %vm1892, %v4324, 0.0
        %v4646 = vsel %vm1892, %v4325, 0.0
        %v4647 = vadd.f32 %v4645, %v4646
        %v4648 = vrot.slane %v4647, 4
        %v4649 = vadd.f32 %v4647, %v4648
        %v4650 = vrot.slane %v4649, 2
        %v4651 = vadd.f32 %v4649, %v4650
        %v4652 = vrot.slane %v4651, 1
        %v4653 = vadd.f32 %v4651, %v4652
        %v4654 = vadd.f32 %v4518, 1e-06
        %v4655 = vadd.f32 %v4527, 1e-06
        %v4656 = vadd.f32 %v4536, 1e-06
        %v4657 = vadd.f32 %v4545, 1e-06
        %v4658 = vadd.f32 %v4554, 1e-06
        %v4659 = vadd.f32 %v4563, 1e-06
        %v4660 = vadd.f32 %v4572, 1e-06
        %v4661 = vadd.f32 %v4581, 1e-06
        %v4662 = vadd.f32 %v4590, 1e-06
        %v4663 = vadd.f32 %v4599, 1e-06
        %v4664 = vadd.f32 %v4608, 1e-06
        %v4665 = vadd.f32 %v4617, 1e-06
        %v4666 = vadd.f32 %v4626, 1e-06
        %v4667 = vadd.f32 %v4635, 1e-06
        %v4668 = vadd.f32 %v4644, 1e-06
        %v4669 = vadd.f32 %v4653, 1e-06
        %v4670 = vrcp.pop %v4654
        %v4671 = vmul.f32 %v4374, %v4670
        %v4672 = vrcp.pop %v4655
        %v4673 = vmul.f32 %v4383, %v4672
        %v4674 = vrcp.pop %v4656
        %v4675 = vmul.f32 %v4392, %v4674
        %v4676 = vrcp.pop %v4657
        %v4677 = vmul.f32 %v4401, %v4676
        %v4678 = vrcp.pop %v4658
        %v4679 = vmul.f32 %v4410, %v4678
        %v4680 = vrcp.pop %v4659
        %v4681 = vmul.f32 %v4419, %v4680
        %v4682 = vrcp.pop %v4660
        %v4683 = vmul.f32 %v4428, %v4682
        %v4684 = vrcp.pop %v4661
        %v4685 = vmul.f32 %v4437, %v4684
        %v4686 = vrcp.pop %v4662
        %v4687 = vmul.f32 %v4446, %v4686
        %v4688 = vrcp.pop %v4663
        %v4689 = vmul.f32 %v4455, %v4688
        %v4690 = vrcp.pop %v4664
        %v4691 = vmul.f32 %v4464, %v4690
        %v4692 = vrcp.pop %v4665
        %v4693 = vmul.f32 %v4473, %v4692
        %v4694 = vrcp.pop %v4666
        %v4695 = vmul.f32 %v4482, %v4694
        %v4696 = vrcp.pop %v4667
        %v4697 = vmul.f32 %v4491, %v4696
        %v4698 = vrcp.pop %v4668
        %v4699 = vmul.f32 %v4500, %v4698
        %v4700 = vrcp.pop %v4669
        %v4701 = vmul.f32 %v4509, %v4700
        %v4718 = vsel %vm3251, %v4673, %v4671
        %v4719 = vsel %vm3253, %v4675, %v4718
        %v4720 = vsel %vm3255, %v4677, %v4719
        %v4721 = vsel %vm3257, %v4679, %v4720
        %v4722 = vsel %vm3259, %v4681, %v4721
        %v4723 = vsel %vm3261, %v4683, %v4722
        %v4724 = vsel %vm3263, %v4685, %v4723
        %v4725 = vsel %vm3251, %v4689, %v4687
        %v4726 = vsel %vm3253, %v4691, %v4725
        %v4727 = vsel %vm3255, %v4693, %v4726
        %v4728 = vsel %vm3257, %v4695, %v4727
        %v4729 = vsel %vm3259, %v4697, %v4728
        %v4730 = vsel %vm3261, %v4699, %v4729
        %v4731 = vsel %vm3263, %v4701, %v4730
        %v4734 = vadd.f32 %v3430, %v4724
        %v4735 = vadd.f32 %v3435, %v4731
        %v4736 = vmax.f32 %v4734, 0.0
        %v4737 = vmax.f32 %v4735, 0.0
        %v4738 = vadd.f32 %v3278, %v4736
        %v4739 = vadd.f32 %v3279, %v4737
        %v4740 = vsel %vm1892, %v4738, 0.0
        %v4741 = vsel %vm1892, %v4739, 0.0
        %v4742 = vadd.f32 %v4740, %v4741
        %v4743 = vrot.slane %v4742, 4
        %v4744 = vadd.f32 %v4742, %v4743
        %v4745 = vrot.slane %v4744, 2
        %v4746 = vadd.f32 %v4744, %v4745
        %v4747 = vrot.slane %v4746, 1
        %v4748 = vadd.f32 %v4746, %v4747
        %v4749 = vrcp.pop 16.0
        %v4750 = vmul.f32 %v4748, %v4749
        %v4751 = vld [vmem:[%s16] sm:$0xff]
        %v4752 = vld [vmem:[%s16 + $0x8] sm:$0xff]
        %v4753 = vld [vmem:[%s16 + $0x10] sm:$0xff]
        %v4754 = vld [vmem:[%s16 + $0x18] sm:$0xff]
        %v4755 = vld [vmem:[%s17] sm:$0x1]
        %v4757 = vsel %vm1892, %v4750, 0
        %4759 = vmatprep.subr.mxu0 0.0
        %4760 = vmatpush1.msra.mxu0 %v4751
        %4761 = vmatprep.subr.mxu0 0.0
        %4762 = vmatpush1.msra.mxu0 %v4752
        %4763 = vmatprep.subr.mxu0 0.0
        %4764 = vmatpush1.msra.mxu0 %v4753
        %4765 = vmatprep.subr.mxu0 0.0
        %4766 = vmatpush1.msra.mxu0 %v4754
        %4767 = vmatprep.subr.mxu0 0.0
        %4768 = vmatpush1.msra.mxu0 0.0
        %4769 = vmatprep.subr.mxu0 0.0
        %4770 = vmatpush1.msra.mxu0 0.0
        %4771 = vmatprep.subr.mxu0 0.0
        %4772 = vmatpush1.msra.mxu0 0.0
        %4773 = vmatprep.subr.mxu0 0.0
        %4774 = vmatpush1.msra.mxu0 0.0
        %4775 = vmatprep.subr.mxu0 0.0
        %4776 = vmatpush1.msra.mxu0 0.0
        %4777 = vmatprep.subr.mxu0 0.0
        %4778 = vmatpush1.msra.mxu0 0.0
        %4779 = vmatprep.subr.mxu0 0.0
        %4780 = vmatpush1.msra.mxu0 0.0
        %4781 = vmatprep.subr.mxu0 0.0
        %4782 = vmatpush1.msra.mxu0 0.0
        %4783 = vmatprep.subr.mxu0 0.0
        %4784 = vmatpush1.msra.mxu0 0.0
        %4785 = vmatprep.subr.mxu0 0.0
        %4786 = vmatpush1.msra.mxu0 0.0
        %4787 = vmatprep.subr.mxu0 0.0
        %4788 = vmatpush1.msra.mxu0 0.0
        %4789 = vmatprep.subr.mxu0 0.0
        %4790 = vmatpush1.msra.mxu0 0.0
        %4791 = vmatprep.subr.mxu0 0.0
        %4792 = vmatpush1.msra.mxu0 0.0
        %4793 = vmatprep.subr.mxu0 0.0
        %4794 = vmatpush1.msra.mxu0 0.0
        %4795 = vmatprep.subr.mxu0 0.0
        %4796 = vmatpush1.msra.mxu0 0.0
        %4797 = vmatprep.subr.mxu0 0.0
        %4798 = vmatpush1.msra.mxu0 0.0
        %4799 = vmatprep.subr.mxu0 0.0
        %4800 = vmatpush1.msra.mxu0 0.0
        %4801 = vmatprep.subr.mxu0 0.0
        %4802 = vmatpush1.msra.mxu0 0.0
        %4803 = vmatprep.subr.mxu0 0.0
        %4804 = vmatpush1.msra.mxu0 0.0
        %4805 = vmatprep.subr.mxu0 0.0
        %4806 = vmatpush1.msra.mxu0 0.0
        %4807 = vmatprep.subr.mxu0 0.0
        %4808 = vmatpush1.msra.mxu0 0.0
        %4809 = vmatprep.subr.mxu0 0.0
        %4810 = vmatpush1.msra.mxu0 0.0
        %4811 = vmatprep.subr.mxu0 0.0
        %4812 = vmatpush1.msra.mxu0 0.0
        %4813 = vmatprep.subr.mxu0 0.0
        %4814 = vmatpush1.msra.mxu0 0.0
        %4815 = vmatprep.subr.mxu0 0.0
        %4816 = vmatpush1.msra.mxu0 0.0
        %4817 = vmatprep.subr.mxu0 0.0
        %4818 = vmatpush1.msra.mxu0 0.0
        %4819 = vmatprep.subr.mxu0 0.0
        %4820 = vmatpush1.msra.mxu0 0.0
        %4821 = vmatprep.subr.mxu0 0.0
        %4822 = vmatpush1.msra.mxu0 0.0
        %4823 = vmatprep.mubr.f32.mxu0 0.0
        %4824 = vmatmul.mubr.f32.gmra.mrb[0].mxu0 %v4757
        %v4825 = vpop.f32.mrb[0].mxu0
        %v4826 = vadd.f32 %v4755, %v4825
        %v4827 = vpop.f32.mrb[0].mxu0
        %4828 = vdwg.mxu0
        %v4829 = vmax.f32 %v4826, 0.0
        %v4830 = vld [vmem:[%s18] sm:$0xff]
        %v4831 = vld [vmem:[%s18 + $0x8] sm:$0xff]
        %v4832 = vld [vmem:[%s19] sm:$0x1]
        %v4834 = vsel %vm790, %v4829, 0
        %4836 = vmatprep.subr.mxu0 0.0
        %4837 = vmatpush1.msra.mxu0 %v4830
        %4838 = vmatprep.subr.mxu0 0.0
        %4839 = vmatpush1.msra.mxu0 %v4831
        %4840 = vmatprep.subr.mxu0 0.0
        %4841 = vmatpush1.msra.mxu0 0.0
        %4842 = vmatprep.subr.mxu0 0.0
        %4843 = vmatpush1.msra.mxu0 0.0
        %4844 = vmatprep.subr.mxu0 0.0
        %4845 = vmatpush1.msra.mxu0 0.0
        %4846 = vmatprep.subr.mxu0 0.0
        %4847 = vmatpush1.msra.mxu0 0.0
        %4848 = vmatprep.subr.mxu0 0.0
        %4849 = vmatpush1.msra.mxu0 0.0
        %4850 = vmatprep.subr.mxu0 0.0
        %4851 = vmatpush1.msra.mxu0 0.0
        %4852 = vmatprep.subr.mxu0 0.0
        %4853 = vmatpush1.msra.mxu0 0.0
        %4854 = vmatprep.subr.mxu0 0.0
        %4855 = vmatpush1.msra.mxu0 0.0
        %4856 = vmatprep.subr.mxu0 0.0
        %4857 = vmatpush1.msra.mxu0 0.0
        %4858 = vmatprep.subr.mxu0 0.0
        %4859 = vmatpush1.msra.mxu0 0.0
        %4860 = vmatprep.subr.mxu0 0.0
        %4861 = vmatpush1.msra.mxu0 0.0
        %4862 = vmatprep.subr.mxu0 0.0
        %4863 = vmatpush1.msra.mxu0 0.0
        %4864 = vmatprep.subr.mxu0 0.0
        %4865 = vmatpush1.msra.mxu0 0.0
        %4866 = vmatprep.subr.mxu0 0.0
        %4867 = vmatpush1.msra.mxu0 0.0
        %4868 = vmatprep.subr.mxu0 0.0
        %4869 = vmatpush1.msra.mxu0 0.0
        %4870 = vmatprep.subr.mxu0 0.0
        %4871 = vmatpush1.msra.mxu0 0.0
        %4872 = vmatprep.subr.mxu0 0.0
        %4873 = vmatpush1.msra.mxu0 0.0
        %4874 = vmatprep.subr.mxu0 0.0
        %4875 = vmatpush1.msra.mxu0 0.0
        %4876 = vmatprep.subr.mxu0 0.0
        %4877 = vmatpush1.msra.mxu0 0.0
        %4878 = vmatprep.subr.mxu0 0.0
        %4879 = vmatpush1.msra.mxu0 0.0
        %4880 = vmatprep.subr.mxu0 0.0
        %4881 = vmatpush1.msra.mxu0 0.0
        %4882 = vmatprep.subr.mxu0 0.0
        %4883 = vmatpush1.msra.mxu0 0.0
        %4884 = vmatprep.subr.mxu0 0.0
        %4885 = vmatpush1.msra.mxu0 0.0
        %4886 = vmatprep.subr.mxu0 0.0
        %4887 = vmatpush1.msra.mxu0 0.0
        %4888 = vmatprep.subr.mxu0 0.0
        %4889 = vmatpush1.msra.mxu0 0.0
        %4890 = vmatprep.subr.mxu0 0.0
        %4891 = vmatpush1.msra.mxu0 0.0
        %4892 = vmatprep.subr.mxu0 0.0
        %4893 = vmatpush1.msra.mxu0 0.0
        %4894 = vmatprep.subr.mxu0 0.0
        %4895 = vmatpush1.msra.mxu0 0.0
        %4896 = vmatprep.subr.mxu0 0.0
        %4897 = vmatpush1.msra.mxu0 0.0
        %4898 = vmatprep.subr.mxu0 0.0
        %4899 = vmatpush1.msra.mxu0 0.0
        %4900 = vmatprep.mubr.f32.mxu0 0.0
        %4901 = vmatmul.mubr.f32.gmra.mrb[0].mxu0 %v4834
        %v4902 = vpop.f32.mrb[0].mxu0
        %v4903 = vadd.f32 %v4832, %v4902
        %v4904 = vpop.f32.mrb[0].mxu0
        %4905 = vdwg.mxu0
        %v4906 = vmax.f32 %v4903, 0.0
        %v4907 = vld [vmem:[%s20] sm:$0xff]
        %v4908 = vld [vmem:[#allocation2] sm:$0x1]
        %v4910 = vsel %vm912, %v4906, 0
        %4912 = vmatprep.subr.mxu0 0.0
        %4913 = vmatpush1.msra.mxu0 %v4907
        %4914 = vmatprep.subr.mxu0 0.0
        %4915 = vmatpush1.msra.mxu0 0.0
        %4916 = vmatprep.subr.mxu0 0.0
        %4917 = vmatpush1.msra.mxu0 0.0
        %4918 = vmatprep.subr.mxu0 0.0
        %4919 = vmatpush1.msra.mxu0 0.0
        %4920 = vmatprep.subr.mxu0 0.0
        %4921 = vmatpush1.msra.mxu0 0.0
        %4922 = vmatprep.subr.mxu0 0.0
        %4923 = vmatpush1.msra.mxu0 0.0
        %4924 = vmatprep.subr.mxu0 0.0
        %4925 = vmatpush1.msra.mxu0 0.0
        %4926 = vmatprep.subr.mxu0 0.0
        %4927 = vmatpush1.msra.mxu0 0.0
        %4928 = vmatprep.subr.mxu0 0.0
        %4929 = vmatpush1.msra.mxu0 0.0
        %4930 = vmatprep.subr.mxu0 0.0
        %4931 = vmatpush1.msra.mxu0 0.0
        %4932 = vmatprep.subr.mxu0 0.0
        %4933 = vmatpush1.msra.mxu0 0.0
        %4934 = vmatprep.subr.mxu0 0.0
        %4935 = vmatpush1.msra.mxu0 0.0
        %4936 = vmatprep.subr.mxu0 0.0
        %4937 = vmatpush1.msra.mxu0 0.0
        %4938 = vmatprep.subr.mxu0 0.0
        %4939 = vmatpush1.msra.mxu0 0.0
        %4940 = vmatprep.subr.mxu0 0.0
        %4941 = vmatpush1.msra.mxu0 0.0
        %4942 = vmatprep.subr.mxu0 0.0
        %4943 = vmatpush1.msra.mxu0 0.0
        %4944 = vmatprep.subr.mxu0 0.0
        %4945 = vmatpush1.msra.mxu0 0.0
        %4946 = vmatprep.subr.mxu0 0.0
        %4947 = vmatpush1.msra.mxu0 0.0
        %4948 = vmatprep.subr.mxu0 0.0
        %4949 = vmatpush1.msra.mxu0 0.0
        %4950 = vmatprep.subr.mxu0 0.0
        %4951 = vmatpush1.msra.mxu0 0.0
        %4952 = vmatprep.subr.mxu0 0.0
        %4953 = vmatpush1.msra.mxu0 0.0
        %4954 = vmatprep.subr.mxu0 0.0
        %4955 = vmatpush1.msra.mxu0 0.0
        %4956 = vmatprep.subr.mxu0 0.0
        %4957 = vmatpush1.msra.mxu0 0.0
        %4958 = vmatprep.subr.mxu0 0.0
        %4959 = vmatpush1.msra.mxu0 0.0
        %4960 = vmatprep.subr.mxu0 0.0
        %4961 = vmatpush1.msra.mxu0 0.0
        %4962 = vmatprep.subr.mxu0 0.0
        %4963 = vmatpush1.msra.mxu0 0.0
        %4964 = vmatprep.subr.mxu0 0.0
        %4965 = vmatpush1.msra.mxu0 0.0
        %4966 = vmatprep.subr.mxu0 0.0
        %4967 = vmatpush1.msra.mxu0 0.0
        %4968 = vmatprep.subr.mxu0 0.0
        %4969 = vmatpush1.msra.mxu0 0.0
        %4970 = vmatprep.subr.mxu0 0.0
        %4971 = vmatpush1.msra.mxu0 0.0
        %4972 = vmatprep.subr.mxu0 0.0
        %4973 = vmatpush1.msra.mxu0 0.0
        %4974 = vmatprep.subr.mxu0 0.0
        %4975 = vmatpush1.msra.mxu0 0.0
        %4976 = vmatprep.mubr.f32.mxu0 0.0
        %4977 = vmatmul.mubr.f32.gmra.mrb[0].mxu0 %v4910
        %v4978 = vpop.f32.mrb[0].mxu0
        %v4979 = vadd.f32 %v4908, %v4978
        %v4980 = vpop.f32.mrb[0].mxu0
        %4981 = vdwg.mxu0
        %vm4982 = vcmask 0
        %4983 = vst.msk [vmem:[%s778] sm:$0x1] %vm4982, %v4979
        %vm4984 = vcmask 253952
        %4985 = vst.msk [vmem:[%s755] sm:$0x1] %vm4984, %v4750
        %p4986 = scmp.lt.s32.totalorder %s40, 7
        %s4987 = scalar_select %p4986, %s40, 7
        %s4988 = scalar_lea.vmem %s22, %s4987
        %s4989 = sand.u32 %s556, 1
        %s4990 = scalar_lea.sflag [#allocation4], %s4989
        %s4991 = sand.u32 %s556, 1
        %s4992 = scalar_lea.vmem [#allocation3], %s4991
        // Predicated region
        $region109: #{tpu_custom_call.1} parent=107 // pred_check
          %p4993 = pneg %p540
        $region110: #{tpu_custom_call.1} parent=107 // pred_check_branch
          %4995 = sbr.rel (%p4993) target = $region112
        $region111: #{tpu_custom_call.1} parent=107 // pred_region
          _
        $region112: #{tpu_custom_call.1} parent=107 // pred_fallthru
          _
        // Predicated region
        $region113: #{tpu_custom_call.1} parent=107 // pred_check
          %p4996 = pneg %p566
        $region114: #{tpu_custom_call.1} parent=107 // pred_check_branch
          %4998 = sbr.rel (%p4996) target = $region116
        $region115: #{tpu_custom_call.1} parent=107 // pred_region
          %s5000 = ssub.s32 16, 16
          %5001 = vsyncadd %s4990, %s5000
          %s5002 = smul.addr %s40, 16
          %s5003 = scalar_lea.hbm %s23, %s5002
          %s5005 = sshll.u32 %s4992, 4
          %s5006 = int_to_ptr.vmem [resolvable:$true] %s5005
          %5008 = dma.vmem_to_hbm [thread:$0]  %s5006, 16, %s5003, %s4990
        $region116: #{tpu_custom_call.1} parent=107 // pred_fallthru
          _
      $region108: #{tpu_custom_call.1} parent=5 // pred_fallthru
        _
      %p5009 = scmp.le.s32.totalorder 2, %s35
      // Predicated region
      $region117: #{tpu_custom_call.1} parent=5 // pred_check
        %p5010 = pneg %p5009
      $region118: #{tpu_custom_call.1} parent=5 // pred_check_branch
        %5012 = sbr.rel (%p5010) target = $region120
      $region119: #{tpu_custom_call.1} parent=5 // pred_region
        %s5013 = ssub.s32 %s35, 2
        // Predicated region
        $region121: #{tpu_custom_call.1} parent=119 // pred_check
          %p5014 = pneg %p546
        $region122: #{tpu_custom_call.1} parent=119 // pred_check_branch
          %5016 = sbr.rel (%p5014) target = $region124
        $region123: #{tpu_custom_call.1} parent=119 // pred_region
          %p5017 = scmp.lt.s32.totalorder %s41, 7
          %s5018 = scalar_select %p5017, %s41, 7
          %s5019 = scalar_lea.vmem %s22, %s5018
        $region124: #{tpu_custom_call.1} parent=119 // pred_fallthru
          _
        // Predicated region
        $region125: #{tpu_custom_call.1} parent=119 // pred_check
          %p5020 = pneg %p572
        $region126: #{tpu_custom_call.1} parent=119 // pred_check_branch
          %5022 = sbr.rel (%p5020) target = $region128
        $region127: #{tpu_custom_call.1} parent=119 // pred_region
          %s5023 = sand.u32 %s557, 1
          %s5024 = scalar_lea.sflag [#allocation4], %s5023
          %s5025 = sand.u32 %s557, 1
          %s5026 = scalar_lea.vmem [#allocation3], %s5025
          %5027 = dma.done %s5024, 16
        $region128: #{tpu_custom_call.1} parent=119 // pred_fallthru
          _
      $region120: #{tpu_custom_call.1} parent=5 // pred_fallthru
        _
    $region6: #{tpu_custom_call.1} parent=1 // loop_footer
      %s39 = sadd.s32 1, %s35
    $region7: #{tpu_custom_call.1} parent=1 // loop_footer_branch
      %34 = sbr.rel target = $region3
    $region8: #{tpu_custom_call.1} parent=1 // loop_exit
      _
    %5028 = vsyncpa [#allocation4], 1
    %s5029 = scalar_lea.sflag [#allocation4], 1
    %5030 = vsyncpa %s5029, 1

</llo_original>
